<compile_context>
chip_gen: v5e
topology: v5e:2x2
jax: 0.10.0
libtpu: 0.0.40
codegen_flags: <defaults>
</compile_context>

<pallas_src>
import functools

import jax
import jax.numpy as jnp
import numpy as np
from jax.experimental import pallas as pl
from jax.experimental.pallas import tpu as pltpu


def _make_freq_bands(num_freqs: int, log_sampling: bool) -> np.ndarray:
    """Deterministic 'buffer' init, mirrors PositionalEncoder.__init__."""
    if log_sampling:
        return (2.0 ** np.linspace(0.0, num_freqs - 1, num_freqs)).astype(np.float32)
    return np.linspace(1.0, 2.0 ** (num_freqs - 1), num_freqs).astype(np.float32)


def _round_up(n: int, k: int) -> int:
    return ((n + k - 1) // k) * k


def _pe_kernel(x_ref, o_ref, *, num_freqs: int, input_dims: int, freqs: tuple):
    """Positional-encoding hot path.

    x_ref: (T, D) VMEM tile of the flattened input (rows on the sublane axis).
    o_ref: (T, D*(1+2F)) VMEM tile, channels-last, PyTorch channel order.

    Compute is channels-first (rows mapped to the 128-lane axis) so every
    multiply / sin / cos runs on lane-dense vregs; one per-tile transpose flips
    the assembled slab to channels-last right before the (single) store.
    """
    x = x_ref[...].astype(jnp.float32)   # f32 compute (v5e has no bf16 VPU/EUP)
    xT = x.T                             # (D, T), lane-dense

    if num_freqs == 0:                   # degenerate config: identity encoding
        o_ref[...] = x.astype(o_ref.dtype)
        return

    # Fused replicate+scale: row block i of `ang` is freqs[i] * x (D rows).
    # `freqs` are Python float immediates -> no captured array constants.
    ang = jnp.concatenate([xT * f for f in freqs], axis=0)       # (F*D, T)
    s = jnp.sin(ang)                                             # (F*D, T) dense
    c = jnp.cos(ang)                                             # (F*D, T) dense

    # Assemble [x, sin(f0 x), cos(f0 x), sin(f1 x), cos(f1 x), ...] along the
    # channel (sublane) axis, transpose once, store the whole tile once.
    parts = [xT]
    for i in range(num_freqs):
        lo = i * input_dims
        hi = lo + input_dims
        parts.append(s[lo:hi, :])
        parts.append(c[lo:hi, :])
    full = jnp.concatenate(parts, axis=0)                        # (D*(1+2F), T)
    o_ref[...] = full.T.astype(o_ref.dtype)                      # channels-last


def positional_encode(x: jax.Array, num_freqs: int = 10,
                      log_sampling: bool = True, block_cols: int = 8192) -> jax.Array:
    """Pallas equivalent of PositionalEncoder.forward.

    `block_cols` = rows per grid step (multiple of 128).  8192 rows => ~2 MiB
    of f32 output per step; ~12 MiB live VMEM including temps, safe on
    v5e/v6e (128 MiB) and v7x (64 MiB physical) with the explicit vmem limit.
    """
    input_dims = x.shape[-1]
    output_dims = input_dims * (1 + 2 * num_freqs)
    freqs = tuple(float(f) for f in _make_freq_bands(num_freqs, log_sampling))

    lead_shape = x.shape[:-1]
    m = int(np.prod(lead_shape)) if lead_shape else 1
    x2 = x.reshape(m, input_dims)        # metadata-only reshape, no transpose pass

    # 128-multiple row tile with Pallas ragged-edge masking; never tile_m == m
    # for unaligned m (keeps every output-row store lane-dense).
    block_cols = max(128, (int(block_cols) // 128) * 128)
    tile_m = min(block_cols, _round_up(m, 128))
    # Keep >=2 grid steps when m allows: with "parallel" semantics the row axis
    # then shards across both v7x TensorCores (harmless on v5e/v6e).
    if pl.cdiv(m, tile_m) < 2 and m > 2 * 128:
        tile_m = _round_up(pl.cdiv(m, 2), 128)
    grid = (pl.cdiv(m, tile_m),)

    kernel = functools.partial(_pe_kernel, num_freqs=num_freqs,
                               input_dims=input_dims, freqs=freqs)

    out = pl.pallas_call(
        kernel,
        out_shape=jax.ShapeDtypeStruct((m, output_dims), x.dtype),
        grid_spec=pltpu.PrefetchScalarGridSpec(
            num_scalar_prefetch=0,
            grid=grid,
            in_specs=[pl.BlockSpec((tile_m, input_dims), lambda i: (i, 0))],
            out_specs=pl.BlockSpec((tile_m, output_dims), lambda i: (i, 0)),
        ),
        compiler_params=pltpu.CompilerParams(
            dimension_semantics=("parallel",),
            vmem_limit_bytes=48 * 1024 * 1024,
        ),
    )(x2)

    # Channels-last already; just restore the leading shape.
    return out.reshape(*lead_shape, output_dims)


def _reference(x, num_freqs=10, log_sampling=True):
    """Pure-JAX reference matching the PyTorch forward exactly."""
    freqs = _make_freq_bands(num_freqs, log_sampling)
    outs = [x]
    for f in freqs:
        outs.append(jnp.sin(x * jnp.float32(f)))
        outs.append(jnp.cos(x * jnp.float32(f)))
    return jnp.concatenate(outs, axis=-1)


if __name__ == "__main__":
    key0, key1 = jax.random.split(jax.random.PRNGKey(0))

    # Config 1: NeRF-style coordinates, 2 rays x 333 samples x 3-D points.
    # block_cols=256 forces a multi-step grid with a ragged last block.
    num_freqs = 10
    x = jax.random.normal(key0, (2, 333, 3), dtype=jnp.float32)
    y = jax.block_until_ready(
        positional_encode(x, num_freqs=num_freqs, log_sampling=True, block_cols=256))
    assert y.shape == (2, 333, 3 * (1 + 2 * num_freqs)), y.shape
    np.testing.assert_allclose(np.asarray(y),
                               np.asarray(_reference(x, num_freqs, True)),
                               rtol=1e-5, atol=1e-5)

    # Config 2: lane-aligned row count, default block size, linear freq sampling.
    x2 = jax.random.normal(key1, (4, 128, 3), dtype=jnp.float32)
    y2 = jax.block_until_ready(positional_encode(x2, num_freqs=4, log_sampling=False))
    np.testing.assert_allclose(np.asarray(y2),
                               np.asarray(_reference(x2, 4, False)),
                               rtol=1e-5, atol=1e-5)

    print("KERNEL_OK")
</pallas_src>

<mosaic_0001>
module attributes {stable_mosaic.version = 11 : i64} {
  func.func @_pe_kernel(%arg0: i32, %arg1: memref<256x3xf32, #tpu.memory_space<vmem>>, %arg2: memref<256x63xf32, #tpu.memory_space<vmem>>) attributes {dimension_semantics = [#tpu.dimension_semantics<parallel>], iteration_bounds = array<i64: 3>, scalar_prefetch = 0 : i64, scratch_operands = 0 : i64, tpu.core_type = #tpu.core_type<tc>, window_params = [{transform_indices = @transform_0, window_bounds = array<i64: 256, 3>}, {transform_indices = @transform_1, window_bounds = array<i64: 256, 63>}]} {
    %c0 = arith.constant 0 : index
    %c0_0 = arith.constant 0 : index
    %0 = vector.load %arg1[%c0, %c0_0] : memref<256x3xf32, #tpu.memory_space<vmem>>, vector<256x3xf32>
    %1 = tpu.transpose %0, [1, 0] : vector<256x3xf32> -> vector<3x256xf32>
    %cst = arith.constant 1.000000e+00 : f32
    %2 = vector.broadcast %cst : f32 to vector<3x256xf32>
    %3 = arith.mulf %1, %2 : vector<3x256xf32>
    %cst_1 = arith.constant 2.000000e+00 : f32
    %4 = vector.broadcast %cst_1 : f32 to vector<3x256xf32>
    %5 = arith.mulf %1, %4 : vector<3x256xf32>
    %cst_2 = arith.constant 4.000000e+00 : f32
    %6 = vector.broadcast %cst_2 : f32 to vector<3x256xf32>
    %7 = arith.mulf %1, %6 : vector<3x256xf32>
    %cst_3 = arith.constant 8.000000e+00 : f32
    %8 = vector.broadcast %cst_3 : f32 to vector<3x256xf32>
    %9 = arith.mulf %1, %8 : vector<3x256xf32>
    %cst_4 = arith.constant 1.600000e+01 : f32
    %10 = vector.broadcast %cst_4 : f32 to vector<3x256xf32>
    %11 = arith.mulf %1, %10 : vector<3x256xf32>
    %cst_5 = arith.constant 3.200000e+01 : f32
    %12 = vector.broadcast %cst_5 : f32 to vector<3x256xf32>
    %13 = arith.mulf %1, %12 : vector<3x256xf32>
    %cst_6 = arith.constant 6.400000e+01 : f32
    %14 = vector.broadcast %cst_6 : f32 to vector<3x256xf32>
    %15 = arith.mulf %1, %14 : vector<3x256xf32>
    %cst_7 = arith.constant 1.280000e+02 : f32
    %16 = vector.broadcast %cst_7 : f32 to vector<3x256xf32>
    %17 = arith.mulf %1, %16 : vector<3x256xf32>
    %cst_8 = arith.constant 2.560000e+02 : f32
    %18 = vector.broadcast %cst_8 : f32 to vector<3x256xf32>
    %19 = arith.mulf %1, %18 : vector<3x256xf32>
    %cst_9 = arith.constant 5.120000e+02 : f32
    %20 = vector.broadcast %cst_9 : f32 to vector<3x256xf32>
    %21 = arith.mulf %1, %20 : vector<3x256xf32>
    %22 = tpu.concatenate %3, %5, %7, %9, %11, %13, %15, %17, %19, %21 in 0 : vector<3x256xf32>, vector<3x256xf32>, vector<3x256xf32>, vector<3x256xf32>, vector<3x256xf32>, vector<3x256xf32>, vector<3x256xf32>, vector<3x256xf32>, vector<3x256xf32>, vector<3x256xf32> -> vector<30x256xf32>
    %23 = math.sin %22 : vector<30x256xf32>
    %24 = math.cos %22 : vector<30x256xf32>
    %25 = vector.extract_strided_slice %23 {offsets = [0, 0], sizes = [3, 256], strides = [1, 1]} : vector<30x256xf32> to vector<3x256xf32>
    %26 = vector.extract_strided_slice %24 {offsets = [0, 0], sizes = [3, 256], strides = [1, 1]} : vector<30x256xf32> to vector<3x256xf32>
    %27 = vector.extract_strided_slice %23 {offsets = [3, 0], sizes = [3, 256], strides = [1, 1]} : vector<30x256xf32> to vector<3x256xf32>
    %28 = vector.extract_strided_slice %24 {offsets = [3, 0], sizes = [3, 256], strides = [1, 1]} : vector<30x256xf32> to vector<3x256xf32>
    %29 = vector.extract_strided_slice %23 {offsets = [6, 0], sizes = [3, 256], strides = [1, 1]} : vector<30x256xf32> to vector<3x256xf32>
    %30 = vector.extract_strided_slice %24 {offsets = [6, 0], sizes = [3, 256], strides = [1, 1]} : vector<30x256xf32> to vector<3x256xf32>
    %31 = vector.extract_strided_slice %23 {offsets = [9, 0], sizes = [3, 256], strides = [1, 1]} : vector<30x256xf32> to vector<3x256xf32>
    %32 = vector.extract_strided_slice %24 {offsets = [9, 0], sizes = [3, 256], strides = [1, 1]} : vector<30x256xf32> to vector<3x256xf32>
    %33 = vector.extract_strided_slice %23 {offsets = [12, 0], sizes = [3, 256], strides = [1, 1]} : vector<30x256xf32> to vector<3x256xf32>
    %34 = vector.extract_strided_slice %24 {offsets = [12, 0], sizes = [3, 256], strides = [1, 1]} : vector<30x256xf32> to vector<3x256xf32>
    %35 = vector.extract_strided_slice %23 {offsets = [15, 0], sizes = [3, 256], strides = [1, 1]} : vector<30x256xf32> to vector<3x256xf32>
    %36 = vector.extract_strided_slice %24 {offsets = [15, 0], sizes = [3, 256], strides = [1, 1]} : vector<30x256xf32> to vector<3x256xf32>
    %37 = vector.extract_strided_slice %23 {offsets = [18, 0], sizes = [3, 256], strides = [1, 1]} : vector<30x256xf32> to vector<3x256xf32>
    %38 = vector.extract_strided_slice %24 {offsets = [18, 0], sizes = [3, 256], strides = [1, 1]} : vector<30x256xf32> to vector<3x256xf32>
    %39 = vector.extract_strided_slice %23 {offsets = [21, 0], sizes = [3, 256], strides = [1, 1]} : vector<30x256xf32> to vector<3x256xf32>
    %40 = vector.extract_strided_slice %24 {offsets = [21, 0], sizes = [3, 256], strides = [1, 1]} : vector<30x256xf32> to vector<3x256xf32>
    %41 = vector.extract_strided_slice %23 {offsets = [24, 0], sizes = [3, 256], strides = [1, 1]} : vector<30x256xf32> to vector<3x256xf32>
    %42 = vector.extract_strided_slice %24 {offsets = [24, 0], sizes = [3, 256], strides = [1, 1]} : vector<30x256xf32> to vector<3x256xf32>
    %43 = vector.extract_strided_slice %23 {offsets = [27, 0], sizes = [3, 256], strides = [1, 1]} : vector<30x256xf32> to vector<3x256xf32>
    %44 = vector.extract_strided_slice %24 {offsets = [27, 0], sizes = [3, 256], strides = [1, 1]} : vector<30x256xf32> to vector<3x256xf32>
    %45 = tpu.concatenate %1, %25, %26, %27, %28, %29, %30, %31, %32, %33, %34, %35, %36, %37, %38, %39 in 0 : vector<3x256xf32>, vector<3x256xf32>, vector<3x256xf32>, vector<3x256xf32>, vector<3x256xf32>, vector<3x256xf32>, vector<3x256xf32>, vector<3x256xf32>, vector<3x256xf32>, vector<3x256xf32>, vector<3x256xf32>, vector<3x256xf32>, vector<3x256xf32>, vector<3x256xf32>, vector<3x256xf32>, vector<3x256xf32> -> vector<48x256xf32>
    %46 = tpu.concatenate %40, %41, %42, %43, %44 in 0 : vector<3x256xf32>, vector<3x256xf32>, vector<3x256xf32>, vector<3x256xf32>, vector<3x256xf32> -> vector<15x256xf32>
    %47 = tpu.concatenate %45, %46 in 0 : vector<48x256xf32>, vector<15x256xf32> -> vector<63x256xf32>
    %48 = tpu.transpose %47, [1, 0] : vector<63x256xf32> -> vector<256x63xf32>
    %c0_10 = arith.constant 0 : index
    %c0_11 = arith.constant 0 : index
    %49 = vector.load %arg2[%c0_10, %c0_11] : memref<256x63xf32, #tpu.memory_space<vmem>>, vector<256x63xf32>
    tpu.vector_store %arg2[%c0_10, %c0_11], %48 {strides = array<i32>} : memref<256x63xf32, #tpu.memory_space<vmem>>, vector<256x63xf32>,
    return
  }
  func.func @transform_0(%arg0: i32) -> (i32, i32) {
    %c0_i32 = arith.constant 0 : i32
    %c0_i32_0 = arith.constant 0 : i32
    return %arg0, %c0_i32 : i32, i32
  }
  func.func @transform_1(%arg0: i32) -> (i32, i32) {
    %c0_i32 = arith.constant 0 : i32
    %c0_i32_0 = arith.constant 0 : i32
    return %arg0, %c0_i32 : i32, i32
  }
}

</mosaic_0001>

<llo_original>
// kernel: tpu_custom_call.1
$region0: #{tpu_custom_call.1}
  #allocation0 [shape = 'u32[]', space=smem, size = 0x4, offset = 0x4, fixed_abs, tag = 'smem constant byte address 0x4 - core index']
  #allocation1 [shape = 'u32[72,128]{1,0:T(1,128)}', space=vmem, size = 0x9000, scoped, tag = 'internal scratch']
  %s0 = inlined_call_operand.vmem [shape: f32[666,3], index: 0, kind: input, shape index: {}]
  %s1 = inlined_call_operand.vmem [shape: f32[666,63], index: 1, kind: output, shape index: {}]
  %s2 = sld [smem:[#allocation0]]
  $region85: #{tpu_custom_call.1} parent=0
    _
  %s4 = ssub.s32 1, %s2
  %s5 = scalar_select 0, %s4, %s2
  $region1: #{tpu_custom_call.1} parent=0
    #allocation2 [shape = 'u8[262144]{0}', space=vmem, size = 0x40000, scoped, tag = 'output window, operand 0']
    loop: start=0, step=1, limit=5
    $region2: #{tpu_custom_call.1} parent=1 // loop_pre_header
      _
    $region3: #{tpu_custom_call.1} parent=1 // loop_header
      %s7 = sphi 0, %s11
      %p8 = scmp.ge.s32.totalorder %s7, 5
      %s17 = sphi 0, %s19
      %s20 = sphi 0, %s17
      %s21 = sphi 0, %s20
      %s37 = sphi 0, %s21
      %s43 = sphi 0, %s45
      %s46 = sphi 0, %s43
      %s47 = sphi 0, %s46
      %s63 = sphi 0, %s47
    $region4: #{tpu_custom_call.1} parent=1 // loop_header_branch
      %10 = sbr.rel (%p8) target = $region8
    $region5: #{tpu_custom_call.1} parent=1 // loop_body
      %s12 = ssub.s32 %s7, 1
      %s13 = ssub.s32 %s7, 2
      %s14 = sadd.s32 %s7, 1
      %s15 = ssub.s32 %s7, %s14
      %p16 = scmp.eq.s32.totalorder %s15, 0
      %s18 = sadd.s32 %s17, 1
      %s19 = scalar_select %p16, %s17, %s18
      %p22 = pneg %p16
      %p23 = scmp.eq.s32.totalorder %s7, 2
      %p24 = por %p22, %p23
      %p25 = scmp.ne.s32.totalorder %s17, %s20
      %p26 = scmp.eq.s32.totalorder %s7, 0
      %p27 = por %p25, %p26
      %p28 = scmp.ne.s32.totalorder %s17, %s20
      %p29 = scmp.eq.s32.totalorder %s12, 2
      %p30 = por %p28, %p29
      %p31 = scmp.ne.s32.totalorder %s20, %s21
      %p32 = scmp.eq.s32.totalorder %s12, 0
      %p33 = por %p31, %p32
      %p34 = scmp.ne.s32.totalorder %s20, %s21
      %p35 = scmp.eq.s32.totalorder %s13, 2
      %p36 = por %p34, %p35
      %p38 = scmp.ne.s32.totalorder %s21, %s37
      %p39 = scmp.eq.s32.totalorder %s13, 0
      %p40 = por %p38, %p39
      %s41 = ssub.s32 %s7, %s14
      %p42 = scmp.eq.s32.totalorder %s41, 0
      %s44 = sadd.s32 %s43, 1
      %s45 = scalar_select %p42, %s43, %s44
      %p48 = pneg %p42
      %p49 = scmp.eq.s32.totalorder %s7, 2
      %p50 = por %p48, %p49
      %p51 = scmp.ne.s32.totalorder %s43, %s46
      %p52 = scmp.eq.s32.totalorder %s7, 0
      %p53 = por %p51, %p52
      %p54 = scmp.ne.s32.totalorder %s43, %s46
      %p55 = scmp.eq.s32.totalorder %s12, 2
      %p56 = por %p54, %p55
      %p57 = scmp.ne.s32.totalorder %s46, %s47
      %p58 = scmp.eq.s32.totalorder %s12, 0
      %p59 = por %p57, %p58
      %p60 = scmp.ne.s32.totalorder %s46, %s47
      %p61 = scmp.eq.s32.totalorder %s13, 2
      %p62 = por %p60, %p61
      %p64 = scmp.ne.s32.totalorder %s47, %s63
      %p65 = scmp.eq.s32.totalorder %s13, 0
      %p66 = por %p64, %p65
      %p67 = scmp.le.s32.totalorder 1, %s7
      %p68 = scmp.lt.s32.totalorder %s7, 4
      %p69 = pnand %p67, %p68
      %p70 = pneg %p69
      // Predicated region
      $region9: #{tpu_custom_call.1} parent=5 // pred_check
        _
      $region10: #{tpu_custom_call.1} parent=5 // pred_check_branch
        %72 = sbr.rel (%p69) target = $region12
      $region11: #{tpu_custom_call.1} parent=5 // pred_region
        %s73 = ssub.s32 %s7, 1
      $region12: #{tpu_custom_call.1} parent=5 // pred_fallthru
        _
      %p74 = scmp.lt.s32.totalorder %s7, 3
      // Predicated region
      $region13: #{tpu_custom_call.1} parent=5 // pred_check
        %p75 = pneg %p74
      $region14: #{tpu_custom_call.1} parent=5 // pred_check_branch
        %77 = sbr.rel (%p75) target = $region16
      $region15: #{tpu_custom_call.1} parent=5 // pred_region
        // Predicated region
        $region17: #{tpu_custom_call.1} parent=15 // pred_check
          %p78 = pneg %p27
        $region18: #{tpu_custom_call.1} parent=15 // pred_check_branch
          %80 = sbr.rel (%p78) target = $region20
        $region19: #{tpu_custom_call.1} parent=15 // pred_region
          %s81 = smul.u32 32, %s7
          %s82 = ssub.s32 84, %s81
          %p83 = scmp.lt.s32.totalorder %s82, 32
          %s84 = scalar_select %p83, %s82, 32
          %s85 = smul.u32 8, %s84
          %p86 = scmp.lt.s32.totalorder %s81, 83
          %s87 = scalar_select %p86, %s81, 83
          %s88 = smul.addr %s87, 8
          %s89 = scalar_lea.vmem %s0, %s88
          %s90 = smul.u32 32, %s7
          %s91 = ssub.s32 84, %s90
          %p92 = scmp.lt.s32.totalorder %s91, 32
          %s93 = scalar_select %p92, %s91, 32
          %s94 = smul.u32 8, %s93
        $region20: #{tpu_custom_call.1} parent=15 // pred_fallthru
          _
      $region16: #{tpu_custom_call.1} parent=5 // pred_fallthru
        _
      %p95 = scmp.le.s32.totalorder 1, %s7
      %p96 = scmp.lt.s32.totalorder %s7, 4
      %p97 = pnand %p95, %p96
      %p98 = pneg %p97
      // Predicated region
      $region21: #{tpu_custom_call.1} parent=5 // pred_check
        _
      $region22: #{tpu_custom_call.1} parent=5 // pred_check_branch
        %100 = sbr.rel (%p97) target = $region24
      $region23: #{tpu_custom_call.1} parent=5 // pred_region
        %s101 = ssub.s32 %s7, 1
        %s102 = smul.u32 32, %s12
        %s103 = ssub.s32 84, %s102
        %p104 = scmp.lt.s32.totalorder %s103, 32
        %s105 = scalar_select %p104, %s103, 32
        %s106 = smul.u32 8, %s105
        %p107 = scmp.lt.s32.totalorder %s102, 83
        %s108 = scalar_select %p107, %s102, 83
        %s109 = smul.addr %s108, 8
        %s110 = scalar_lea.vmem %s0, %s109
        %p111 = pneg %p33
        %p112 = pneg %p30
        %p113 = pneg %p59
        %p114 = pneg %p56
        %s115 = sand.u32 %s46, 1
        %s116 = sand.u32 %s46, 1
        %s117 = smul.addr %s116, 256
        %s118 = scalar_lea.vmem [#allocation2], %s117
        %s119 = smul.u32 32, %s12
        %s120 = ssub.s32 84, %s119
        %p121 = scmp.lt.s32.totalorder %s120, 32
        %s122 = scalar_select %p121, %s120, 32
        %s123 = smul.u32 8, %s122
        %p124 = scmp.lt.s32.totalorder %s119, 83
        %s125 = scalar_select %p124, %s119, 83
        %s126 = smul.addr %s125, 8
        %s127 = scalar_lea.vmem %s0, %s126
        %s128 = smul.u32 32, %s12
        %s129 = ssub.s32 84, %s128
        %p130 = scmp.lt.s32.totalorder %s129, 32
        %s131 = scalar_select %p130, %s129, 32
        %s132 = smul.u32 8, %s131
        %s133 = smul.u32 32, %s12
        %s134 = ssub.s32 84, %s133
        %p135 = scmp.lt.s32.totalorder %s134, 32
        %s136 = scalar_select %p135, %s134, 32
        %s137 = smul.u32 8, %s136
        %v138 = vld [vmem:[%s127] sm:$0xff]
        %v139 = vld [vmem:[%s127 + $0x8] sm:$0xff]
        %v140 = vld [vmem:[%s127 + $0x10] sm:$0xff]
        %v141 = vld [vmem:[%s127 + $0x18] sm:$0xff]
        %v142 = vld [vmem:[%s127 + $0x20] sm:$0xff]
        %v143 = vld [vmem:[%s127 + $0x28] sm:$0xff]
        %v144 = vld [vmem:[%s127 + $0x30] sm:$0xff]
        %v145 = vld [vmem:[%s127 + $0x38] sm:$0xff]
        %v146 = vld [vmem:[%s127 + $0x40] sm:$0xff]
        %v147 = vld [vmem:[%s127 + $0x48] sm:$0xff]
        %v148 = vld [vmem:[%s127 + $0x50] sm:$0xff]
        %v149 = vld [vmem:[%s127 + $0x58] sm:$0xff]
        %v150 = vld [vmem:[%s127 + $0x60] sm:$0xff]
        %v151 = vld [vmem:[%s127 + $0x68] sm:$0xff]
        %v152 = vld [vmem:[%s127 + $0x70] sm:$0xff]
        %v153 = vld [vmem:[%s127 + $0x78] sm:$0xff]
        %v154 = vld [vmem:[%s127 + $0x80] sm:$0xff]
        %v155 = vld [vmem:[%s127 + $0x88] sm:$0xff]
        %v156 = vld [vmem:[%s127 + $0x90] sm:$0xff]
        %v157 = vld [vmem:[%s127 + $0x98] sm:$0xff]
        %v158 = vld [vmem:[%s127 + $0xa0] sm:$0xff]
        %v159 = vld [vmem:[%s127 + $0xa8] sm:$0xff]
        %v160 = vld [vmem:[%s127 + $0xb0] sm:$0xff]
        %v161 = vld [vmem:[%s127 + $0xb8] sm:$0xff]
        %v162 = vld [vmem:[%s127 + $0xc0] sm:$0xff]
        %v163 = vld [vmem:[%s127 + $0xc8] sm:$0xff]
        %v164 = vld [vmem:[%s127 + $0xd0] sm:$0xff]
        %v165 = vld [vmem:[%s127 + $0xd8] sm:$0xff]
        %v166 = vld [vmem:[%s127 + $0xe0] sm:$0xff]
        %v167 = vld [vmem:[%s127 + $0xe8] sm:$0xff]
        %v168 = vld [vmem:[%s127 + $0xf0] sm:$0xff]
        %v169 = vld [vmem:[%s127 + $0xf8] sm:$0xff]
        %170 = vxpose.xlu0.b32.start [1/16] %v138, 128
        %171 = vxpose.xlu0.b32.cont [2/16] %v139, 128
        %172 = vxpose.xlu0.b32.cont [3/16] %v140, 128
        %173 = vxpose.xlu0.b32.cont [4/16] %v141, 128
        %174 = vxpose.xlu0.b32.cont [5/16] %v142, 128
        %175 = vxpose.xlu0.b32.cont [6/16] %v143, 128
        %176 = vxpose.xlu0.b32.cont [7/16] %v144, 128
        %177 = vxpose.xlu0.b32.cont [8/16] %v145, 128
        %178 = vxpose.xlu0.b32.cont [9/16] %v146, 128
        %179 = vxpose.xlu0.b32.cont [10/16] %v147, 128
        %180 = vxpose.xlu0.b32.cont [11/16] %v148, 128
        %181 = vxpose.xlu0.b32.cont [12/16] %v149, 128
        %182 = vxpose.xlu0.b32.cont [13/16] %v150, 128
        %183 = vxpose.xlu0.b32.cont [14/16] %v151, 128
        %184 = vxpose.xlu0.b32.cont [15/16] %v152, 128
        %185 = vxpose.xlu0.b32.end [16/16] %v153, 128
        %v186 = vpop.trf.xlu0
        %v187 = vpop.trf.xlu0
        %v188 = vpop.trf.xlu0
        %v189 = vpop.trf.xlu0
        %v190 = vpop.trf.xlu0
        %v191 = vpop.trf.xlu0
        %v192 = vpop.trf.xlu0
        %v193 = vpop.trf.xlu0
        %v194 = vpop.trf.xlu0
        %v195 = vpop.trf.xlu0
        %v196 = vpop.trf.xlu0
        %v197 = vpop.trf.xlu0
        %v198 = vpop.trf.xlu0
        %v199 = vpop.trf.xlu0
        %v200 = vpop.trf.xlu0
        %v201 = vpop.trf.xlu0
        %202 = vxpose.xlu0.b32.start [1/16] %v154, 128
        %203 = vxpose.xlu0.b32.cont [2/16] %v155, 128
        %204 = vxpose.xlu0.b32.cont [3/16] %v156, 128
        %205 = vxpose.xlu0.b32.cont [4/16] %v157, 128
        %206 = vxpose.xlu0.b32.cont [5/16] %v158, 128
        %207 = vxpose.xlu0.b32.cont [6/16] %v159, 128
        %208 = vxpose.xlu0.b32.cont [7/16] %v160, 128
        %209 = vxpose.xlu0.b32.cont [8/16] %v161, 128
        %210 = vxpose.xlu0.b32.cont [9/16] %v162, 128
        %211 = vxpose.xlu0.b32.cont [10/16] %v163, 128
        %212 = vxpose.xlu0.b32.cont [11/16] %v164, 128
        %213 = vxpose.xlu0.b32.cont [12/16] %v165, 128
        %214 = vxpose.xlu0.b32.cont [13/16] %v166, 128
        %215 = vxpose.xlu0.b32.cont [14/16] %v167, 128
        %216 = vxpose.xlu0.b32.cont [15/16] %v168, 128
        %217 = vxpose.xlu0.b32.end [16/16] %v169, 128
        %v218 = vpop.trf.xlu0
        %v219 = vpop.trf.xlu0
        %v220 = vpop.trf.xlu0
        %v221 = vpop.trf.xlu0
        %v222 = vpop.trf.xlu0
        %v223 = vpop.trf.xlu0
        %v224 = vpop.trf.xlu0
        %v225 = vpop.trf.xlu0
        %v226 = vpop.trf.xlu0
        %v227 = vpop.trf.xlu0
        %v228 = vpop.trf.xlu0
        %v229 = vpop.trf.xlu0
        %v230 = vpop.trf.xlu0
        %v231 = vpop.trf.xlu0
        %v232 = vpop.trf.xlu0
        %v233 = vpop.trf.xlu0
        %v234 = vmul.f32 %v186, 2.0
        %v235 = vmul.f32 %v218, 2.0
        %v236 = vmul.f32 %v186, 4.0
        %v237 = vmul.f32 %v218, 4.0
        %v238 = vmul.f32 %v186, 8.0
        %v239 = vmul.f32 %v218, 8.0
        %v240 = vmul.f32 %v186, 16.0
        %v241 = vmul.f32 %v218, 16.0
        %v242 = vmul.f32 %v186, 32.0
        %v243 = vmul.f32 %v218, 32.0
        %v244 = vmul.f32 %v186, 64.0
        %v245 = vmul.f32 %v218, 64.0
        %v246 = vmul.f32 %v186, 128.0
        %v247 = vmul.f32 %v218, 128.0
        %v248 = vmul.f32 %v186, 256.0
        %v249 = vmul.f32 %v218, 256.0
        %v250 = vmul.f32 %v186, 512.0
        %v251 = vmul.f32 %v218, 512.0
        %v254 = vrot.slane %v234, 5
        %v255 = vrot.slane %v235, 5
        %v260 = vrot.slane %v236, 2
        %v261 = vrot.slane %v237, 2
        %v266 = vrot.slane %v238, 7
        %v267 = vrot.slane %v239, 7
        %v272 = vrot.slane %v240, 4
        %v273 = vrot.slane %v241, 4
        %v278 = vrot.slane %v242, 1
        %v279 = vrot.slane %v243, 1
        %v284 = vrot.slane %v244, 6
        %v285 = vrot.slane %v245, 6
        %v290 = vrot.slane %v246, 3
        %v291 = vrot.slane %v247, 3
        %v296 = vrot.slane %v250, 5
        %v297 = vrot.slane %v251, 5
        %vm300 = vcmask 1042432
        %v301 = vsel %vm300, %v186, %v254
        %v302 = vsel %vm300, %v218, %v255
        %vm303 = vcmask 1045504
        %v304 = vsel %vm303, %v301, %v260
        %v305 = vsel %vm303, %v302, %v261
        %vm306 = vcmask 1040384
        %v307 = vsel %vm306, %v260, %v266
        %v308 = vsel %vm306, %v261, %v267
        %vm309 = vcmask 1043456
        %v310 = vsel %vm309, %v307, %v272
        %v311 = vsel %vm309, %v308, %v273
        %vm312 = vcmask 1046528
        %v313 = vsel %vm312, %v310, %v278
        %v314 = vsel %vm312, %v311, %v279
        %vm315 = vcmask 1041408
        %v316 = vsel %vm315, %v278, %v284
        %v317 = vsel %vm315, %v279, %v285
        %vm318 = vcmask 1044480
        %v319 = vsel %vm318, %v316, %v290
        %v320 = vsel %vm318, %v317, %v291
        %v321 = vsel %vm300, %v248, %v296
        %v322 = vsel %vm300, %v249, %v297
        %v323 = vand.u32 2147483647, %v304
        %vm324 = vcmp.le.f32.partialorder %v323, 0.7853982
        %vm325 = vcmp.lt.s32.totalorder %v304, 0
        %v326 = vand.u32 %v304, 2139095040
        %v327 = vshrl.u32 %v326, 23
        %v328 = vsub.s32 %v327, 127
        %v329 = vand.u32 2147483647, %v304
        %v330 = vand.u32 %v329, 8388607
        %v331 = vor.u32 %v330, 8388608
        %v332 = vsub.s32 0, %v331
        %v333 = vadd.s32 %v328, 1
        %vm334 = vcmp.gt.s32.totalorder %v333, 0
        %v335 = vsel %vm334, %v333, 0
        %v336 = vshrl.u32 %v335, 5
        %v337 = vand.u32 %v335, 31
        %v338 = vsub.s32 32, %v337
        %v339 = vshrl.u32 683565275, %v338
        %v340 = vshll.u32 683565275, %v337
        %v341 = vshrl.u32 2475754826, %v338
        %v342 = vor.u32 %v340, %v341
        %v343 = vshll.u32 2475754826, %v337
        %v344 = vshrl.u32 2131351028, %v338
        %v345 = vor.u32 %v343, %v344
        %v346 = vshll.u32 2131351028, %v337
        %v347 = vshrl.u32 2102212464, %v338
        %v348 = vor.u32 %v346, %v347
        %v349 = vshll.u32 2102212464, %v337
        %v350 = vshrl.u32 920167782, %v338
        %v351 = vor.u32 %v349, %v350
        %v352 = vshll.u32 920167782, %v337
        %v353 = vshrl.u32 1326507024, %v338
        %v354 = vor.u32 %v352, %v353
        %vm355 = vcmp.lt.s32.totalorder %v336, 1
        %vm356 = vcmp.lt.s32.totalorder %v336, 2
        %vm357 = vcmp.lt.s32.totalorder %v336, 3
        %vm358 = vcmp.lt.s32.totalorder %v336, 4
        %v359 = vsel %vm355, %v339, %v342
        %v360 = vsel %vm358, %v348, 2102212464
        %v361 = vsel %vm357, %v345, %v360
        %v362 = vsel %vm356, %v359, %v361
        %v363 = vsel %vm355, %v342, %v345
        %v364 = vsel %vm358, %v351, 920167782
        %v365 = vsel %vm357, %v348, %v364
        %v366 = vsel %vm356, %v363, %v365
        %v367 = vsel %vm355, %v345, %v348
        %v368 = vsel %vm358, %v354, 1326507024
        %v369 = vsel %vm357, %v351, %v368
        %v370 = vsel %vm356, %v367, %v369
        %v371 = vshll.u32 %v331, 8
        %v372 = vand.u32 %v371, 65535
        %v373 = vshrl.u32 %v371, 16
        %v374 = vand.u32 %v370, 65535
        %v375 = vshrl.u32 %v370, 16
        %v376 = vmul.u32 %v372, %v374
        %v377 = vmul.u32 %v372, %v375
        %v378 = vmul.u32 %v373, %v374
        %v379 = vmul.u32 %v373, %v375
        %v380 = vshll.u32 %v377, 16
        %v381 = vshrl.u32 %v377, 16
        %v382 = vshll.u32 %v378, 16
        %v383 = vshrl.u32 %v378, 16
        %vm384 = vc.u32 %v376, %v380
        %v385 = vsel %vm384, 1, 0
        %v386 = vadd.s32 %v376, %v380
        %v387 = vadd.s32 %v379, %v385
        %vm388 = vc.u32 %v386, %v382
        %v389 = vsel %vm388, 1, 0
        %v390 = vadd.s32 %v386, %v382
        %v391 = vadd.s32 %v387, %v389
        %v392 = vadd.s32 %v391, %v381
        %v393 = vadd.s32 %v392, %v383
        %v394 = vand.u32 %v371, 65535
        %v395 = vshrl.u32 %v371, 16
        %v396 = vand.u32 %v366, 65535
        %v397 = vshrl.u32 %v366, 16
        %v398 = vmul.u32 %v394, %v396
        %v399 = vmul.u32 %v394, %v397
        %v400 = vmul.u32 %v395, %v396
        %v401 = vmul.u32 %v395, %v397
        %v402 = vshll.u32 %v399, 16
        %v403 = vshrl.u32 %v399, 16
        %v404 = vshll.u32 %v400, 16
        %v405 = vshrl.u32 %v400, 16
        %vm406 = vc.u32 %v398, %v402
        %v407 = vsel %vm406, 1, 0
        %v408 = vadd.s32 %v398, %v402
        %v409 = vadd.s32 %v401, %v407
        %vm410 = vc.u32 %v408, %v404
        %v411 = vsel %vm410, 1, 0
        %v412 = vadd.s32 %v408, %v404
        %v413 = vadd.s32 %v409, %v411
        %v414 = vadd.s32 %v413, %v403
        %v415 = vadd.s32 %v414, %v405
        %v416 = vmul.u32 %v371, %v362
        %v417 = vadd.s32 %v393, %v412
        %vm418 = vc.u32 %v393, %v412
        %v419 = vadd.s32 %v415, 1
        %v420 = vsel %vm418, %v419, %v415
        %v421 = vadd.s32 %v416, %v420
        %v422 = vadd.s32 %v421, 536870912
        %v423 = vshrl.u32 %v422, 30
        %v424 = vshll.u32 %v423, 30
        %v425 = vsub.s32 %v421, %v424
        %vm426 = vcmp.lt.s32.totalorder %v425, 0
        %v427 = vsub.s32 0, %v425
        %v428 = vsel %vm426, %v427, %v425
        %v429 = vclz %v428
        %v430 = vsub.s32 %v429, 2
        %vm431 = vcmp.gt.s32.totalorder 0, %v430
        %v432 = vsel %vm431, 0, %v430
        %v433 = vsub.s32 32, %v432
        %v434 = vshll.u32 %v425, %v432
        %v435 = vshrl.u32 %v417, %v433
        %v436 = vor.u32 %v434, %v435
        %v437 = vsub.s32 4294967266, %v432
        %v438 = vadd.s32 %v437, 127
        %v439 = vshll.u32 %v438, 23
        %v440 = vor.u32 4788187, %v439
        %v441 = vand.u32 2147483647, %v440
        %v443 = vcvt.s32.f32 %v436
        %v444 = vmul.f32 %v443, %v441
        %v445 = vxor.u32 %v444, 2147483648
        %v446 = vsel %vm325, %v445, %v444
        %v447 = vsub.s32 4, %v423
        %v448 = vsel %vm325, %v447, %v423
        %v449 = vsel %vm324, %v304, %v446
        %v450 = vsel %vm324, 0, %v448
        %v451 = vmul.f32 %v449, %v449
        %v452 = vmul.f32 %v451, -0.001358992
        %v453 = vadd.f32 %v452, 0.041655596
        %v454 = vmul.f32 %v451, %v453
        %v455 = vadd.f32 %v454, -0.4999988
        %v456 = vmul.f32 %v451, %v455
        %v457 = vadd.f32 1.0, %v456
        %v458 = vmul.f32 %v449, %v449
        %v459 = vmul.f32 %v458, -0.00019511016
        %v460 = vadd.f32 %v459, 0.008332121
        %v461 = vmul.f32 %v458, %v460
        %v462 = vadd.f32 %v461, -0.16666654
        %v463 = vmul.f32 %v458, %v462
        %v464 = vadd.f32 %v463, 1.0
        %v465 = vmul.f32 %v464, %v449
        %vm466 = vweird.f32 %v304
        %v467 = vadd.s32 %v450, 3
        %v468 = vand.u32 %v467, 3
        %vm469 = vcmp.lt.s32.totalorder %v468, 2
        %vm470 = vcmp.eq.s32.totalorder %v468, 0
        %v471 = vxor.u32 %v465, 2147483648
        %v472 = vsel %vm470, %v457, %v471
        %vm473 = vcmp.eq.s32.totalorder %v468, 2
        %v474 = vxor.u32 %v457, 2147483648
        %v475 = vsel %vm473, %v474, %v465
        %v476 = vsel %vm469, %v472, %v475
        %v477 = vsel %vm466, nan, %v476
        %v478 = vand.u32 2147483647, %v305
        %vm479 = vcmp.le.f32.partialorder %v478, 0.7853982
        %vm480 = vcmp.lt.s32.totalorder %v305, 0
        %v481 = vand.u32 %v305, 2139095040
        %v482 = vshrl.u32 %v481, 23
        %v483 = vsub.s32 %v482, 127
        %v484 = vand.u32 2147483647, %v305
        %v485 = vand.u32 %v484, 8388607
        %v486 = vor.u32 %v485, 8388608
        %v487 = vsub.s32 0, %v486
        %v488 = vadd.s32 %v483, 1
        %vm489 = vcmp.gt.s32.totalorder %v488, 0
        %v490 = vsel %vm489, %v488, 0
        %v491 = vshrl.u32 %v490, 5
        %v492 = vand.u32 %v490, 31
        %v493 = vsub.s32 32, %v492
        %v494 = vshrl.u32 683565275, %v493
        %v495 = vshll.u32 683565275, %v492
        %v496 = vshrl.u32 2475754826, %v493
        %v497 = vor.u32 %v495, %v496
        %v498 = vshll.u32 2475754826, %v492
        %v499 = vshrl.u32 2131351028, %v493
        %v500 = vor.u32 %v498, %v499
        %v501 = vshll.u32 2131351028, %v492
        %v502 = vshrl.u32 2102212464, %v493
        %v503 = vor.u32 %v501, %v502
        %v504 = vshll.u32 2102212464, %v492
        %v505 = vshrl.u32 920167782, %v493
        %v506 = vor.u32 %v504, %v505
        %v507 = vshll.u32 920167782, %v492
        %v508 = vshrl.u32 1326507024, %v493
        %v509 = vor.u32 %v507, %v508
        %vm510 = vcmp.lt.s32.totalorder %v491, 1
        %vm511 = vcmp.lt.s32.totalorder %v491, 2
        %vm512 = vcmp.lt.s32.totalorder %v491, 3
        %vm513 = vcmp.lt.s32.totalorder %v491, 4
        %v514 = vsel %vm510, %v494, %v497
        %v515 = vsel %vm513, %v503, 2102212464
        %v516 = vsel %vm512, %v500, %v515
        %v517 = vsel %vm511, %v514, %v516
        %v518 = vsel %vm510, %v497, %v500
        %v519 = vsel %vm513, %v506, 920167782
        %v520 = vsel %vm512, %v503, %v519
        %v521 = vsel %vm511, %v518, %v520
        %v522 = vsel %vm510, %v500, %v503
        %v523 = vsel %vm513, %v509, 1326507024
        %v524 = vsel %vm512, %v506, %v523
        %v525 = vsel %vm511, %v522, %v524
        %v526 = vshll.u32 %v486, 8
        %v527 = vand.u32 %v526, 65535
        %v528 = vshrl.u32 %v526, 16
        %v529 = vand.u32 %v525, 65535
        %v530 = vshrl.u32 %v525, 16
        %v531 = vmul.u32 %v527, %v529
        %v532 = vmul.u32 %v527, %v530
        %v533 = vmul.u32 %v528, %v529
        %v534 = vmul.u32 %v528, %v530
        %v535 = vshll.u32 %v532, 16
        %v536 = vshrl.u32 %v532, 16
        %v537 = vshll.u32 %v533, 16
        %v538 = vshrl.u32 %v533, 16
        %vm539 = vc.u32 %v531, %v535
        %v540 = vsel %vm539, 1, 0
        %v541 = vadd.s32 %v531, %v535
        %v542 = vadd.s32 %v534, %v540
        %vm543 = vc.u32 %v541, %v537
        %v544 = vsel %vm543, 1, 0
        %v545 = vadd.s32 %v541, %v537
        %v546 = vadd.s32 %v542, %v544
        %v547 = vadd.s32 %v546, %v536
        %v548 = vadd.s32 %v547, %v538
        %v549 = vand.u32 %v526, 65535
        %v550 = vshrl.u32 %v526, 16
        %v551 = vand.u32 %v521, 65535
        %v552 = vshrl.u32 %v521, 16
        %v553 = vmul.u32 %v549, %v551
        %v554 = vmul.u32 %v549, %v552
        %v555 = vmul.u32 %v550, %v551
        %v556 = vmul.u32 %v550, %v552
        %v557 = vshll.u32 %v554, 16
        %v558 = vshrl.u32 %v554, 16
        %v559 = vshll.u32 %v555, 16
        %v560 = vshrl.u32 %v555, 16
        %vm561 = vc.u32 %v553, %v557
        %v562 = vsel %vm561, 1, 0
        %v563 = vadd.s32 %v553, %v557
        %v564 = vadd.s32 %v556, %v562
        %vm565 = vc.u32 %v563, %v559
        %v566 = vsel %vm565, 1, 0
        %v567 = vadd.s32 %v563, %v559
        %v568 = vadd.s32 %v564, %v566
        %v569 = vadd.s32 %v568, %v558
        %v570 = vadd.s32 %v569, %v560
        %v571 = vmul.u32 %v526, %v517
        %v572 = vadd.s32 %v548, %v567
        %vm573 = vc.u32 %v548, %v567
        %v574 = vadd.s32 %v570, 1
        %v575 = vsel %vm573, %v574, %v570
        %v576 = vadd.s32 %v571, %v575
        %v577 = vadd.s32 %v576, 536870912
        %v578 = vshrl.u32 %v577, 30
        %v579 = vshll.u32 %v578, 30
        %v580 = vsub.s32 %v576, %v579
        %vm581 = vcmp.lt.s32.totalorder %v580, 0
        %v582 = vsub.s32 0, %v580
        %v583 = vsel %vm581, %v582, %v580
        %v584 = vclz %v583
        %v585 = vsub.s32 %v584, 2
        %vm586 = vcmp.gt.s32.totalorder 0, %v585
        %v587 = vsel %vm586, 0, %v585
        %v588 = vsub.s32 32, %v587
        %v589 = vshll.u32 %v580, %v587
        %v590 = vshrl.u32 %v572, %v588
        %v591 = vor.u32 %v589, %v590
        %v592 = vsub.s32 4294967266, %v587
        %v593 = vadd.s32 %v592, 127
        %v594 = vshll.u32 %v593, 23
        %v595 = vor.u32 4788187, %v594
        %v596 = vand.u32 2147483647, %v595
        %v598 = vcvt.s32.f32 %v591
        %v599 = vmul.f32 %v598, %v596
        %v600 = vxor.u32 %v599, 2147483648
        %v601 = vsel %vm480, %v600, %v599
        %v602 = vsub.s32 4, %v578
        %v603 = vsel %vm480, %v602, %v578
        %v604 = vsel %vm479, %v305, %v601
        %v605 = vsel %vm479, 0, %v603
        %v606 = vmul.f32 %v604, %v604
        %v607 = vmul.f32 %v606, -0.001358992
        %v608 = vadd.f32 %v607, 0.041655596
        %v609 = vmul.f32 %v606, %v608
        %v610 = vadd.f32 %v609, -0.4999988
        %v611 = vmul.f32 %v606, %v610
        %v612 = vadd.f32 1.0, %v611
        %v613 = vmul.f32 %v604, %v604
        %v614 = vmul.f32 %v613, -0.00019511016
        %v615 = vadd.f32 %v614, 0.008332121
        %v616 = vmul.f32 %v613, %v615
        %v617 = vadd.f32 %v616, -0.16666654
        %v618 = vmul.f32 %v613, %v617
        %v619 = vadd.f32 %v618, 1.0
        %v620 = vmul.f32 %v619, %v604
        %vm621 = vweird.f32 %v305
        %v622 = vadd.s32 %v605, 3
        %v623 = vand.u32 %v622, 3
        %vm624 = vcmp.lt.s32.totalorder %v623, 2
        %vm625 = vcmp.eq.s32.totalorder %v623, 0
        %v626 = vxor.u32 %v620, 2147483648
        %v627 = vsel %vm625, %v612, %v626
        %vm628 = vcmp.eq.s32.totalorder %v623, 2
        %v629 = vxor.u32 %v612, 2147483648
        %v630 = vsel %vm628, %v629, %v620
        %v631 = vsel %vm624, %v627, %v630
        %v632 = vsel %vm621, nan, %v631
        %v633 = vand.u32 2147483647, %v313
        %vm634 = vcmp.le.f32.partialorder %v633, 0.7853982
        %vm635 = vcmp.lt.s32.totalorder %v313, 0
        %v636 = vand.u32 %v313, 2139095040
        %v637 = vshrl.u32 %v636, 23
        %v638 = vsub.s32 %v637, 127
        %v639 = vand.u32 2147483647, %v313
        %v640 = vand.u32 %v639, 8388607
        %v641 = vor.u32 %v640, 8388608
        %v642 = vsub.s32 0, %v641
        %v643 = vadd.s32 %v638, 1
        %vm644 = vcmp.gt.s32.totalorder %v643, 0
        %v645 = vsel %vm644, %v643, 0
        %v646 = vshrl.u32 %v645, 5
        %v647 = vand.u32 %v645, 31
        %v648 = vsub.s32 32, %v647
        %v649 = vshrl.u32 683565275, %v648
        %v650 = vshll.u32 683565275, %v647
        %v651 = vshrl.u32 2475754826, %v648
        %v652 = vor.u32 %v650, %v651
        %v653 = vshll.u32 2475754826, %v647
        %v654 = vshrl.u32 2131351028, %v648
        %v655 = vor.u32 %v653, %v654
        %v656 = vshll.u32 2131351028, %v647
        %v657 = vshrl.u32 2102212464, %v648
        %v658 = vor.u32 %v656, %v657
        %v659 = vshll.u32 2102212464, %v647
        %v660 = vshrl.u32 920167782, %v648
        %v661 = vor.u32 %v659, %v660
        %v662 = vshll.u32 920167782, %v647
        %v663 = vshrl.u32 1326507024, %v648
        %v664 = vor.u32 %v662, %v663
        %vm665 = vcmp.lt.s32.totalorder %v646, 1
        %vm666 = vcmp.lt.s32.totalorder %v646, 2
        %vm667 = vcmp.lt.s32.totalorder %v646, 3
        %vm668 = vcmp.lt.s32.totalorder %v646, 4
        %v669 = vsel %vm665, %v649, %v652
        %v670 = vsel %vm668, %v658, 2102212464
        %v671 = vsel %vm667, %v655, %v670
        %v672 = vsel %vm666, %v669, %v671
        %v673 = vsel %vm665, %v652, %v655
        %v674 = vsel %vm668, %v661, 920167782
        %v675 = vsel %vm667, %v658, %v674
        %v676 = vsel %vm666, %v673, %v675
        %v677 = vsel %vm665, %v655, %v658
        %v678 = vsel %vm668, %v664, 1326507024
        %v679 = vsel %vm667, %v661, %v678
        %v680 = vsel %vm666, %v677, %v679
        %v681 = vshll.u32 %v641, 8
        %v682 = vand.u32 %v681, 65535
        %v683 = vshrl.u32 %v681, 16
        %v684 = vand.u32 %v680, 65535
        %v685 = vshrl.u32 %v680, 16
        %v686 = vmul.u32 %v682, %v684
        %v687 = vmul.u32 %v682, %v685
        %v688 = vmul.u32 %v683, %v684
        %v689 = vmul.u32 %v683, %v685
        %v690 = vshll.u32 %v687, 16
        %v691 = vshrl.u32 %v687, 16
        %v692 = vshll.u32 %v688, 16
        %v693 = vshrl.u32 %v688, 16
        %vm694 = vc.u32 %v686, %v690
        %v695 = vsel %vm694, 1, 0
        %v696 = vadd.s32 %v686, %v690
        %v697 = vadd.s32 %v689, %v695
        %vm698 = vc.u32 %v696, %v692
        %v699 = vsel %vm698, 1, 0
        %v700 = vadd.s32 %v696, %v692
        %v701 = vadd.s32 %v697, %v699
        %v702 = vadd.s32 %v701, %v691
        %v703 = vadd.s32 %v702, %v693
        %v704 = vand.u32 %v681, 65535
        %v705 = vshrl.u32 %v681, 16
        %v706 = vand.u32 %v676, 65535
        %v707 = vshrl.u32 %v676, 16
        %v708 = vmul.u32 %v704, %v706
        %v709 = vmul.u32 %v704, %v707
        %v710 = vmul.u32 %v705, %v706
        %v711 = vmul.u32 %v705, %v707
        %v712 = vshll.u32 %v709, 16
        %v713 = vshrl.u32 %v709, 16
        %v714 = vshll.u32 %v710, 16
        %v715 = vshrl.u32 %v710, 16
        %vm716 = vc.u32 %v708, %v712
        %v717 = vsel %vm716, 1, 0
        %v718 = vadd.s32 %v708, %v712
        %v719 = vadd.s32 %v711, %v717
        %vm720 = vc.u32 %v718, %v714
        %v721 = vsel %vm720, 1, 0
        %v722 = vadd.s32 %v718, %v714
        %v723 = vadd.s32 %v719, %v721
        %v724 = vadd.s32 %v723, %v713
        %v725 = vadd.s32 %v724, %v715
        %v726 = vmul.u32 %v681, %v672
        %v727 = vadd.s32 %v703, %v722
        %vm728 = vc.u32 %v703, %v722
        %v729 = vadd.s32 %v725, 1
        %v730 = vsel %vm728, %v729, %v725
        %v731 = vadd.s32 %v726, %v730
        %v732 = vadd.s32 %v731, 536870912
        %v733 = vshrl.u32 %v732, 30
        %v734 = vshll.u32 %v733, 30
        %v735 = vsub.s32 %v731, %v734
        %vm736 = vcmp.lt.s32.totalorder %v735, 0
        %v737 = vsub.s32 0, %v735
        %v738 = vsel %vm736, %v737, %v735
        %v739 = vclz %v738
        %v740 = vsub.s32 %v739, 2
        %vm741 = vcmp.gt.s32.totalorder 0, %v740
        %v742 = vsel %vm741, 0, %v740
        %v743 = vsub.s32 32, %v742
        %v744 = vshll.u32 %v735, %v742
        %v745 = vshrl.u32 %v727, %v743
        %v746 = vor.u32 %v744, %v745
        %v747 = vsub.s32 4294967266, %v742
        %v748 = vadd.s32 %v747, 127
        %v749 = vshll.u32 %v748, 23
        %v750 = vor.u32 4788187, %v749
        %v751 = vand.u32 2147483647, %v750
        %v753 = vcvt.s32.f32 %v746
        %v754 = vmul.f32 %v753, %v751
        %v755 = vxor.u32 %v754, 2147483648
        %v756 = vsel %vm635, %v755, %v754
        %v757 = vsub.s32 4, %v733
        %v758 = vsel %vm635, %v757, %v733
        %v759 = vsel %vm634, %v313, %v756
        %v760 = vsel %vm634, 0, %v758
        %v761 = vmul.f32 %v759, %v759
        %v762 = vmul.f32 %v761, -0.001358992
        %v763 = vadd.f32 %v762, 0.041655596
        %v764 = vmul.f32 %v761, %v763
        %v765 = vadd.f32 %v764, -0.4999988
        %v766 = vmul.f32 %v761, %v765
        %v767 = vadd.f32 1.0, %v766
        %v768 = vmul.f32 %v759, %v759
        %v769 = vmul.f32 %v768, -0.00019511016
        %v770 = vadd.f32 %v769, 0.008332121
        %v771 = vmul.f32 %v768, %v770
        %v772 = vadd.f32 %v771, -0.16666654
        %v773 = vmul.f32 %v768, %v772
        %v774 = vadd.f32 %v773, 1.0
        %v775 = vmul.f32 %v774, %v759
        %vm776 = vweird.f32 %v313
        %v777 = vadd.s32 %v760, 3
        %v778 = vand.u32 %v777, 3
        %vm779 = vcmp.lt.s32.totalorder %v778, 2
        %vm780 = vcmp.eq.s32.totalorder %v778, 0
        %v781 = vxor.u32 %v775, 2147483648
        %v782 = vsel %vm780, %v767, %v781
        %vm783 = vcmp.eq.s32.totalorder %v778, 2
        %v784 = vxor.u32 %v767, 2147483648
        %v785 = vsel %vm783, %v784, %v775
        %v786 = vsel %vm779, %v782, %v785
        %v787 = vsel %vm776, nan, %v786
        %v788 = vand.u32 2147483647, %v314
        %vm789 = vcmp.le.f32.partialorder %v788, 0.7853982
        %vm790 = vcmp.lt.s32.totalorder %v314, 0
        %v791 = vand.u32 %v314, 2139095040
        %v792 = vshrl.u32 %v791, 23
        %v793 = vsub.s32 %v792, 127
        %v794 = vand.u32 2147483647, %v314
        %v795 = vand.u32 %v794, 8388607
        %v796 = vor.u32 %v795, 8388608
        %v797 = vsub.s32 0, %v796
        %v798 = vadd.s32 %v793, 1
        %vm799 = vcmp.gt.s32.totalorder %v798, 0
        %v800 = vsel %vm799, %v798, 0
        %v801 = vshrl.u32 %v800, 5
        %v802 = vand.u32 %v800, 31
        %v803 = vsub.s32 32, %v802
        %v804 = vshrl.u32 683565275, %v803
        %v805 = vshll.u32 683565275, %v802
        %v806 = vshrl.u32 2475754826, %v803
        %v807 = vor.u32 %v805, %v806
        %v808 = vshll.u32 2475754826, %v802
        %v809 = vshrl.u32 2131351028, %v803
        %v810 = vor.u32 %v808, %v809
        %v811 = vshll.u32 2131351028, %v802
        %v812 = vshrl.u32 2102212464, %v803
        %v813 = vor.u32 %v811, %v812
        %v814 = vshll.u32 2102212464, %v802
        %v815 = vshrl.u32 920167782, %v803
        %v816 = vor.u32 %v814, %v815
        %v817 = vshll.u32 920167782, %v802
        %v818 = vshrl.u32 1326507024, %v803
        %v819 = vor.u32 %v817, %v818
        %vm820 = vcmp.lt.s32.totalorder %v801, 1
        %vm821 = vcmp.lt.s32.totalorder %v801, 2
        %vm822 = vcmp.lt.s32.totalorder %v801, 3
        %vm823 = vcmp.lt.s32.totalorder %v801, 4
        %v824 = vsel %vm820, %v804, %v807
        %v825 = vsel %vm823, %v813, 2102212464
        %v826 = vsel %vm822, %v810, %v825
        %v827 = vsel %vm821, %v824, %v826
        %v828 = vsel %vm820, %v807, %v810
        %v829 = vsel %vm823, %v816, 920167782
        %v830 = vsel %vm822, %v813, %v829
        %v831 = vsel %vm821, %v828, %v830
        %v832 = vsel %vm820, %v810, %v813
        %v833 = vsel %vm823, %v819, 1326507024
        %v834 = vsel %vm822, %v816, %v833
        %v835 = vsel %vm821, %v832, %v834
        %v836 = vshll.u32 %v796, 8
        %v837 = vand.u32 %v836, 65535
        %v838 = vshrl.u32 %v836, 16
        %v839 = vand.u32 %v835, 65535
        %v840 = vshrl.u32 %v835, 16
        %v841 = vmul.u32 %v837, %v839
        %v842 = vmul.u32 %v837, %v840
        %v843 = vmul.u32 %v838, %v839
        %v844 = vmul.u32 %v838, %v840
        %v845 = vshll.u32 %v842, 16
        %v846 = vshrl.u32 %v842, 16
        %v847 = vshll.u32 %v843, 16
        %v848 = vshrl.u32 %v843, 16
        %vm849 = vc.u32 %v841, %v845
        %v850 = vsel %vm849, 1, 0
        %v851 = vadd.s32 %v841, %v845
        %v852 = vadd.s32 %v844, %v850
        %vm853 = vc.u32 %v851, %v847
        %v854 = vsel %vm853, 1, 0
        %v855 = vadd.s32 %v851, %v847
        %v856 = vadd.s32 %v852, %v854
        %v857 = vadd.s32 %v856, %v846
        %v858 = vadd.s32 %v857, %v848
        %v859 = vand.u32 %v836, 65535
        %v860 = vshrl.u32 %v836, 16
        %v861 = vand.u32 %v831, 65535
        %v862 = vshrl.u32 %v831, 16
        %v863 = vmul.u32 %v859, %v861
        %v864 = vmul.u32 %v859, %v862
        %v865 = vmul.u32 %v860, %v861
        %v866 = vmul.u32 %v860, %v862
        %v867 = vshll.u32 %v864, 16
        %v868 = vshrl.u32 %v864, 16
        %v869 = vshll.u32 %v865, 16
        %v870 = vshrl.u32 %v865, 16
        %vm871 = vc.u32 %v863, %v867
        %v872 = vsel %vm871, 1, 0
        %v873 = vadd.s32 %v863, %v867
        %v874 = vadd.s32 %v866, %v872
        %vm875 = vc.u32 %v873, %v869
        %v876 = vsel %vm875, 1, 0
        %v877 = vadd.s32 %v873, %v869
        %v878 = vadd.s32 %v874, %v876
        %v879 = vadd.s32 %v878, %v868
        %v880 = vadd.s32 %v879, %v870
        %v881 = vmul.u32 %v836, %v827
        %v882 = vadd.s32 %v858, %v877
        %vm883 = vc.u32 %v858, %v877
        %v884 = vadd.s32 %v880, 1
        %v885 = vsel %vm883, %v884, %v880
        %v886 = vadd.s32 %v881, %v885
        %v887 = vadd.s32 %v886, 536870912
        %v888 = vshrl.u32 %v887, 30
        %v889 = vshll.u32 %v888, 30
        %v890 = vsub.s32 %v886, %v889
        %vm891 = vcmp.lt.s32.totalorder %v890, 0
        %v892 = vsub.s32 0, %v890
        %v893 = vsel %vm891, %v892, %v890
        %v894 = vclz %v893
        %v895 = vsub.s32 %v894, 2
        %vm896 = vcmp.gt.s32.totalorder 0, %v895
        %v897 = vsel %vm896, 0, %v895
        %v898 = vsub.s32 32, %v897
        %v899 = vshll.u32 %v890, %v897
        %v900 = vshrl.u32 %v882, %v898
        %v901 = vor.u32 %v899, %v900
        %v902 = vsub.s32 4294967266, %v897
        %v903 = vadd.s32 %v902, 127
        %v904 = vshll.u32 %v903, 23
        %v905 = vor.u32 4788187, %v904
        %v906 = vand.u32 2147483647, %v905
        %v908 = vcvt.s32.f32 %v901
        %v909 = vmul.f32 %v908, %v906
        %v910 = vxor.u32 %v909, 2147483648
        %v911 = vsel %vm790, %v910, %v909
        %v912 = vsub.s32 4, %v888
        %v913 = vsel %vm790, %v912, %v888
        %v914 = vsel %vm789, %v314, %v911
        %v915 = vsel %vm789, 0, %v913
        %v916 = vmul.f32 %v914, %v914
        %v917 = vmul.f32 %v916, -0.001358992
        %v918 = vadd.f32 %v917, 0.041655596
        %v919 = vmul.f32 %v916, %v918
        %v920 = vadd.f32 %v919, -0.4999988
        %v921 = vmul.f32 %v916, %v920
        %v922 = vadd.f32 1.0, %v921
        %v923 = vmul.f32 %v914, %v914
        %v924 = vmul.f32 %v923, -0.00019511016
        %v925 = vadd.f32 %v924, 0.008332121
        %v926 = vmul.f32 %v923, %v925
        %v927 = vadd.f32 %v926, -0.16666654
        %v928 = vmul.f32 %v923, %v927
        %v929 = vadd.f32 %v928, 1.0
        %v930 = vmul.f32 %v929, %v914
        %vm931 = vweird.f32 %v314
        %v932 = vadd.s32 %v915, 3
        %v933 = vand.u32 %v932, 3
        %vm934 = vcmp.lt.s32.totalorder %v933, 2
        %vm935 = vcmp.eq.s32.totalorder %v933, 0
        %v936 = vxor.u32 %v930, 2147483648
        %v937 = vsel %vm935, %v922, %v936
        %vm938 = vcmp.eq.s32.totalorder %v933, 2
        %v939 = vxor.u32 %v922, 2147483648
        %v940 = vsel %vm938, %v939, %v930
        %v941 = vsel %vm934, %v937, %v940
        %v942 = vsel %vm931, nan, %v941
        %v943 = vand.u32 2147483647, %v319
        %vm944 = vcmp.le.f32.partialorder %v943, 0.7853982
        %vm945 = vcmp.lt.s32.totalorder %v319, 0
        %v946 = vand.u32 %v319, 2139095040
        %v947 = vshrl.u32 %v946, 23
        %v948 = vsub.s32 %v947, 127
        %v949 = vand.u32 2147483647, %v319
        %v950 = vand.u32 %v949, 8388607
        %v951 = vor.u32 %v950, 8388608
        %v952 = vsub.s32 0, %v951
        %v953 = vadd.s32 %v948, 1
        %vm954 = vcmp.gt.s32.totalorder %v953, 0
        %v955 = vsel %vm954, %v953, 0
        %v956 = vshrl.u32 %v955, 5
        %v957 = vand.u32 %v955, 31
        %v958 = vsub.s32 32, %v957
        %v959 = vshrl.u32 683565275, %v958
        %v960 = vshll.u32 683565275, %v957
        %v961 = vshrl.u32 2475754826, %v958
        %v962 = vor.u32 %v960, %v961
        %v963 = vshll.u32 2475754826, %v957
        %v964 = vshrl.u32 2131351028, %v958
        %v965 = vor.u32 %v963, %v964
        %v966 = vshll.u32 2131351028, %v957
        %v967 = vshrl.u32 2102212464, %v958
        %v968 = vor.u32 %v966, %v967
        %v969 = vshll.u32 2102212464, %v957
        %v970 = vshrl.u32 920167782, %v958
        %v971 = vor.u32 %v969, %v970
        %v972 = vshll.u32 920167782, %v957
        %v973 = vshrl.u32 1326507024, %v958
        %v974 = vor.u32 %v972, %v973
        %vm975 = vcmp.lt.s32.totalorder %v956, 1
        %vm976 = vcmp.lt.s32.totalorder %v956, 2
        %vm977 = vcmp.lt.s32.totalorder %v956, 3
        %vm978 = vcmp.lt.s32.totalorder %v956, 4
        %v979 = vsel %vm975, %v959, %v962
        %v980 = vsel %vm978, %v968, 2102212464
        %v981 = vsel %vm977, %v965, %v980
        %v982 = vsel %vm976, %v979, %v981
        %v983 = vsel %vm975, %v962, %v965
        %v984 = vsel %vm978, %v971, 920167782
        %v985 = vsel %vm977, %v968, %v984
        %v986 = vsel %vm976, %v983, %v985
        %v987 = vsel %vm975, %v965, %v968
        %v988 = vsel %vm978, %v974, 1326507024
        %v989 = vsel %vm977, %v971, %v988
        %v990 = vsel %vm976, %v987, %v989
        %v991 = vshll.u32 %v951, 8
        %v992 = vand.u32 %v991, 65535
        %v993 = vshrl.u32 %v991, 16
        %v994 = vand.u32 %v990, 65535
        %v995 = vshrl.u32 %v990, 16
        %v996 = vmul.u32 %v992, %v994
        %v997 = vmul.u32 %v992, %v995
        %v998 = vmul.u32 %v993, %v994
        %v999 = vmul.u32 %v993, %v995
        %v1000 = vshll.u32 %v997, 16
        %v1001 = vshrl.u32 %v997, 16
        %v1002 = vshll.u32 %v998, 16
        %v1003 = vshrl.u32 %v998, 16
        %vm1004 = vc.u32 %v996, %v1000
        %v1005 = vsel %vm1004, 1, 0
        %v1006 = vadd.s32 %v996, %v1000
        %v1007 = vadd.s32 %v999, %v1005
        %vm1008 = vc.u32 %v1006, %v1002
        %v1009 = vsel %vm1008, 1, 0
        %v1010 = vadd.s32 %v1006, %v1002
        %v1011 = vadd.s32 %v1007, %v1009
        %v1012 = vadd.s32 %v1011, %v1001
        %v1013 = vadd.s32 %v1012, %v1003
        %v1014 = vand.u32 %v991, 65535
        %v1015 = vshrl.u32 %v991, 16
        %v1016 = vand.u32 %v986, 65535
        %v1017 = vshrl.u32 %v986, 16
        %v1018 = vmul.u32 %v1014, %v1016
        %v1019 = vmul.u32 %v1014, %v1017
        %v1020 = vmul.u32 %v1015, %v1016
        %v1021 = vmul.u32 %v1015, %v1017
        %v1022 = vshll.u32 %v1019, 16
        %v1023 = vshrl.u32 %v1019, 16
        %v1024 = vshll.u32 %v1020, 16
        %v1025 = vshrl.u32 %v1020, 16
        %vm1026 = vc.u32 %v1018, %v1022
        %v1027 = vsel %vm1026, 1, 0
        %v1028 = vadd.s32 %v1018, %v1022
        %v1029 = vadd.s32 %v1021, %v1027
        %vm1030 = vc.u32 %v1028, %v1024
        %v1031 = vsel %vm1030, 1, 0
        %v1032 = vadd.s32 %v1028, %v1024
        %v1033 = vadd.s32 %v1029, %v1031
        %v1034 = vadd.s32 %v1033, %v1023
        %v1035 = vadd.s32 %v1034, %v1025
        %v1036 = vmul.u32 %v991, %v982
        %v1037 = vadd.s32 %v1013, %v1032
        %vm1038 = vc.u32 %v1013, %v1032
        %v1039 = vadd.s32 %v1035, 1
        %v1040 = vsel %vm1038, %v1039, %v1035
        %v1041 = vadd.s32 %v1036, %v1040
        %v1042 = vadd.s32 %v1041, 536870912
        %v1043 = vshrl.u32 %v1042, 30
        %v1044 = vshll.u32 %v1043, 30
        %v1045 = vsub.s32 %v1041, %v1044
        %vm1046 = vcmp.lt.s32.totalorder %v1045, 0
        %v1047 = vsub.s32 0, %v1045
        %v1048 = vsel %vm1046, %v1047, %v1045
        %v1049 = vclz %v1048
        %v1050 = vsub.s32 %v1049, 2
        %vm1051 = vcmp.gt.s32.totalorder 0, %v1050
        %v1052 = vsel %vm1051, 0, %v1050
        %v1053 = vsub.s32 32, %v1052
        %v1054 = vshll.u32 %v1045, %v1052
        %v1055 = vshrl.u32 %v1037, %v1053
        %v1056 = vor.u32 %v1054, %v1055
        %v1057 = vsub.s32 4294967266, %v1052
        %v1058 = vadd.s32 %v1057, 127
        %v1059 = vshll.u32 %v1058, 23
        %v1060 = vor.u32 4788187, %v1059
        %v1061 = vand.u32 2147483647, %v1060
        %v1063 = vcvt.s32.f32 %v1056
        %v1064 = vmul.f32 %v1063, %v1061
        %v1065 = vxor.u32 %v1064, 2147483648
        %v1066 = vsel %vm945, %v1065, %v1064
        %v1067 = vsub.s32 4, %v1043
        %v1068 = vsel %vm945, %v1067, %v1043
        %v1069 = vsel %vm944, %v319, %v1066
        %v1070 = vsel %vm944, 0, %v1068
        %v1071 = vmul.f32 %v1069, %v1069
        %v1072 = vmul.f32 %v1071, -0.001358992
        %v1073 = vadd.f32 %v1072, 0.041655596
        %v1074 = vmul.f32 %v1071, %v1073
        %v1075 = vadd.f32 %v1074, -0.4999988
        %v1076 = vmul.f32 %v1071, %v1075
        %v1077 = vadd.f32 1.0, %v1076
        %v1078 = vmul.f32 %v1069, %v1069
        %v1079 = vmul.f32 %v1078, -0.00019511016
        %v1080 = vadd.f32 %v1079, 0.008332121
        %v1081 = vmul.f32 %v1078, %v1080
        %v1082 = vadd.f32 %v1081, -0.16666654
        %v1083 = vmul.f32 %v1078, %v1082
        %v1084 = vadd.f32 %v1083, 1.0
        %v1085 = vmul.f32 %v1084, %v1069
        %vm1086 = vweird.f32 %v319
        %v1087 = vadd.s32 %v1070, 3
        %v1088 = vand.u32 %v1087, 3
        %vm1089 = vcmp.lt.s32.totalorder %v1088, 2
        %vm1090 = vcmp.eq.s32.totalorder %v1088, 0
        %v1091 = vxor.u32 %v1085, 2147483648
        %v1092 = vsel %vm1090, %v1077, %v1091
        %vm1093 = vcmp.eq.s32.totalorder %v1088, 2
        %v1094 = vxor.u32 %v1077, 2147483648
        %v1095 = vsel %vm1093, %v1094, %v1085
        %v1096 = vsel %vm1089, %v1092, %v1095
        %v1097 = vsel %vm1086, nan, %v1096
        %v1098 = vand.u32 2147483647, %v320
        %vm1099 = vcmp.le.f32.partialorder %v1098, 0.7853982
        %vm1100 = vcmp.lt.s32.totalorder %v320, 0
        %v1101 = vand.u32 %v320, 2139095040
        %v1102 = vshrl.u32 %v1101, 23
        %v1103 = vsub.s32 %v1102, 127
        %v1104 = vand.u32 2147483647, %v320
        %v1105 = vand.u32 %v1104, 8388607
        %v1106 = vor.u32 %v1105, 8388608
        %v1107 = vsub.s32 0, %v1106
        %v1108 = vadd.s32 %v1103, 1
        %vm1109 = vcmp.gt.s32.totalorder %v1108, 0
        %v1110 = vsel %vm1109, %v1108, 0
        %v1111 = vshrl.u32 %v1110, 5
        %v1112 = vand.u32 %v1110, 31
        %v1113 = vsub.s32 32, %v1112
        %v1114 = vshrl.u32 683565275, %v1113
        %v1115 = vshll.u32 683565275, %v1112
        %v1116 = vshrl.u32 2475754826, %v1113
        %v1117 = vor.u32 %v1115, %v1116
        %v1118 = vshll.u32 2475754826, %v1112
        %v1119 = vshrl.u32 2131351028, %v1113
        %v1120 = vor.u32 %v1118, %v1119
        %v1121 = vshll.u32 2131351028, %v1112
        %v1122 = vshrl.u32 2102212464, %v1113
        %v1123 = vor.u32 %v1121, %v1122
        %v1124 = vshll.u32 2102212464, %v1112
        %v1125 = vshrl.u32 920167782, %v1113
        %v1126 = vor.u32 %v1124, %v1125
        %v1127 = vshll.u32 920167782, %v1112
        %v1128 = vshrl.u32 1326507024, %v1113
        %v1129 = vor.u32 %v1127, %v1128
        %vm1130 = vcmp.lt.s32.totalorder %v1111, 1
        %vm1131 = vcmp.lt.s32.totalorder %v1111, 2
        %vm1132 = vcmp.lt.s32.totalorder %v1111, 3
        %vm1133 = vcmp.lt.s32.totalorder %v1111, 4
        %v1134 = vsel %vm1130, %v1114, %v1117
        %v1135 = vsel %vm1133, %v1123, 2102212464
        %v1136 = vsel %vm1132, %v1120, %v1135
        %v1137 = vsel %vm1131, %v1134, %v1136
        %v1138 = vsel %vm1130, %v1117, %v1120
        %v1139 = vsel %vm1133, %v1126, 920167782
        %v1140 = vsel %vm1132, %v1123, %v1139
        %v1141 = vsel %vm1131, %v1138, %v1140
        %v1142 = vsel %vm1130, %v1120, %v1123
        %v1143 = vsel %vm1133, %v1129, 1326507024
        %v1144 = vsel %vm1132, %v1126, %v1143
        %v1145 = vsel %vm1131, %v1142, %v1144
        %v1146 = vshll.u32 %v1106, 8
        %v1147 = vand.u32 %v1146, 65535
        %v1148 = vshrl.u32 %v1146, 16
        %v1149 = vand.u32 %v1145, 65535
        %v1150 = vshrl.u32 %v1145, 16
        %v1151 = vmul.u32 %v1147, %v1149
        %v1152 = vmul.u32 %v1147, %v1150
        %v1153 = vmul.u32 %v1148, %v1149
        %v1154 = vmul.u32 %v1148, %v1150
        %v1155 = vshll.u32 %v1152, 16
        %v1156 = vshrl.u32 %v1152, 16
        %v1157 = vshll.u32 %v1153, 16
        %v1158 = vshrl.u32 %v1153, 16
        %vm1159 = vc.u32 %v1151, %v1155
        %v1160 = vsel %vm1159, 1, 0
        %v1161 = vadd.s32 %v1151, %v1155
        %v1162 = vadd.s32 %v1154, %v1160
        %vm1163 = vc.u32 %v1161, %v1157
        %v1164 = vsel %vm1163, 1, 0
        %v1165 = vadd.s32 %v1161, %v1157
        %v1166 = vadd.s32 %v1162, %v1164
        %v1167 = vadd.s32 %v1166, %v1156
        %v1168 = vadd.s32 %v1167, %v1158
        %v1169 = vand.u32 %v1146, 65535
        %v1170 = vshrl.u32 %v1146, 16
        %v1171 = vand.u32 %v1141, 65535
        %v1172 = vshrl.u32 %v1141, 16
        %v1173 = vmul.u32 %v1169, %v1171
        %v1174 = vmul.u32 %v1169, %v1172
        %v1175 = vmul.u32 %v1170, %v1171
        %v1176 = vmul.u32 %v1170, %v1172
        %v1177 = vshll.u32 %v1174, 16
        %v1178 = vshrl.u32 %v1174, 16
        %v1179 = vshll.u32 %v1175, 16
        %v1180 = vshrl.u32 %v1175, 16
        %vm1181 = vc.u32 %v1173, %v1177
        %v1182 = vsel %vm1181, 1, 0
        %v1183 = vadd.s32 %v1173, %v1177
        %v1184 = vadd.s32 %v1176, %v1182
        %vm1185 = vc.u32 %v1183, %v1179
        %v1186 = vsel %vm1185, 1, 0
        %v1187 = vadd.s32 %v1183, %v1179
        %v1188 = vadd.s32 %v1184, %v1186
        %v1189 = vadd.s32 %v1188, %v1178
        %v1190 = vadd.s32 %v1189, %v1180
        %v1191 = vmul.u32 %v1146, %v1137
        %v1192 = vadd.s32 %v1168, %v1187
        %vm1193 = vc.u32 %v1168, %v1187
        %v1194 = vadd.s32 %v1190, 1
        %v1195 = vsel %vm1193, %v1194, %v1190
        %v1196 = vadd.s32 %v1191, %v1195
        %v1197 = vadd.s32 %v1196, 536870912
        %v1198 = vshrl.u32 %v1197, 30
        %v1199 = vshll.u32 %v1198, 30
        %v1200 = vsub.s32 %v1196, %v1199
        %vm1201 = vcmp.lt.s32.totalorder %v1200, 0
        %v1202 = vsub.s32 0, %v1200
        %v1203 = vsel %vm1201, %v1202, %v1200
        %v1204 = vclz %v1203
        %v1205 = vsub.s32 %v1204, 2
        %vm1206 = vcmp.gt.s32.totalorder 0, %v1205
        %v1207 = vsel %vm1206, 0, %v1205
        %v1208 = vsub.s32 32, %v1207
        %v1209 = vshll.u32 %v1200, %v1207
        %v1210 = vshrl.u32 %v1192, %v1208
        %v1211 = vor.u32 %v1209, %v1210
        %v1212 = vsub.s32 4294967266, %v1207
        %v1213 = vadd.s32 %v1212, 127
        %v1214 = vshll.u32 %v1213, 23
        %v1215 = vor.u32 4788187, %v1214
        %v1216 = vand.u32 2147483647, %v1215
        %v1218 = vcvt.s32.f32 %v1211
        %v1219 = vmul.f32 %v1218, %v1216
        %v1220 = vxor.u32 %v1219, 2147483648
        %v1221 = vsel %vm1100, %v1220, %v1219
        %v1222 = vsub.s32 4, %v1198
        %v1223 = vsel %vm1100, %v1222, %v1198
        %v1224 = vsel %vm1099, %v320, %v1221
        %v1225 = vsel %vm1099, 0, %v1223
        %v1226 = vmul.f32 %v1224, %v1224
        %v1227 = vmul.f32 %v1226, -0.001358992
        %v1228 = vadd.f32 %v1227, 0.041655596
        %v1229 = vmul.f32 %v1226, %v1228
        %v1230 = vadd.f32 %v1229, -0.4999988
        %v1231 = vmul.f32 %v1226, %v1230
        %v1232 = vadd.f32 1.0, %v1231
        %v1233 = vmul.f32 %v1224, %v1224
        %v1234 = vmul.f32 %v1233, -0.00019511016
        %v1235 = vadd.f32 %v1234, 0.008332121
        %v1236 = vmul.f32 %v1233, %v1235
        %v1237 = vadd.f32 %v1236, -0.16666654
        %v1238 = vmul.f32 %v1233, %v1237
        %v1239 = vadd.f32 %v1238, 1.0
        %v1240 = vmul.f32 %v1239, %v1224
        %vm1241 = vweird.f32 %v320
        %v1242 = vadd.s32 %v1225, 3
        %v1243 = vand.u32 %v1242, 3
        %vm1244 = vcmp.lt.s32.totalorder %v1243, 2
        %vm1245 = vcmp.eq.s32.totalorder %v1243, 0
        %v1246 = vxor.u32 %v1240, 2147483648
        %v1247 = vsel %vm1245, %v1232, %v1246
        %vm1248 = vcmp.eq.s32.totalorder %v1243, 2
        %v1249 = vxor.u32 %v1232, 2147483648
        %v1250 = vsel %vm1248, %v1249, %v1240
        %v1251 = vsel %vm1244, %v1247, %v1250
        %v1252 = vsel %vm1241, nan, %v1251
        %v1253 = vand.u32 2147483647, %v321
        %vm1254 = vcmp.le.f32.partialorder %v1253, 0.7853982
        %vm1255 = vcmp.lt.s32.totalorder %v321, 0
        %v1256 = vand.u32 %v321, 2139095040
        %v1257 = vshrl.u32 %v1256, 23
        %v1258 = vsub.s32 %v1257, 127
        %v1259 = vand.u32 2147483647, %v321
        %v1260 = vand.u32 %v1259, 8388607
        %v1261 = vor.u32 %v1260, 8388608
        %v1262 = vsub.s32 0, %v1261
        %v1263 = vadd.s32 %v1258, 1
        %vm1264 = vcmp.gt.s32.totalorder %v1263, 0
        %v1265 = vsel %vm1264, %v1263, 0
        %v1266 = vshrl.u32 %v1265, 5
        %v1267 = vand.u32 %v1265, 31
        %v1268 = vsub.s32 32, %v1267
        %v1269 = vshrl.u32 683565275, %v1268
        %v1270 = vshll.u32 683565275, %v1267
        %v1271 = vshrl.u32 2475754826, %v1268
        %v1272 = vor.u32 %v1270, %v1271
        %v1273 = vshll.u32 2475754826, %v1267
        %v1274 = vshrl.u32 2131351028, %v1268
        %v1275 = vor.u32 %v1273, %v1274
        %v1276 = vshll.u32 2131351028, %v1267
        %v1277 = vshrl.u32 2102212464, %v1268
        %v1278 = vor.u32 %v1276, %v1277
        %v1279 = vshll.u32 2102212464, %v1267
        %v1280 = vshrl.u32 920167782, %v1268
        %v1281 = vor.u32 %v1279, %v1280
        %v1282 = vshll.u32 920167782, %v1267
        %v1283 = vshrl.u32 1326507024, %v1268
        %v1284 = vor.u32 %v1282, %v1283
        %vm1285 = vcmp.lt.s32.totalorder %v1266, 1
        %vm1286 = vcmp.lt.s32.totalorder %v1266, 2
        %vm1287 = vcmp.lt.s32.totalorder %v1266, 3
        %vm1288 = vcmp.lt.s32.totalorder %v1266, 4
        %v1289 = vsel %vm1285, %v1269, %v1272
        %v1290 = vsel %vm1288, %v1278, 2102212464
        %v1291 = vsel %vm1287, %v1275, %v1290
        %v1292 = vsel %vm1286, %v1289, %v1291
        %v1293 = vsel %vm1285, %v1272, %v1275
        %v1294 = vsel %vm1288, %v1281, 920167782
        %v1295 = vsel %vm1287, %v1278, %v1294
        %v1296 = vsel %vm1286, %v1293, %v1295
        %v1297 = vsel %vm1285, %v1275, %v1278
        %v1298 = vsel %vm1288, %v1284, 1326507024
        %v1299 = vsel %vm1287, %v1281, %v1298
        %v1300 = vsel %vm1286, %v1297, %v1299
        %v1301 = vshll.u32 %v1261, 8
        %v1302 = vand.u32 %v1301, 65535
        %v1303 = vshrl.u32 %v1301, 16
        %v1304 = vand.u32 %v1300, 65535
        %v1305 = vshrl.u32 %v1300, 16
        %v1306 = vmul.u32 %v1302, %v1304
        %v1307 = vmul.u32 %v1302, %v1305
        %v1308 = vmul.u32 %v1303, %v1304
        %v1309 = vmul.u32 %v1303, %v1305
        %v1310 = vshll.u32 %v1307, 16
        %v1311 = vshrl.u32 %v1307, 16
        %v1312 = vshll.u32 %v1308, 16
        %v1313 = vshrl.u32 %v1308, 16
        %vm1314 = vc.u32 %v1306, %v1310
        %v1315 = vsel %vm1314, 1, 0
        %v1316 = vadd.s32 %v1306, %v1310
        %v1317 = vadd.s32 %v1309, %v1315
        %vm1318 = vc.u32 %v1316, %v1312
        %v1319 = vsel %vm1318, 1, 0
        %v1320 = vadd.s32 %v1316, %v1312
        %v1321 = vadd.s32 %v1317, %v1319
        %v1322 = vadd.s32 %v1321, %v1311
        %v1323 = vadd.s32 %v1322, %v1313
        %v1324 = vand.u32 %v1301, 65535
        %v1325 = vshrl.u32 %v1301, 16
        %v1326 = vand.u32 %v1296, 65535
        %v1327 = vshrl.u32 %v1296, 16
        %v1328 = vmul.u32 %v1324, %v1326
        %v1329 = vmul.u32 %v1324, %v1327
        %v1330 = vmul.u32 %v1325, %v1326
        %v1331 = vmul.u32 %v1325, %v1327
        %v1332 = vshll.u32 %v1329, 16
        %v1333 = vshrl.u32 %v1329, 16
        %v1334 = vshll.u32 %v1330, 16
        %v1335 = vshrl.u32 %v1330, 16
        %vm1336 = vc.u32 %v1328, %v1332
        %v1337 = vsel %vm1336, 1, 0
        %v1338 = vadd.s32 %v1328, %v1332
        %v1339 = vadd.s32 %v1331, %v1337
        %vm1340 = vc.u32 %v1338, %v1334
        %v1341 = vsel %vm1340, 1, 0
        %v1342 = vadd.s32 %v1338, %v1334
        %v1343 = vadd.s32 %v1339, %v1341
        %v1344 = vadd.s32 %v1343, %v1333
        %v1345 = vadd.s32 %v1344, %v1335
        %v1346 = vmul.u32 %v1301, %v1292
        %v1347 = vadd.s32 %v1323, %v1342
        %vm1348 = vc.u32 %v1323, %v1342
        %v1349 = vadd.s32 %v1345, 1
        %v1350 = vsel %vm1348, %v1349, %v1345
        %v1351 = vadd.s32 %v1346, %v1350
        %v1352 = vadd.s32 %v1351, 536870912
        %v1353 = vshrl.u32 %v1352, 30
        %v1354 = vshll.u32 %v1353, 30
        %v1355 = vsub.s32 %v1351, %v1354
        %vm1356 = vcmp.lt.s32.totalorder %v1355, 0
        %v1357 = vsub.s32 0, %v1355
        %v1358 = vsel %vm1356, %v1357, %v1355
        %v1359 = vclz %v1358
        %v1360 = vsub.s32 %v1359, 2
        %vm1361 = vcmp.gt.s32.totalorder 0, %v1360
        %v1362 = vsel %vm1361, 0, %v1360
        %v1363 = vsub.s32 32, %v1362
        %v1364 = vshll.u32 %v1355, %v1362
        %v1365 = vshrl.u32 %v1347, %v1363
        %v1366 = vor.u32 %v1364, %v1365
        %v1367 = vsub.s32 4294967266, %v1362
        %v1368 = vadd.s32 %v1367, 127
        %v1369 = vshll.u32 %v1368, 23
        %v1370 = vor.u32 4788187, %v1369
        %v1371 = vand.u32 2147483647, %v1370
        %v1373 = vcvt.s32.f32 %v1366
        %v1374 = vmul.f32 %v1373, %v1371
        %v1375 = vxor.u32 %v1374, 2147483648
        %v1376 = vsel %vm1255, %v1375, %v1374
        %v1377 = vsub.s32 4, %v1353
        %v1378 = vsel %vm1255, %v1377, %v1353
        %v1379 = vsel %vm1254, %v321, %v1376
        %v1380 = vsel %vm1254, 0, %v1378
        %v1381 = vmul.f32 %v1379, %v1379
        %v1382 = vmul.f32 %v1381, -0.001358992
        %v1383 = vadd.f32 %v1382, 0.041655596
        %v1384 = vmul.f32 %v1381, %v1383
        %v1385 = vadd.f32 %v1384, -0.4999988
        %v1386 = vmul.f32 %v1381, %v1385
        %v1387 = vadd.f32 1.0, %v1386
        %v1388 = vmul.f32 %v1379, %v1379
        %v1389 = vmul.f32 %v1388, -0.00019511016
        %v1390 = vadd.f32 %v1389, 0.008332121
        %v1391 = vmul.f32 %v1388, %v1390
        %v1392 = vadd.f32 %v1391, -0.16666654
        %v1393 = vmul.f32 %v1388, %v1392
        %v1394 = vadd.f32 %v1393, 1.0
        %v1395 = vmul.f32 %v1394, %v1379
        %vm1396 = vweird.f32 %v321
        %v1397 = vadd.s32 %v1380, 3
        %v1398 = vand.u32 %v1397, 3
        %vm1399 = vcmp.lt.s32.totalorder %v1398, 2
        %vm1400 = vcmp.eq.s32.totalorder %v1398, 0
        %v1401 = vxor.u32 %v1395, 2147483648
        %v1402 = vsel %vm1400, %v1387, %v1401
        %vm1403 = vcmp.eq.s32.totalorder %v1398, 2
        %v1404 = vxor.u32 %v1387, 2147483648
        %v1405 = vsel %vm1403, %v1404, %v1395
        %v1406 = vsel %vm1399, %v1402, %v1405
        %v1407 = vsel %vm1396, nan, %v1406
        %v1408 = vand.u32 2147483647, %v322
        %vm1409 = vcmp.le.f32.partialorder %v1408, 0.7853982
        %vm1410 = vcmp.lt.s32.totalorder %v322, 0
        %v1411 = vand.u32 %v322, 2139095040
        %v1412 = vshrl.u32 %v1411, 23
        %v1413 = vsub.s32 %v1412, 127
        %v1414 = vand.u32 2147483647, %v322
        %v1415 = vand.u32 %v1414, 8388607
        %v1416 = vor.u32 %v1415, 8388608
        %v1417 = vsub.s32 0, %v1416
        %v1418 = vadd.s32 %v1413, 1
        %vm1419 = vcmp.gt.s32.totalorder %v1418, 0
        %v1420 = vsel %vm1419, %v1418, 0
        %v1421 = vshrl.u32 %v1420, 5
        %v1422 = vand.u32 %v1420, 31
        %v1423 = vsub.s32 32, %v1422
        %v1424 = vshrl.u32 683565275, %v1423
        %v1425 = vshll.u32 683565275, %v1422
        %v1426 = vshrl.u32 2475754826, %v1423
        %v1427 = vor.u32 %v1425, %v1426
        %v1428 = vshll.u32 2475754826, %v1422
        %v1429 = vshrl.u32 2131351028, %v1423
        %v1430 = vor.u32 %v1428, %v1429
        %v1431 = vshll.u32 2131351028, %v1422
        %v1432 = vshrl.u32 2102212464, %v1423
        %v1433 = vor.u32 %v1431, %v1432
        %v1434 = vshll.u32 2102212464, %v1422
        %v1435 = vshrl.u32 920167782, %v1423
        %v1436 = vor.u32 %v1434, %v1435
        %v1437 = vshll.u32 920167782, %v1422
        %v1438 = vshrl.u32 1326507024, %v1423
        %v1439 = vor.u32 %v1437, %v1438
        %vm1440 = vcmp.lt.s32.totalorder %v1421, 1
        %vm1441 = vcmp.lt.s32.totalorder %v1421, 2
        %vm1442 = vcmp.lt.s32.totalorder %v1421, 3
        %vm1443 = vcmp.lt.s32.totalorder %v1421, 4
        %v1444 = vsel %vm1440, %v1424, %v1427
        %v1445 = vsel %vm1443, %v1433, 2102212464
        %v1446 = vsel %vm1442, %v1430, %v1445
        %v1447 = vsel %vm1441, %v1444, %v1446
        %v1448 = vsel %vm1440, %v1427, %v1430
        %v1449 = vsel %vm1443, %v1436, 920167782
        %v1450 = vsel %vm1442, %v1433, %v1449
        %v1451 = vsel %vm1441, %v1448, %v1450
        %v1452 = vsel %vm1440, %v1430, %v1433
        %v1453 = vsel %vm1443, %v1439, 1326507024
        %v1454 = vsel %vm1442, %v1436, %v1453
        %v1455 = vsel %vm1441, %v1452, %v1454
        %v1456 = vshll.u32 %v1416, 8
        %v1457 = vand.u32 %v1456, 65535
        %v1458 = vshrl.u32 %v1456, 16
        %v1459 = vand.u32 %v1455, 65535
        %v1460 = vshrl.u32 %v1455, 16
        %v1461 = vmul.u32 %v1457, %v1459
        %v1462 = vmul.u32 %v1457, %v1460
        %v1463 = vmul.u32 %v1458, %v1459
        %v1464 = vmul.u32 %v1458, %v1460
        %v1465 = vshll.u32 %v1462, 16
        %v1466 = vshrl.u32 %v1462, 16
        %v1467 = vshll.u32 %v1463, 16
        %v1468 = vshrl.u32 %v1463, 16
        %vm1469 = vc.u32 %v1461, %v1465
        %v1470 = vsel %vm1469, 1, 0
        %v1471 = vadd.s32 %v1461, %v1465
        %v1472 = vadd.s32 %v1464, %v1470
        %vm1473 = vc.u32 %v1471, %v1467
        %v1474 = vsel %vm1473, 1, 0
        %v1475 = vadd.s32 %v1471, %v1467
        %v1476 = vadd.s32 %v1472, %v1474
        %v1477 = vadd.s32 %v1476, %v1466
        %v1478 = vadd.s32 %v1477, %v1468
        %v1479 = vand.u32 %v1456, 65535
        %v1480 = vshrl.u32 %v1456, 16
        %v1481 = vand.u32 %v1451, 65535
        %v1482 = vshrl.u32 %v1451, 16
        %v1483 = vmul.u32 %v1479, %v1481
        %v1484 = vmul.u32 %v1479, %v1482
        %v1485 = vmul.u32 %v1480, %v1481
        %v1486 = vmul.u32 %v1480, %v1482
        %v1487 = vshll.u32 %v1484, 16
        %v1488 = vshrl.u32 %v1484, 16
        %v1489 = vshll.u32 %v1485, 16
        %v1490 = vshrl.u32 %v1485, 16
        %vm1491 = vc.u32 %v1483, %v1487
        %v1492 = vsel %vm1491, 1, 0
        %v1493 = vadd.s32 %v1483, %v1487
        %v1494 = vadd.s32 %v1486, %v1492
        %vm1495 = vc.u32 %v1493, %v1489
        %v1496 = vsel %vm1495, 1, 0
        %v1497 = vadd.s32 %v1493, %v1489
        %v1498 = vadd.s32 %v1494, %v1496
        %v1499 = vadd.s32 %v1498, %v1488
        %v1500 = vadd.s32 %v1499, %v1490
        %v1501 = vmul.u32 %v1456, %v1447
        %v1502 = vadd.s32 %v1478, %v1497
        %vm1503 = vc.u32 %v1478, %v1497
        %v1504 = vadd.s32 %v1500, 1
        %v1505 = vsel %vm1503, %v1504, %v1500
        %v1506 = vadd.s32 %v1501, %v1505
        %v1507 = vadd.s32 %v1506, 536870912
        %v1508 = vshrl.u32 %v1507, 30
        %v1509 = vshll.u32 %v1508, 30
        %v1510 = vsub.s32 %v1506, %v1509
        %vm1511 = vcmp.lt.s32.totalorder %v1510, 0
        %v1512 = vsub.s32 0, %v1510
        %v1513 = vsel %vm1511, %v1512, %v1510
        %v1514 = vclz %v1513
        %v1515 = vsub.s32 %v1514, 2
        %vm1516 = vcmp.gt.s32.totalorder 0, %v1515
        %v1517 = vsel %vm1516, 0, %v1515
        %v1518 = vsub.s32 32, %v1517
        %v1519 = vshll.u32 %v1510, %v1517
        %v1520 = vshrl.u32 %v1502, %v1518
        %v1521 = vor.u32 %v1519, %v1520
        %v1522 = vsub.s32 4294967266, %v1517
        %v1523 = vadd.s32 %v1522, 127
        %v1524 = vshll.u32 %v1523, 23
        %v1525 = vor.u32 4788187, %v1524
        %v1526 = vand.u32 2147483647, %v1525
        %v1528 = vcvt.s32.f32 %v1521
        %v1529 = vmul.f32 %v1528, %v1526
        %v1530 = vxor.u32 %v1529, 2147483648
        %v1531 = vsel %vm1410, %v1530, %v1529
        %v1532 = vsub.s32 4, %v1508
        %v1533 = vsel %vm1410, %v1532, %v1508
        %v1534 = vsel %vm1409, %v322, %v1531
        %v1535 = vsel %vm1409, 0, %v1533
        %v1536 = vmul.f32 %v1534, %v1534
        %v1537 = vmul.f32 %v1536, -0.001358992
        %v1538 = vadd.f32 %v1537, 0.041655596
        %v1539 = vmul.f32 %v1536, %v1538
        %v1540 = vadd.f32 %v1539, -0.4999988
        %v1541 = vmul.f32 %v1536, %v1540
        %v1542 = vadd.f32 1.0, %v1541
        %v1543 = vmul.f32 %v1534, %v1534
        %v1544 = vmul.f32 %v1543, -0.00019511016
        %v1545 = vadd.f32 %v1544, 0.008332121
        %v1546 = vmul.f32 %v1543, %v1545
        %v1547 = vadd.f32 %v1546, -0.16666654
        %v1548 = vmul.f32 %v1543, %v1547
        %v1549 = vadd.f32 %v1548, 1.0
        %v1550 = vmul.f32 %v1549, %v1534
        %vm1551 = vweird.f32 %v322
        %v1552 = vadd.s32 %v1535, 3
        %v1553 = vand.u32 %v1552, 3
        %vm1554 = vcmp.lt.s32.totalorder %v1553, 2
        %vm1555 = vcmp.eq.s32.totalorder %v1553, 0
        %v1556 = vxor.u32 %v1550, 2147483648
        %v1557 = vsel %vm1555, %v1542, %v1556
        %vm1558 = vcmp.eq.s32.totalorder %v1553, 2
        %v1559 = vxor.u32 %v1542, 2147483648
        %v1560 = vsel %vm1558, %v1559, %v1550
        %v1561 = vsel %vm1554, %v1557, %v1560
        %v1562 = vsel %vm1551, nan, %v1561
        %v1563 = vand.u32 2147483647, %v304
        %vm1564 = vcmp.le.f32.partialorder %v1563, 0.7853982
        %vm1565 = vcmp.lt.s32.totalorder %v304, 0
        %v1566 = vand.u32 %v304, 2139095040
        %v1567 = vshrl.u32 %v1566, 23
        %v1568 = vsub.s32 %v1567, 127
        %v1569 = vand.u32 2147483647, %v304
        %v1570 = vand.u32 %v1569, 8388607
        %v1571 = vor.u32 %v1570, 8388608
        %v1572 = vsub.s32 0, %v1571
        %v1573 = vadd.s32 %v1568, 1
        %vm1574 = vcmp.gt.s32.totalorder %v1573, 0
        %v1575 = vsel %vm1574, %v1573, 0
        %v1576 = vshrl.u32 %v1575, 5
        %v1577 = vand.u32 %v1575, 31
        %v1578 = vsub.s32 32, %v1577
        %v1579 = vshrl.u32 683565275, %v1578
        %v1580 = vshll.u32 683565275, %v1577
        %v1581 = vshrl.u32 2475754826, %v1578
        %v1582 = vor.u32 %v1580, %v1581
        %v1583 = vshll.u32 2475754826, %v1577
        %v1584 = vshrl.u32 2131351028, %v1578
        %v1585 = vor.u32 %v1583, %v1584
        %v1586 = vshll.u32 2131351028, %v1577
        %v1587 = vshrl.u32 2102212464, %v1578
        %v1588 = vor.u32 %v1586, %v1587
        %v1589 = vshll.u32 2102212464, %v1577
        %v1590 = vshrl.u32 920167782, %v1578
        %v1591 = vor.u32 %v1589, %v1590
        %v1592 = vshll.u32 920167782, %v1577
        %v1593 = vshrl.u32 1326507024, %v1578
        %v1594 = vor.u32 %v1592, %v1593
        %vm1595 = vcmp.lt.s32.totalorder %v1576, 1
        %vm1596 = vcmp.lt.s32.totalorder %v1576, 2
        %vm1597 = vcmp.lt.s32.totalorder %v1576, 3
        %vm1598 = vcmp.lt.s32.totalorder %v1576, 4
        %v1599 = vsel %vm1595, %v1579, %v1582
        %v1600 = vsel %vm1598, %v1588, 2102212464
        %v1601 = vsel %vm1597, %v1585, %v1600
        %v1602 = vsel %vm1596, %v1599, %v1601
        %v1603 = vsel %vm1595, %v1582, %v1585
        %v1604 = vsel %vm1598, %v1591, 920167782
        %v1605 = vsel %vm1597, %v1588, %v1604
        %v1606 = vsel %vm1596, %v1603, %v1605
        %v1607 = vsel %vm1595, %v1585, %v1588
        %v1608 = vsel %vm1598, %v1594, 1326507024
        %v1609 = vsel %vm1597, %v1591, %v1608
        %v1610 = vsel %vm1596, %v1607, %v1609
        %v1611 = vshll.u32 %v1571, 8
        %v1612 = vand.u32 %v1611, 65535
        %v1613 = vshrl.u32 %v1611, 16
        %v1614 = vand.u32 %v1610, 65535
        %v1615 = vshrl.u32 %v1610, 16
        %v1616 = vmul.u32 %v1612, %v1614
        %v1617 = vmul.u32 %v1612, %v1615
        %v1618 = vmul.u32 %v1613, %v1614
        %v1619 = vmul.u32 %v1613, %v1615
        %v1620 = vshll.u32 %v1617, 16
        %v1621 = vshrl.u32 %v1617, 16
        %v1622 = vshll.u32 %v1618, 16
        %v1623 = vshrl.u32 %v1618, 16
        %vm1624 = vc.u32 %v1616, %v1620
        %v1625 = vsel %vm1624, 1, 0
        %v1626 = vadd.s32 %v1616, %v1620
        %v1627 = vadd.s32 %v1619, %v1625
        %vm1628 = vc.u32 %v1626, %v1622
        %v1629 = vsel %vm1628, 1, 0
        %v1630 = vadd.s32 %v1626, %v1622
        %v1631 = vadd.s32 %v1627, %v1629
        %v1632 = vadd.s32 %v1631, %v1621
        %v1633 = vadd.s32 %v1632, %v1623
        %v1634 = vand.u32 %v1611, 65535
        %v1635 = vshrl.u32 %v1611, 16
        %v1636 = vand.u32 %v1606, 65535
        %v1637 = vshrl.u32 %v1606, 16
        %v1638 = vmul.u32 %v1634, %v1636
        %v1639 = vmul.u32 %v1634, %v1637
        %v1640 = vmul.u32 %v1635, %v1636
        %v1641 = vmul.u32 %v1635, %v1637
        %v1642 = vshll.u32 %v1639, 16
        %v1643 = vshrl.u32 %v1639, 16
        %v1644 = vshll.u32 %v1640, 16
        %v1645 = vshrl.u32 %v1640, 16
        %vm1646 = vc.u32 %v1638, %v1642
        %v1647 = vsel %vm1646, 1, 0
        %v1648 = vadd.s32 %v1638, %v1642
        %v1649 = vadd.s32 %v1641, %v1647
        %vm1650 = vc.u32 %v1648, %v1644
        %v1651 = vsel %vm1650, 1, 0
        %v1652 = vadd.s32 %v1648, %v1644
        %v1653 = vadd.s32 %v1649, %v1651
        %v1654 = vadd.s32 %v1653, %v1643
        %v1655 = vadd.s32 %v1654, %v1645
        %v1656 = vmul.u32 %v1611, %v1602
        %v1657 = vadd.s32 %v1633, %v1652
        %vm1658 = vc.u32 %v1633, %v1652
        %v1659 = vadd.s32 %v1655, 1
        %v1660 = vsel %vm1658, %v1659, %v1655
        %v1661 = vadd.s32 %v1656, %v1660
        %v1662 = vadd.s32 %v1661, 536870912
        %v1663 = vshrl.u32 %v1662, 30
        %v1664 = vshll.u32 %v1663, 30
        %v1665 = vsub.s32 %v1661, %v1664
        %vm1666 = vcmp.lt.s32.totalorder %v1665, 0
        %v1667 = vsub.s32 0, %v1665
        %v1668 = vsel %vm1666, %v1667, %v1665
        %v1669 = vclz %v1668
        %v1670 = vsub.s32 %v1669, 2
        %vm1671 = vcmp.gt.s32.totalorder 0, %v1670
        %v1672 = vsel %vm1671, 0, %v1670
        %v1673 = vsub.s32 32, %v1672
        %v1674 = vshll.u32 %v1665, %v1672
        %v1675 = vshrl.u32 %v1657, %v1673
        %v1676 = vor.u32 %v1674, %v1675
        %v1677 = vsub.s32 4294967266, %v1672
        %v1678 = vadd.s32 %v1677, 127
        %v1679 = vshll.u32 %v1678, 23
        %v1680 = vor.u32 4788187, %v1679
        %v1681 = vand.u32 2147483647, %v1680
        %v1683 = vcvt.s32.f32 %v1676
        %v1684 = vmul.f32 %v1683, %v1681
        %v1685 = vxor.u32 %v1684, 2147483648
        %v1686 = vsel %vm1565, %v1685, %v1684
        %v1687 = vsub.s32 4, %v1663
        %v1688 = vsel %vm1565, %v1687, %v1663
        %v1689 = vsel %vm1564, %v304, %v1686
        %v1690 = vsel %vm1564, 0, %v1688
        %v1691 = vmul.f32 %v1689, %v1689
        %v1692 = vmul.f32 %v1691, -0.001358992
        %v1693 = vadd.f32 %v1692, 0.041655596
        %v1694 = vmul.f32 %v1691, %v1693
        %v1695 = vadd.f32 %v1694, -0.4999988
        %v1696 = vmul.f32 %v1691, %v1695
        %v1697 = vadd.f32 1.0, %v1696
        %v1698 = vmul.f32 %v1689, %v1689
        %v1699 = vmul.f32 %v1698, -0.00019511016
        %v1700 = vadd.f32 %v1699, 0.008332121
        %v1701 = vmul.f32 %v1698, %v1700
        %v1702 = vadd.f32 %v1701, -0.16666654
        %v1703 = vmul.f32 %v1698, %v1702
        %v1704 = vadd.f32 %v1703, 1.0
        %v1705 = vmul.f32 %v1704, %v1689
        %vm1706 = vweird.f32 %v304
        %v1707 = vand.u32 %v1690, 3
        %vm1708 = vcmp.lt.s32.totalorder %v1707, 2
        %vm1709 = vcmp.eq.s32.totalorder %v1707, 0
        %v1710 = vxor.u32 %v1705, 2147483648
        %v1711 = vsel %vm1709, %v1697, %v1710
        %vm1712 = vcmp.eq.s32.totalorder %v1707, 2
        %v1713 = vxor.u32 %v1697, 2147483648
        %v1714 = vsel %vm1712, %v1713, %v1705
        %v1715 = vsel %vm1708, %v1711, %v1714
        %v1716 = vsel %vm1706, nan, %v1715
        %v1717 = vand.u32 2147483647, %v305
        %vm1718 = vcmp.le.f32.partialorder %v1717, 0.7853982
        %vm1719 = vcmp.lt.s32.totalorder %v305, 0
        %v1720 = vand.u32 %v305, 2139095040
        %v1721 = vshrl.u32 %v1720, 23
        %v1722 = vsub.s32 %v1721, 127
        %v1723 = vand.u32 2147483647, %v305
        %v1724 = vand.u32 %v1723, 8388607
        %v1725 = vor.u32 %v1724, 8388608
        %v1726 = vsub.s32 0, %v1725
        %v1727 = vadd.s32 %v1722, 1
        %vm1728 = vcmp.gt.s32.totalorder %v1727, 0
        %v1729 = vsel %vm1728, %v1727, 0
        %v1730 = vshrl.u32 %v1729, 5
        %v1731 = vand.u32 %v1729, 31
        %v1732 = vsub.s32 32, %v1731
        %v1733 = vshrl.u32 683565275, %v1732
        %v1734 = vshll.u32 683565275, %v1731
        %v1735 = vshrl.u32 2475754826, %v1732
        %v1736 = vor.u32 %v1734, %v1735
        %v1737 = vshll.u32 2475754826, %v1731
        %v1738 = vshrl.u32 2131351028, %v1732
        %v1739 = vor.u32 %v1737, %v1738
        %v1740 = vshll.u32 2131351028, %v1731
        %v1741 = vshrl.u32 2102212464, %v1732
        %v1742 = vor.u32 %v1740, %v1741
        %v1743 = vshll.u32 2102212464, %v1731
        %v1744 = vshrl.u32 920167782, %v1732
        %v1745 = vor.u32 %v1743, %v1744
        %v1746 = vshll.u32 920167782, %v1731
        %v1747 = vshrl.u32 1326507024, %v1732
        %v1748 = vor.u32 %v1746, %v1747
        %vm1749 = vcmp.lt.s32.totalorder %v1730, 1
        %vm1750 = vcmp.lt.s32.totalorder %v1730, 2
        %vm1751 = vcmp.lt.s32.totalorder %v1730, 3
        %vm1752 = vcmp.lt.s32.totalorder %v1730, 4
        %v1753 = vsel %vm1749, %v1733, %v1736
        %v1754 = vsel %vm1752, %v1742, 2102212464
        %v1755 = vsel %vm1751, %v1739, %v1754
        %v1756 = vsel %vm1750, %v1753, %v1755
        %v1757 = vsel %vm1749, %v1736, %v1739
        %v1758 = vsel %vm1752, %v1745, 920167782
        %v1759 = vsel %vm1751, %v1742, %v1758
        %v1760 = vsel %vm1750, %v1757, %v1759
        %v1761 = vsel %vm1749, %v1739, %v1742
        %v1762 = vsel %vm1752, %v1748, 1326507024
        %v1763 = vsel %vm1751, %v1745, %v1762
        %v1764 = vsel %vm1750, %v1761, %v1763
        %v1765 = vshll.u32 %v1725, 8
        %v1766 = vand.u32 %v1765, 65535
        %v1767 = vshrl.u32 %v1765, 16
        %v1768 = vand.u32 %v1764, 65535
        %v1769 = vshrl.u32 %v1764, 16
        %v1770 = vmul.u32 %v1766, %v1768
        %v1771 = vmul.u32 %v1766, %v1769
        %v1772 = vmul.u32 %v1767, %v1768
        %v1773 = vmul.u32 %v1767, %v1769
        %v1774 = vshll.u32 %v1771, 16
        %v1775 = vshrl.u32 %v1771, 16
        %v1776 = vshll.u32 %v1772, 16
        %v1777 = vshrl.u32 %v1772, 16
        %vm1778 = vc.u32 %v1770, %v1774
        %v1779 = vsel %vm1778, 1, 0
        %v1780 = vadd.s32 %v1770, %v1774
        %v1781 = vadd.s32 %v1773, %v1779
        %vm1782 = vc.u32 %v1780, %v1776
        %v1783 = vsel %vm1782, 1, 0
        %v1784 = vadd.s32 %v1780, %v1776
        %v1785 = vadd.s32 %v1781, %v1783
        %v1786 = vadd.s32 %v1785, %v1775
        %v1787 = vadd.s32 %v1786, %v1777
        %v1788 = vand.u32 %v1765, 65535
        %v1789 = vshrl.u32 %v1765, 16
        %v1790 = vand.u32 %v1760, 65535
        %v1791 = vshrl.u32 %v1760, 16
        %v1792 = vmul.u32 %v1788, %v1790
        %v1793 = vmul.u32 %v1788, %v1791
        %v1794 = vmul.u32 %v1789, %v1790
        %v1795 = vmul.u32 %v1789, %v1791
        %v1796 = vshll.u32 %v1793, 16
        %v1797 = vshrl.u32 %v1793, 16
        %v1798 = vshll.u32 %v1794, 16
        %v1799 = vshrl.u32 %v1794, 16
        %vm1800 = vc.u32 %v1792, %v1796
        %v1801 = vsel %vm1800, 1, 0
        %v1802 = vadd.s32 %v1792, %v1796
        %v1803 = vadd.s32 %v1795, %v1801
        %vm1804 = vc.u32 %v1802, %v1798
        %v1805 = vsel %vm1804, 1, 0
        %v1806 = vadd.s32 %v1802, %v1798
        %v1807 = vadd.s32 %v1803, %v1805
        %v1808 = vadd.s32 %v1807, %v1797
        %v1809 = vadd.s32 %v1808, %v1799
        %v1810 = vmul.u32 %v1765, %v1756
        %v1811 = vadd.s32 %v1787, %v1806
        %vm1812 = vc.u32 %v1787, %v1806
        %v1813 = vadd.s32 %v1809, 1
        %v1814 = vsel %vm1812, %v1813, %v1809
        %v1815 = vadd.s32 %v1810, %v1814
        %v1816 = vadd.s32 %v1815, 536870912
        %v1817 = vshrl.u32 %v1816, 30
        %v1818 = vshll.u32 %v1817, 30
        %v1819 = vsub.s32 %v1815, %v1818
        %vm1820 = vcmp.lt.s32.totalorder %v1819, 0
        %v1821 = vsub.s32 0, %v1819
        %v1822 = vsel %vm1820, %v1821, %v1819
        %v1823 = vclz %v1822
        %v1824 = vsub.s32 %v1823, 2
        %vm1825 = vcmp.gt.s32.totalorder 0, %v1824
        %v1826 = vsel %vm1825, 0, %v1824
        %v1827 = vsub.s32 32, %v1826
        %v1828 = vshll.u32 %v1819, %v1826
        %v1829 = vshrl.u32 %v1811, %v1827
        %v1830 = vor.u32 %v1828, %v1829
        %v1831 = vsub.s32 4294967266, %v1826
        %v1832 = vadd.s32 %v1831, 127
        %v1833 = vshll.u32 %v1832, 23
        %v1834 = vor.u32 4788187, %v1833
        %v1835 = vand.u32 2147483647, %v1834
        %v1837 = vcvt.s32.f32 %v1830
        %v1838 = vmul.f32 %v1837, %v1835
        %v1839 = vxor.u32 %v1838, 2147483648
        %v1840 = vsel %vm1719, %v1839, %v1838
        %v1841 = vsub.s32 4, %v1817
        %v1842 = vsel %vm1719, %v1841, %v1817
        %v1843 = vsel %vm1718, %v305, %v1840
        %v1844 = vsel %vm1718, 0, %v1842
        %v1845 = vmul.f32 %v1843, %v1843
        %v1846 = vmul.f32 %v1845, -0.001358992
        %v1847 = vadd.f32 %v1846, 0.041655596
        %v1848 = vmul.f32 %v1845, %v1847
        %v1849 = vadd.f32 %v1848, -0.4999988
        %v1850 = vmul.f32 %v1845, %v1849
        %v1851 = vadd.f32 1.0, %v1850
        %v1852 = vmul.f32 %v1843, %v1843
        %v1853 = vmul.f32 %v1852, -0.00019511016
        %v1854 = vadd.f32 %v1853, 0.008332121
        %v1855 = vmul.f32 %v1852, %v1854
        %v1856 = vadd.f32 %v1855, -0.16666654
        %v1857 = vmul.f32 %v1852, %v1856
        %v1858 = vadd.f32 %v1857, 1.0
        %v1859 = vmul.f32 %v1858, %v1843
        %vm1860 = vweird.f32 %v305
        %v1861 = vand.u32 %v1844, 3
        %vm1862 = vcmp.lt.s32.totalorder %v1861, 2
        %vm1863 = vcmp.eq.s32.totalorder %v1861, 0
        %v1864 = vxor.u32 %v1859, 2147483648
        %v1865 = vsel %vm1863, %v1851, %v1864
        %vm1866 = vcmp.eq.s32.totalorder %v1861, 2
        %v1867 = vxor.u32 %v1851, 2147483648
        %v1868 = vsel %vm1866, %v1867, %v1859
        %v1869 = vsel %vm1862, %v1865, %v1868
        %v1870 = vsel %vm1860, nan, %v1869
        %v1871 = vand.u32 2147483647, %v313
        %vm1872 = vcmp.le.f32.partialorder %v1871, 0.7853982
        %vm1873 = vcmp.lt.s32.totalorder %v313, 0
        %v1874 = vand.u32 %v313, 2139095040
        %v1875 = vshrl.u32 %v1874, 23
        %v1876 = vsub.s32 %v1875, 127
        %v1877 = vand.u32 2147483647, %v313
        %v1878 = vand.u32 %v1877, 8388607
        %v1879 = vor.u32 %v1878, 8388608
        %v1880 = vsub.s32 0, %v1879
        %v1881 = vadd.s32 %v1876, 1
        %vm1882 = vcmp.gt.s32.totalorder %v1881, 0
        %v1883 = vsel %vm1882, %v1881, 0
        %v1884 = vshrl.u32 %v1883, 5
        %v1885 = vand.u32 %v1883, 31
        %v1886 = vsub.s32 32, %v1885
        %v1887 = vshrl.u32 683565275, %v1886
        %v1888 = vshll.u32 683565275, %v1885
        %v1889 = vshrl.u32 2475754826, %v1886
        %v1890 = vor.u32 %v1888, %v1889
        %v1891 = vshll.u32 2475754826, %v1885
        %v1892 = vshrl.u32 2131351028, %v1886
        %v1893 = vor.u32 %v1891, %v1892
        %v1894 = vshll.u32 2131351028, %v1885
        %v1895 = vshrl.u32 2102212464, %v1886
        %v1896 = vor.u32 %v1894, %v1895
        %v1897 = vshll.u32 2102212464, %v1885
        %v1898 = vshrl.u32 920167782, %v1886
        %v1899 = vor.u32 %v1897, %v1898
        %v1900 = vshll.u32 920167782, %v1885
        %v1901 = vshrl.u32 1326507024, %v1886
        %v1902 = vor.u32 %v1900, %v1901
        %vm1903 = vcmp.lt.s32.totalorder %v1884, 1
        %vm1904 = vcmp.lt.s32.totalorder %v1884, 2
        %vm1905 = vcmp.lt.s32.totalorder %v1884, 3
        %vm1906 = vcmp.lt.s32.totalorder %v1884, 4
        %v1907 = vsel %vm1903, %v1887, %v1890
        %v1908 = vsel %vm1906, %v1896, 2102212464
        %v1909 = vsel %vm1905, %v1893, %v1908
        %v1910 = vsel %vm1904, %v1907, %v1909
        %v1911 = vsel %vm1903, %v1890, %v1893
        %v1912 = vsel %vm1906, %v1899, 920167782
        %v1913 = vsel %vm1905, %v1896, %v1912
        %v1914 = vsel %vm1904, %v1911, %v1913
        %v1915 = vsel %vm1903, %v1893, %v1896
        %v1916 = vsel %vm1906, %v1902, 1326507024
        %v1917 = vsel %vm1905, %v1899, %v1916
        %v1918 = vsel %vm1904, %v1915, %v1917
        %v1919 = vshll.u32 %v1879, 8
        %v1920 = vand.u32 %v1919, 65535
        %v1921 = vshrl.u32 %v1919, 16
        %v1922 = vand.u32 %v1918, 65535
        %v1923 = vshrl.u32 %v1918, 16
        %v1924 = vmul.u32 %v1920, %v1922
        %v1925 = vmul.u32 %v1920, %v1923
        %v1926 = vmul.u32 %v1921, %v1922
        %v1927 = vmul.u32 %v1921, %v1923
        %v1928 = vshll.u32 %v1925, 16
        %v1929 = vshrl.u32 %v1925, 16
        %v1930 = vshll.u32 %v1926, 16
        %v1931 = vshrl.u32 %v1926, 16
        %vm1932 = vc.u32 %v1924, %v1928
        %v1933 = vsel %vm1932, 1, 0
        %v1934 = vadd.s32 %v1924, %v1928
        %v1935 = vadd.s32 %v1927, %v1933
        %vm1936 = vc.u32 %v1934, %v1930
        %v1937 = vsel %vm1936, 1, 0
        %v1938 = vadd.s32 %v1934, %v1930
        %v1939 = vadd.s32 %v1935, %v1937
        %v1940 = vadd.s32 %v1939, %v1929
        %v1941 = vadd.s32 %v1940, %v1931
        %v1942 = vand.u32 %v1919, 65535
        %v1943 = vshrl.u32 %v1919, 16
        %v1944 = vand.u32 %v1914, 65535
        %v1945 = vshrl.u32 %v1914, 16
        %v1946 = vmul.u32 %v1942, %v1944
        %v1947 = vmul.u32 %v1942, %v1945
        %v1948 = vmul.u32 %v1943, %v1944
        %v1949 = vmul.u32 %v1943, %v1945
        %v1950 = vshll.u32 %v1947, 16
        %v1951 = vshrl.u32 %v1947, 16
        %v1952 = vshll.u32 %v1948, 16
        %v1953 = vshrl.u32 %v1948, 16
        %vm1954 = vc.u32 %v1946, %v1950
        %v1955 = vsel %vm1954, 1, 0
        %v1956 = vadd.s32 %v1946, %v1950
        %v1957 = vadd.s32 %v1949, %v1955
        %vm1958 = vc.u32 %v1956, %v1952
        %v1959 = vsel %vm1958, 1, 0
        %v1960 = vadd.s32 %v1956, %v1952
        %v1961 = vadd.s32 %v1957, %v1959
        %v1962 = vadd.s32 %v1961, %v1951
        %v1963 = vadd.s32 %v1962, %v1953
        %v1964 = vmul.u32 %v1919, %v1910
        %v1965 = vadd.s32 %v1941, %v1960
        %vm1966 = vc.u32 %v1941, %v1960
        %v1967 = vadd.s32 %v1963, 1
        %v1968 = vsel %vm1966, %v1967, %v1963
        %v1969 = vadd.s32 %v1964, %v1968
        %v1970 = vadd.s32 %v1969, 536870912
        %v1971 = vshrl.u32 %v1970, 30
        %v1972 = vshll.u32 %v1971, 30
        %v1973 = vsub.s32 %v1969, %v1972
        %vm1974 = vcmp.lt.s32.totalorder %v1973, 0
        %v1975 = vsub.s32 0, %v1973
        %v1976 = vsel %vm1974, %v1975, %v1973
        %v1977 = vclz %v1976
        %v1978 = vsub.s32 %v1977, 2
        %vm1979 = vcmp.gt.s32.totalorder 0, %v1978
        %v1980 = vsel %vm1979, 0, %v1978
        %v1981 = vsub.s32 32, %v1980
        %v1982 = vshll.u32 %v1973, %v1980
        %v1983 = vshrl.u32 %v1965, %v1981
        %v1984 = vor.u32 %v1982, %v1983
        %v1985 = vsub.s32 4294967266, %v1980
        %v1986 = vadd.s32 %v1985, 127
        %v1987 = vshll.u32 %v1986, 23
        %v1988 = vor.u32 4788187, %v1987
        %v1989 = vand.u32 2147483647, %v1988
        %v1991 = vcvt.s32.f32 %v1984
        %v1992 = vmul.f32 %v1991, %v1989
        %v1993 = vxor.u32 %v1992, 2147483648
        %v1994 = vsel %vm1873, %v1993, %v1992
        %v1995 = vsub.s32 4, %v1971
        %v1996 = vsel %vm1873, %v1995, %v1971
        %v1997 = vsel %vm1872, %v313, %v1994
        %v1998 = vsel %vm1872, 0, %v1996
        %v1999 = vmul.f32 %v1997, %v1997
        %v2000 = vmul.f32 %v1999, -0.001358992
        %v2001 = vadd.f32 %v2000, 0.041655596
        %v2002 = vmul.f32 %v1999, %v2001
        %v2003 = vadd.f32 %v2002, -0.4999988
        %v2004 = vmul.f32 %v1999, %v2003
        %v2005 = vadd.f32 1.0, %v2004
        %v2006 = vmul.f32 %v1997, %v1997
        %v2007 = vmul.f32 %v2006, -0.00019511016
        %v2008 = vadd.f32 %v2007, 0.008332121
        %v2009 = vmul.f32 %v2006, %v2008
        %v2010 = vadd.f32 %v2009, -0.16666654
        %v2011 = vmul.f32 %v2006, %v2010
        %v2012 = vadd.f32 %v2011, 1.0
        %v2013 = vmul.f32 %v2012, %v1997
        %vm2014 = vweird.f32 %v313
        %v2015 = vand.u32 %v1998, 3
        %vm2016 = vcmp.lt.s32.totalorder %v2015, 2
        %vm2017 = vcmp.eq.s32.totalorder %v2015, 0
        %v2018 = vxor.u32 %v2013, 2147483648
        %v2019 = vsel %vm2017, %v2005, %v2018
        %vm2020 = vcmp.eq.s32.totalorder %v2015, 2
        %v2021 = vxor.u32 %v2005, 2147483648
        %v2022 = vsel %vm2020, %v2021, %v2013
        %v2023 = vsel %vm2016, %v2019, %v2022
        %v2024 = vsel %vm2014, nan, %v2023
        %v2025 = vand.u32 2147483647, %v314
        %vm2026 = vcmp.le.f32.partialorder %v2025, 0.7853982
        %vm2027 = vcmp.lt.s32.totalorder %v314, 0
        %v2028 = vand.u32 %v314, 2139095040
        %v2029 = vshrl.u32 %v2028, 23
        %v2030 = vsub.s32 %v2029, 127
        %v2031 = vand.u32 2147483647, %v314
        %v2032 = vand.u32 %v2031, 8388607
        %v2033 = vor.u32 %v2032, 8388608
        %v2034 = vsub.s32 0, %v2033
        %v2035 = vadd.s32 %v2030, 1
        %vm2036 = vcmp.gt.s32.totalorder %v2035, 0
        %v2037 = vsel %vm2036, %v2035, 0
        %v2038 = vshrl.u32 %v2037, 5
        %v2039 = vand.u32 %v2037, 31
        %v2040 = vsub.s32 32, %v2039
        %v2041 = vshrl.u32 683565275, %v2040
        %v2042 = vshll.u32 683565275, %v2039
        %v2043 = vshrl.u32 2475754826, %v2040
        %v2044 = vor.u32 %v2042, %v2043
        %v2045 = vshll.u32 2475754826, %v2039
        %v2046 = vshrl.u32 2131351028, %v2040
        %v2047 = vor.u32 %v2045, %v2046
        %v2048 = vshll.u32 2131351028, %v2039
        %v2049 = vshrl.u32 2102212464, %v2040
        %v2050 = vor.u32 %v2048, %v2049
        %v2051 = vshll.u32 2102212464, %v2039
        %v2052 = vshrl.u32 920167782, %v2040
        %v2053 = vor.u32 %v2051, %v2052
        %v2054 = vshll.u32 920167782, %v2039
        %v2055 = vshrl.u32 1326507024, %v2040
        %v2056 = vor.u32 %v2054, %v2055
        %vm2057 = vcmp.lt.s32.totalorder %v2038, 1
        %vm2058 = vcmp.lt.s32.totalorder %v2038, 2
        %vm2059 = vcmp.lt.s32.totalorder %v2038, 3
        %vm2060 = vcmp.lt.s32.totalorder %v2038, 4
        %v2061 = vsel %vm2057, %v2041, %v2044
        %v2062 = vsel %vm2060, %v2050, 2102212464
        %v2063 = vsel %vm2059, %v2047, %v2062
        %v2064 = vsel %vm2058, %v2061, %v2063
        %v2065 = vsel %vm2057, %v2044, %v2047
        %v2066 = vsel %vm2060, %v2053, 920167782
        %v2067 = vsel %vm2059, %v2050, %v2066
        %v2068 = vsel %vm2058, %v2065, %v2067
        %v2069 = vsel %vm2057, %v2047, %v2050
        %v2070 = vsel %vm2060, %v2056, 1326507024
        %v2071 = vsel %vm2059, %v2053, %v2070
        %v2072 = vsel %vm2058, %v2069, %v2071
        %v2073 = vshll.u32 %v2033, 8
        %v2074 = vand.u32 %v2073, 65535
        %v2075 = vshrl.u32 %v2073, 16
        %v2076 = vand.u32 %v2072, 65535
        %v2077 = vshrl.u32 %v2072, 16
        %v2078 = vmul.u32 %v2074, %v2076
        %v2079 = vmul.u32 %v2074, %v2077
        %v2080 = vmul.u32 %v2075, %v2076
        %v2081 = vmul.u32 %v2075, %v2077
        %v2082 = vshll.u32 %v2079, 16
        %v2083 = vshrl.u32 %v2079, 16
        %v2084 = vshll.u32 %v2080, 16
        %v2085 = vshrl.u32 %v2080, 16
        %vm2086 = vc.u32 %v2078, %v2082
        %v2087 = vsel %vm2086, 1, 0
        %v2088 = vadd.s32 %v2078, %v2082
        %v2089 = vadd.s32 %v2081, %v2087
        %vm2090 = vc.u32 %v2088, %v2084
        %v2091 = vsel %vm2090, 1, 0
        %v2092 = vadd.s32 %v2088, %v2084
        %v2093 = vadd.s32 %v2089, %v2091
        %v2094 = vadd.s32 %v2093, %v2083
        %v2095 = vadd.s32 %v2094, %v2085
        %v2096 = vand.u32 %v2073, 65535
        %v2097 = vshrl.u32 %v2073, 16
        %v2098 = vand.u32 %v2068, 65535
        %v2099 = vshrl.u32 %v2068, 16
        %v2100 = vmul.u32 %v2096, %v2098
        %v2101 = vmul.u32 %v2096, %v2099
        %v2102 = vmul.u32 %v2097, %v2098
        %v2103 = vmul.u32 %v2097, %v2099
        %v2104 = vshll.u32 %v2101, 16
        %v2105 = vshrl.u32 %v2101, 16
        %v2106 = vshll.u32 %v2102, 16
        %v2107 = vshrl.u32 %v2102, 16
        %vm2108 = vc.u32 %v2100, %v2104
        %v2109 = vsel %vm2108, 1, 0
        %v2110 = vadd.s32 %v2100, %v2104
        %v2111 = vadd.s32 %v2103, %v2109
        %vm2112 = vc.u32 %v2110, %v2106
        %v2113 = vsel %vm2112, 1, 0
        %v2114 = vadd.s32 %v2110, %v2106
        %v2115 = vadd.s32 %v2111, %v2113
        %v2116 = vadd.s32 %v2115, %v2105
        %v2117 = vadd.s32 %v2116, %v2107
        %v2118 = vmul.u32 %v2073, %v2064
        %v2119 = vadd.s32 %v2095, %v2114
        %vm2120 = vc.u32 %v2095, %v2114
        %v2121 = vadd.s32 %v2117, 1
        %v2122 = vsel %vm2120, %v2121, %v2117
        %v2123 = vadd.s32 %v2118, %v2122
        %v2124 = vadd.s32 %v2123, 536870912
        %v2125 = vshrl.u32 %v2124, 30
        %v2126 = vshll.u32 %v2125, 30
        %v2127 = vsub.s32 %v2123, %v2126
        %vm2128 = vcmp.lt.s32.totalorder %v2127, 0
        %v2129 = vsub.s32 0, %v2127
        %v2130 = vsel %vm2128, %v2129, %v2127
        %v2131 = vclz %v2130
        %v2132 = vsub.s32 %v2131, 2
        %vm2133 = vcmp.gt.s32.totalorder 0, %v2132
        %v2134 = vsel %vm2133, 0, %v2132
        %v2135 = vsub.s32 32, %v2134
        %v2136 = vshll.u32 %v2127, %v2134
        %v2137 = vshrl.u32 %v2119, %v2135
        %v2138 = vor.u32 %v2136, %v2137
        %v2139 = vsub.s32 4294967266, %v2134
        %v2140 = vadd.s32 %v2139, 127
        %v2141 = vshll.u32 %v2140, 23
        %v2142 = vor.u32 4788187, %v2141
        %v2143 = vand.u32 2147483647, %v2142
        %v2145 = vcvt.s32.f32 %v2138
        %v2146 = vmul.f32 %v2145, %v2143
        %v2147 = vxor.u32 %v2146, 2147483648
        %v2148 = vsel %vm2027, %v2147, %v2146
        %v2149 = vsub.s32 4, %v2125
        %v2150 = vsel %vm2027, %v2149, %v2125
        %v2151 = vsel %vm2026, %v314, %v2148
        %v2152 = vsel %vm2026, 0, %v2150
        %v2153 = vmul.f32 %v2151, %v2151
        %v2154 = vmul.f32 %v2153, -0.001358992
        %v2155 = vadd.f32 %v2154, 0.041655596
        %v2156 = vmul.f32 %v2153, %v2155
        %v2157 = vadd.f32 %v2156, -0.4999988
        %v2158 = vmul.f32 %v2153, %v2157
        %v2159 = vadd.f32 1.0, %v2158
        %v2160 = vmul.f32 %v2151, %v2151
        %v2161 = vmul.f32 %v2160, -0.00019511016
        %v2162 = vadd.f32 %v2161, 0.008332121
        %v2163 = vmul.f32 %v2160, %v2162
        %v2164 = vadd.f32 %v2163, -0.16666654
        %v2165 = vmul.f32 %v2160, %v2164
        %v2166 = vadd.f32 %v2165, 1.0
        %v2167 = vmul.f32 %v2166, %v2151
        %vm2168 = vweird.f32 %v314
        %v2169 = vand.u32 %v2152, 3
        %vm2170 = vcmp.lt.s32.totalorder %v2169, 2
        %vm2171 = vcmp.eq.s32.totalorder %v2169, 0
        %v2172 = vxor.u32 %v2167, 2147483648
        %v2173 = vsel %vm2171, %v2159, %v2172
        %vm2174 = vcmp.eq.s32.totalorder %v2169, 2
        %v2175 = vxor.u32 %v2159, 2147483648
        %v2176 = vsel %vm2174, %v2175, %v2167
        %v2177 = vsel %vm2170, %v2173, %v2176
        %v2178 = vsel %vm2168, nan, %v2177
        %v2179 = vand.u32 2147483647, %v319
        %vm2180 = vcmp.le.f32.partialorder %v2179, 0.7853982
        %vm2181 = vcmp.lt.s32.totalorder %v319, 0
        %v2182 = vand.u32 %v319, 2139095040
        %v2183 = vshrl.u32 %v2182, 23
        %v2184 = vsub.s32 %v2183, 127
        %v2185 = vand.u32 2147483647, %v319
        %v2186 = vand.u32 %v2185, 8388607
        %v2187 = vor.u32 %v2186, 8388608
        %v2188 = vsub.s32 0, %v2187
        %v2189 = vadd.s32 %v2184, 1
        %vm2190 = vcmp.gt.s32.totalorder %v2189, 0
        %v2191 = vsel %vm2190, %v2189, 0
        %v2192 = vshrl.u32 %v2191, 5
        %v2193 = vand.u32 %v2191, 31
        %v2194 = vsub.s32 32, %v2193
        %v2195 = vshrl.u32 683565275, %v2194
        %v2196 = vshll.u32 683565275, %v2193
        %v2197 = vshrl.u32 2475754826, %v2194
        %v2198 = vor.u32 %v2196, %v2197
        %v2199 = vshll.u32 2475754826, %v2193
        %v2200 = vshrl.u32 2131351028, %v2194
        %v2201 = vor.u32 %v2199, %v2200
        %v2202 = vshll.u32 2131351028, %v2193
        %v2203 = vshrl.u32 2102212464, %v2194
        %v2204 = vor.u32 %v2202, %v2203
        %v2205 = vshll.u32 2102212464, %v2193
        %v2206 = vshrl.u32 920167782, %v2194
        %v2207 = vor.u32 %v2205, %v2206
        %v2208 = vshll.u32 920167782, %v2193
        %v2209 = vshrl.u32 1326507024, %v2194
        %v2210 = vor.u32 %v2208, %v2209
        %vm2211 = vcmp.lt.s32.totalorder %v2192, 1
        %vm2212 = vcmp.lt.s32.totalorder %v2192, 2
        %vm2213 = vcmp.lt.s32.totalorder %v2192, 3
        %vm2214 = vcmp.lt.s32.totalorder %v2192, 4
        %v2215 = vsel %vm2211, %v2195, %v2198
        %v2216 = vsel %vm2214, %v2204, 2102212464
        %v2217 = vsel %vm2213, %v2201, %v2216
        %v2218 = vsel %vm2212, %v2215, %v2217
        %v2219 = vsel %vm2211, %v2198, %v2201
        %v2220 = vsel %vm2214, %v2207, 920167782
        %v2221 = vsel %vm2213, %v2204, %v2220
        %v2222 = vsel %vm2212, %v2219, %v2221
        %v2223 = vsel %vm2211, %v2201, %v2204
        %v2224 = vsel %vm2214, %v2210, 1326507024
        %v2225 = vsel %vm2213, %v2207, %v2224
        %v2226 = vsel %vm2212, %v2223, %v2225
        %v2227 = vshll.u32 %v2187, 8
        %v2228 = vand.u32 %v2227, 65535
        %v2229 = vshrl.u32 %v2227, 16
        %v2230 = vand.u32 %v2226, 65535
        %v2231 = vshrl.u32 %v2226, 16
        %v2232 = vmul.u32 %v2228, %v2230
        %v2233 = vmul.u32 %v2228, %v2231
        %v2234 = vmul.u32 %v2229, %v2230
        %v2235 = vmul.u32 %v2229, %v2231
        %v2236 = vshll.u32 %v2233, 16
        %v2237 = vshrl.u32 %v2233, 16
        %v2238 = vshll.u32 %v2234, 16
        %v2239 = vshrl.u32 %v2234, 16
        %vm2240 = vc.u32 %v2232, %v2236
        %v2241 = vsel %vm2240, 1, 0
        %v2242 = vadd.s32 %v2232, %v2236
        %v2243 = vadd.s32 %v2235, %v2241
        %vm2244 = vc.u32 %v2242, %v2238
        %v2245 = vsel %vm2244, 1, 0
        %v2246 = vadd.s32 %v2242, %v2238
        %v2247 = vadd.s32 %v2243, %v2245
        %v2248 = vadd.s32 %v2247, %v2237
        %v2249 = vadd.s32 %v2248, %v2239
        %v2250 = vand.u32 %v2227, 65535
        %v2251 = vshrl.u32 %v2227, 16
        %v2252 = vand.u32 %v2222, 65535
        %v2253 = vshrl.u32 %v2222, 16
        %v2254 = vmul.u32 %v2250, %v2252
        %v2255 = vmul.u32 %v2250, %v2253
        %v2256 = vmul.u32 %v2251, %v2252
        %v2257 = vmul.u32 %v2251, %v2253
        %v2258 = vshll.u32 %v2255, 16
        %v2259 = vshrl.u32 %v2255, 16
        %v2260 = vshll.u32 %v2256, 16
        %v2261 = vshrl.u32 %v2256, 16
        %vm2262 = vc.u32 %v2254, %v2258
        %v2263 = vsel %vm2262, 1, 0
        %v2264 = vadd.s32 %v2254, %v2258
        %v2265 = vadd.s32 %v2257, %v2263
        %vm2266 = vc.u32 %v2264, %v2260
        %v2267 = vsel %vm2266, 1, 0
        %v2268 = vadd.s32 %v2264, %v2260
        %v2269 = vadd.s32 %v2265, %v2267
        %v2270 = vadd.s32 %v2269, %v2259
        %v2271 = vadd.s32 %v2270, %v2261
        %v2272 = vmul.u32 %v2227, %v2218
        %v2273 = vadd.s32 %v2249, %v2268
        %vm2274 = vc.u32 %v2249, %v2268
        %v2275 = vadd.s32 %v2271, 1
        %v2276 = vsel %vm2274, %v2275, %v2271
        %v2277 = vadd.s32 %v2272, %v2276
        %v2278 = vadd.s32 %v2277, 536870912
        %v2279 = vshrl.u32 %v2278, 30
        %v2280 = vshll.u32 %v2279, 30
        %v2281 = vsub.s32 %v2277, %v2280
        %vm2282 = vcmp.lt.s32.totalorder %v2281, 0
        %v2283 = vsub.s32 0, %v2281
        %v2284 = vsel %vm2282, %v2283, %v2281
        %v2285 = vclz %v2284
        %v2286 = vsub.s32 %v2285, 2
        %vm2287 = vcmp.gt.s32.totalorder 0, %v2286
        %v2288 = vsel %vm2287, 0, %v2286
        %v2289 = vsub.s32 32, %v2288
        %v2290 = vshll.u32 %v2281, %v2288
        %v2291 = vshrl.u32 %v2273, %v2289
        %v2292 = vor.u32 %v2290, %v2291
        %v2293 = vsub.s32 4294967266, %v2288
        %v2294 = vadd.s32 %v2293, 127
        %v2295 = vshll.u32 %v2294, 23
        %v2296 = vor.u32 4788187, %v2295
        %v2297 = vand.u32 2147483647, %v2296
        %v2299 = vcvt.s32.f32 %v2292
        %v2300 = vmul.f32 %v2299, %v2297
        %v2301 = vxor.u32 %v2300, 2147483648
        %v2302 = vsel %vm2181, %v2301, %v2300
        %v2303 = vsub.s32 4, %v2279
        %v2304 = vsel %vm2181, %v2303, %v2279
        %v2305 = vsel %vm2180, %v319, %v2302
        %v2306 = vsel %vm2180, 0, %v2304
        %v2307 = vmul.f32 %v2305, %v2305
        %v2308 = vmul.f32 %v2307, -0.001358992
        %v2309 = vadd.f32 %v2308, 0.041655596
        %v2310 = vmul.f32 %v2307, %v2309
        %v2311 = vadd.f32 %v2310, -0.4999988
        %v2312 = vmul.f32 %v2307, %v2311
        %v2313 = vadd.f32 1.0, %v2312
        %v2314 = vmul.f32 %v2305, %v2305
        %v2315 = vmul.f32 %v2314, -0.00019511016
        %v2316 = vadd.f32 %v2315, 0.008332121
        %v2317 = vmul.f32 %v2314, %v2316
        %v2318 = vadd.f32 %v2317, -0.16666654
        %v2319 = vmul.f32 %v2314, %v2318
        %v2320 = vadd.f32 %v2319, 1.0
        %v2321 = vmul.f32 %v2320, %v2305
        %vm2322 = vweird.f32 %v319
        %v2323 = vand.u32 %v2306, 3
        %vm2324 = vcmp.lt.s32.totalorder %v2323, 2
        %vm2325 = vcmp.eq.s32.totalorder %v2323, 0
        %v2326 = vxor.u32 %v2321, 2147483648
        %v2327 = vsel %vm2325, %v2313, %v2326
        %vm2328 = vcmp.eq.s32.totalorder %v2323, 2
        %v2329 = vxor.u32 %v2313, 2147483648
        %v2330 = vsel %vm2328, %v2329, %v2321
        %v2331 = vsel %vm2324, %v2327, %v2330
        %v2332 = vsel %vm2322, nan, %v2331
        %v2333 = vand.u32 2147483647, %v320
        %vm2334 = vcmp.le.f32.partialorder %v2333, 0.7853982
        %vm2335 = vcmp.lt.s32.totalorder %v320, 0
        %v2336 = vand.u32 %v320, 2139095040
        %v2337 = vshrl.u32 %v2336, 23
        %v2338 = vsub.s32 %v2337, 127
        %v2339 = vand.u32 2147483647, %v320
        %v2340 = vand.u32 %v2339, 8388607
        %v2341 = vor.u32 %v2340, 8388608
        %v2342 = vsub.s32 0, %v2341
        %v2343 = vadd.s32 %v2338, 1
        %vm2344 = vcmp.gt.s32.totalorder %v2343, 0
        %v2345 = vsel %vm2344, %v2343, 0
        %v2346 = vshrl.u32 %v2345, 5
        %v2347 = vand.u32 %v2345, 31
        %v2348 = vsub.s32 32, %v2347
        %v2349 = vshrl.u32 683565275, %v2348
        %v2350 = vshll.u32 683565275, %v2347
        %v2351 = vshrl.u32 2475754826, %v2348
        %v2352 = vor.u32 %v2350, %v2351
        %v2353 = vshll.u32 2475754826, %v2347
        %v2354 = vshrl.u32 2131351028, %v2348
        %v2355 = vor.u32 %v2353, %v2354
        %v2356 = vshll.u32 2131351028, %v2347
        %v2357 = vshrl.u32 2102212464, %v2348
        %v2358 = vor.u32 %v2356, %v2357
        %v2359 = vshll.u32 2102212464, %v2347
        %v2360 = vshrl.u32 920167782, %v2348
        %v2361 = vor.u32 %v2359, %v2360
        %v2362 = vshll.u32 920167782, %v2347
        %v2363 = vshrl.u32 1326507024, %v2348
        %v2364 = vor.u32 %v2362, %v2363
        %vm2365 = vcmp.lt.s32.totalorder %v2346, 1
        %vm2366 = vcmp.lt.s32.totalorder %v2346, 2
        %vm2367 = vcmp.lt.s32.totalorder %v2346, 3
        %vm2368 = vcmp.lt.s32.totalorder %v2346, 4
        %v2369 = vsel %vm2365, %v2349, %v2352
        %v2370 = vsel %vm2368, %v2358, 2102212464
        %v2371 = vsel %vm2367, %v2355, %v2370
        %v2372 = vsel %vm2366, %v2369, %v2371
        %v2373 = vsel %vm2365, %v2352, %v2355
        %v2374 = vsel %vm2368, %v2361, 920167782
        %v2375 = vsel %vm2367, %v2358, %v2374
        %v2376 = vsel %vm2366, %v2373, %v2375
        %v2377 = vsel %vm2365, %v2355, %v2358
        %v2378 = vsel %vm2368, %v2364, 1326507024
        %v2379 = vsel %vm2367, %v2361, %v2378
        %v2380 = vsel %vm2366, %v2377, %v2379
        %v2381 = vshll.u32 %v2341, 8
        %v2382 = vand.u32 %v2381, 65535
        %v2383 = vshrl.u32 %v2381, 16
        %v2384 = vand.u32 %v2380, 65535
        %v2385 = vshrl.u32 %v2380, 16
        %v2386 = vmul.u32 %v2382, %v2384
        %v2387 = vmul.u32 %v2382, %v2385
        %v2388 = vmul.u32 %v2383, %v2384
        %v2389 = vmul.u32 %v2383, %v2385
        %v2390 = vshll.u32 %v2387, 16
        %v2391 = vshrl.u32 %v2387, 16
        %v2392 = vshll.u32 %v2388, 16
        %v2393 = vshrl.u32 %v2388, 16
        %vm2394 = vc.u32 %v2386, %v2390
        %v2395 = vsel %vm2394, 1, 0
        %v2396 = vadd.s32 %v2386, %v2390
        %v2397 = vadd.s32 %v2389, %v2395
        %vm2398 = vc.u32 %v2396, %v2392
        %v2399 = vsel %vm2398, 1, 0
        %v2400 = vadd.s32 %v2396, %v2392
        %v2401 = vadd.s32 %v2397, %v2399
        %v2402 = vadd.s32 %v2401, %v2391
        %v2403 = vadd.s32 %v2402, %v2393
        %v2404 = vand.u32 %v2381, 65535
        %v2405 = vshrl.u32 %v2381, 16
        %v2406 = vand.u32 %v2376, 65535
        %v2407 = vshrl.u32 %v2376, 16
        %v2408 = vmul.u32 %v2404, %v2406
        %v2409 = vmul.u32 %v2404, %v2407
        %v2410 = vmul.u32 %v2405, %v2406
        %v2411 = vmul.u32 %v2405, %v2407
        %v2412 = vshll.u32 %v2409, 16
        %v2413 = vshrl.u32 %v2409, 16
        %v2414 = vshll.u32 %v2410, 16
        %v2415 = vshrl.u32 %v2410, 16
        %vm2416 = vc.u32 %v2408, %v2412
        %v2417 = vsel %vm2416, 1, 0
        %v2418 = vadd.s32 %v2408, %v2412
        %v2419 = vadd.s32 %v2411, %v2417
        %vm2420 = vc.u32 %v2418, %v2414
        %v2421 = vsel %vm2420, 1, 0
        %v2422 = vadd.s32 %v2418, %v2414
        %v2423 = vadd.s32 %v2419, %v2421
        %v2424 = vadd.s32 %v2423, %v2413
        %v2425 = vadd.s32 %v2424, %v2415
        %v2426 = vmul.u32 %v2381, %v2372
        %v2427 = vadd.s32 %v2403, %v2422
        %vm2428 = vc.u32 %v2403, %v2422
        %v2429 = vadd.s32 %v2425, 1
        %v2430 = vsel %vm2428, %v2429, %v2425
        %v2431 = vadd.s32 %v2426, %v2430
        %v2432 = vadd.s32 %v2431, 536870912
        %v2433 = vshrl.u32 %v2432, 30
        %v2434 = vshll.u32 %v2433, 30
        %v2435 = vsub.s32 %v2431, %v2434
        %vm2436 = vcmp.lt.s32.totalorder %v2435, 0
        %v2437 = vsub.s32 0, %v2435
        %v2438 = vsel %vm2436, %v2437, %v2435
        %v2439 = vclz %v2438
        %v2440 = vsub.s32 %v2439, 2
        %vm2441 = vcmp.gt.s32.totalorder 0, %v2440
        %v2442 = vsel %vm2441, 0, %v2440
        %v2443 = vsub.s32 32, %v2442
        %v2444 = vshll.u32 %v2435, %v2442
        %v2445 = vshrl.u32 %v2427, %v2443
        %v2446 = vor.u32 %v2444, %v2445
        %v2447 = vsub.s32 4294967266, %v2442
        %v2448 = vadd.s32 %v2447, 127
        %v2449 = vshll.u32 %v2448, 23
        %v2450 = vor.u32 4788187, %v2449
        %v2451 = vand.u32 2147483647, %v2450
        %v2453 = vcvt.s32.f32 %v2446
        %v2454 = vmul.f32 %v2453, %v2451
        %v2455 = vxor.u32 %v2454, 2147483648
        %v2456 = vsel %vm2335, %v2455, %v2454
        %v2457 = vsub.s32 4, %v2433
        %v2458 = vsel %vm2335, %v2457, %v2433
        %v2459 = vsel %vm2334, %v320, %v2456
        %v2460 = vsel %vm2334, 0, %v2458
        %v2461 = vmul.f32 %v2459, %v2459
        %v2462 = vmul.f32 %v2461, -0.001358992
        %v2463 = vadd.f32 %v2462, 0.041655596
        %v2464 = vmul.f32 %v2461, %v2463
        %v2465 = vadd.f32 %v2464, -0.4999988
        %v2466 = vmul.f32 %v2461, %v2465
        %v2467 = vadd.f32 1.0, %v2466
        %v2468 = vmul.f32 %v2459, %v2459
        %v2469 = vmul.f32 %v2468, -0.00019511016
        %v2470 = vadd.f32 %v2469, 0.008332121
        %v2471 = vmul.f32 %v2468, %v2470
        %v2472 = vadd.f32 %v2471, -0.16666654
        %v2473 = vmul.f32 %v2468, %v2472
        %v2474 = vadd.f32 %v2473, 1.0
        %v2475 = vmul.f32 %v2474, %v2459
        %vm2476 = vweird.f32 %v320
        %v2477 = vand.u32 %v2460, 3
        %vm2478 = vcmp.lt.s32.totalorder %v2477, 2
        %vm2479 = vcmp.eq.s32.totalorder %v2477, 0
        %v2480 = vxor.u32 %v2475, 2147483648
        %v2481 = vsel %vm2479, %v2467, %v2480
        %vm2482 = vcmp.eq.s32.totalorder %v2477, 2
        %v2483 = vxor.u32 %v2467, 2147483648
        %v2484 = vsel %vm2482, %v2483, %v2475
        %v2485 = vsel %vm2478, %v2481, %v2484
        %v2486 = vsel %vm2476, nan, %v2485
        %v2487 = vand.u32 2147483647, %v321
        %vm2488 = vcmp.le.f32.partialorder %v2487, 0.7853982
        %vm2489 = vcmp.lt.s32.totalorder %v321, 0
        %v2490 = vand.u32 %v321, 2139095040
        %v2491 = vshrl.u32 %v2490, 23
        %v2492 = vsub.s32 %v2491, 127
        %v2493 = vand.u32 2147483647, %v321
        %v2494 = vand.u32 %v2493, 8388607
        %v2495 = vor.u32 %v2494, 8388608
        %v2496 = vsub.s32 0, %v2495
        %v2497 = vadd.s32 %v2492, 1
        %vm2498 = vcmp.gt.s32.totalorder %v2497, 0
        %v2499 = vsel %vm2498, %v2497, 0
        %v2500 = vshrl.u32 %v2499, 5
        %v2501 = vand.u32 %v2499, 31
        %v2502 = vsub.s32 32, %v2501
        %v2503 = vshrl.u32 683565275, %v2502
        %v2504 = vshll.u32 683565275, %v2501
        %v2505 = vshrl.u32 2475754826, %v2502
        %v2506 = vor.u32 %v2504, %v2505
        %v2507 = vshll.u32 2475754826, %v2501
        %v2508 = vshrl.u32 2131351028, %v2502
        %v2509 = vor.u32 %v2507, %v2508
        %v2510 = vshll.u32 2131351028, %v2501
        %v2511 = vshrl.u32 2102212464, %v2502
        %v2512 = vor.u32 %v2510, %v2511
        %v2513 = vshll.u32 2102212464, %v2501
        %v2514 = vshrl.u32 920167782, %v2502
        %v2515 = vor.u32 %v2513, %v2514
        %v2516 = vshll.u32 920167782, %v2501
        %v2517 = vshrl.u32 1326507024, %v2502
        %v2518 = vor.u32 %v2516, %v2517
        %vm2519 = vcmp.lt.s32.totalorder %v2500, 1
        %vm2520 = vcmp.lt.s32.totalorder %v2500, 2
        %vm2521 = vcmp.lt.s32.totalorder %v2500, 3
        %vm2522 = vcmp.lt.s32.totalorder %v2500, 4
        %v2523 = vsel %vm2519, %v2503, %v2506
        %v2524 = vsel %vm2522, %v2512, 2102212464
        %v2525 = vsel %vm2521, %v2509, %v2524
        %v2526 = vsel %vm2520, %v2523, %v2525
        %v2527 = vsel %vm2519, %v2506, %v2509
        %v2528 = vsel %vm2522, %v2515, 920167782
        %v2529 = vsel %vm2521, %v2512, %v2528
        %v2530 = vsel %vm2520, %v2527, %v2529
        %v2531 = vsel %vm2519, %v2509, %v2512
        %v2532 = vsel %vm2522, %v2518, 1326507024
        %v2533 = vsel %vm2521, %v2515, %v2532
        %v2534 = vsel %vm2520, %v2531, %v2533
        %v2535 = vshll.u32 %v2495, 8
        %v2536 = vand.u32 %v2535, 65535
        %v2537 = vshrl.u32 %v2535, 16
        %v2538 = vand.u32 %v2534, 65535
        %v2539 = vshrl.u32 %v2534, 16
        %v2540 = vmul.u32 %v2536, %v2538
        %v2541 = vmul.u32 %v2536, %v2539
        %v2542 = vmul.u32 %v2537, %v2538
        %v2543 = vmul.u32 %v2537, %v2539
        %v2544 = vshll.u32 %v2541, 16
        %v2545 = vshrl.u32 %v2541, 16
        %v2546 = vshll.u32 %v2542, 16
        %v2547 = vshrl.u32 %v2542, 16
        %vm2548 = vc.u32 %v2540, %v2544
        %v2549 = vsel %vm2548, 1, 0
        %v2550 = vadd.s32 %v2540, %v2544
        %v2551 = vadd.s32 %v2543, %v2549
        %vm2552 = vc.u32 %v2550, %v2546
        %v2553 = vsel %vm2552, 1, 0
        %v2554 = vadd.s32 %v2550, %v2546
        %v2555 = vadd.s32 %v2551, %v2553
        %v2556 = vadd.s32 %v2555, %v2545
        %v2557 = vadd.s32 %v2556, %v2547
        %v2558 = vand.u32 %v2535, 65535
        %v2559 = vshrl.u32 %v2535, 16
        %v2560 = vand.u32 %v2530, 65535
        %v2561 = vshrl.u32 %v2530, 16
        %v2562 = vmul.u32 %v2558, %v2560
        %v2563 = vmul.u32 %v2558, %v2561
        %v2564 = vmul.u32 %v2559, %v2560
        %v2565 = vmul.u32 %v2559, %v2561
        %v2566 = vshll.u32 %v2563, 16
        %v2567 = vshrl.u32 %v2563, 16
        %v2568 = vshll.u32 %v2564, 16
        %v2569 = vshrl.u32 %v2564, 16
        %vm2570 = vc.u32 %v2562, %v2566
        %v2571 = vsel %vm2570, 1, 0
        %v2572 = vadd.s32 %v2562, %v2566
        %v2573 = vadd.s32 %v2565, %v2571
        %vm2574 = vc.u32 %v2572, %v2568
        %v2575 = vsel %vm2574, 1, 0
        %v2576 = vadd.s32 %v2572, %v2568
        %v2577 = vadd.s32 %v2573, %v2575
        %v2578 = vadd.s32 %v2577, %v2567
        %v2579 = vadd.s32 %v2578, %v2569
        %v2580 = vmul.u32 %v2535, %v2526
        %v2581 = vadd.s32 %v2557, %v2576
        %vm2582 = vc.u32 %v2557, %v2576
        %v2583 = vadd.s32 %v2579, 1
        %v2584 = vsel %vm2582, %v2583, %v2579
        %v2585 = vadd.s32 %v2580, %v2584
        %v2586 = vadd.s32 %v2585, 536870912
        %v2587 = vshrl.u32 %v2586, 30
        %v2588 = vshll.u32 %v2587, 30
        %v2589 = vsub.s32 %v2585, %v2588
        %vm2590 = vcmp.lt.s32.totalorder %v2589, 0
        %v2591 = vsub.s32 0, %v2589
        %v2592 = vsel %vm2590, %v2591, %v2589
        %v2593 = vclz %v2592
        %v2594 = vsub.s32 %v2593, 2
        %vm2595 = vcmp.gt.s32.totalorder 0, %v2594
        %v2596 = vsel %vm2595, 0, %v2594
        %v2597 = vsub.s32 32, %v2596
        %v2598 = vshll.u32 %v2589, %v2596
        %v2599 = vshrl.u32 %v2581, %v2597
        %v2600 = vor.u32 %v2598, %v2599
        %v2601 = vsub.s32 4294967266, %v2596
        %v2602 = vadd.s32 %v2601, 127
        %v2603 = vshll.u32 %v2602, 23
        %v2604 = vor.u32 4788187, %v2603
        %v2605 = vand.u32 2147483647, %v2604
        %v2607 = vcvt.s32.f32 %v2600
        %v2608 = vmul.f32 %v2607, %v2605
        %v2609 = vxor.u32 %v2608, 2147483648
        %v2610 = vsel %vm2489, %v2609, %v2608
        %v2611 = vsub.s32 4, %v2587
        %v2612 = vsel %vm2489, %v2611, %v2587
        %v2613 = vsel %vm2488, %v321, %v2610
        %v2614 = vsel %vm2488, 0, %v2612
        %v2615 = vmul.f32 %v2613, %v2613
        %v2616 = vmul.f32 %v2615, -0.001358992
        %v2617 = vadd.f32 %v2616, 0.041655596
        %v2618 = vmul.f32 %v2615, %v2617
        %v2619 = vadd.f32 %v2618, -0.4999988
        %v2620 = vmul.f32 %v2615, %v2619
        %v2621 = vadd.f32 1.0, %v2620
        %v2622 = vmul.f32 %v2613, %v2613
        %v2623 = vmul.f32 %v2622, -0.00019511016
        %v2624 = vadd.f32 %v2623, 0.008332121
        %v2625 = vmul.f32 %v2622, %v2624
        %v2626 = vadd.f32 %v2625, -0.16666654
        %v2627 = vmul.f32 %v2622, %v2626
        %v2628 = vadd.f32 %v2627, 1.0
        %v2629 = vmul.f32 %v2628, %v2613
        %vm2630 = vweird.f32 %v321
        %v2631 = vand.u32 %v2614, 3
        %vm2632 = vcmp.lt.s32.totalorder %v2631, 2
        %vm2633 = vcmp.eq.s32.totalorder %v2631, 0
        %v2634 = vxor.u32 %v2629, 2147483648
        %v2635 = vsel %vm2633, %v2621, %v2634
        %vm2636 = vcmp.eq.s32.totalorder %v2631, 2
        %v2637 = vxor.u32 %v2621, 2147483648
        %v2638 = vsel %vm2636, %v2637, %v2629
        %v2639 = vsel %vm2632, %v2635, %v2638
        %v2640 = vsel %vm2630, nan, %v2639
        %v2641 = vand.u32 2147483647, %v322
        %vm2642 = vcmp.le.f32.partialorder %v2641, 0.7853982
        %vm2643 = vcmp.lt.s32.totalorder %v322, 0
        %v2644 = vand.u32 %v322, 2139095040
        %v2645 = vshrl.u32 %v2644, 23
        %v2646 = vsub.s32 %v2645, 127
        %v2647 = vand.u32 2147483647, %v322
        %v2648 = vand.u32 %v2647, 8388607
        %v2649 = vor.u32 %v2648, 8388608
        %v2650 = vsub.s32 0, %v2649
        %v2651 = vadd.s32 %v2646, 1
        %vm2652 = vcmp.gt.s32.totalorder %v2651, 0
        %v2653 = vsel %vm2652, %v2651, 0
        %v2654 = vshrl.u32 %v2653, 5
        %v2655 = vand.u32 %v2653, 31
        %v2656 = vsub.s32 32, %v2655
        %v2657 = vshrl.u32 683565275, %v2656
        %v2658 = vshll.u32 683565275, %v2655
        %v2659 = vshrl.u32 2475754826, %v2656
        %v2660 = vor.u32 %v2658, %v2659
        %v2661 = vshll.u32 2475754826, %v2655
        %v2662 = vshrl.u32 2131351028, %v2656
        %v2663 = vor.u32 %v2661, %v2662
        %v2664 = vshll.u32 2131351028, %v2655
        %v2665 = vshrl.u32 2102212464, %v2656
        %v2666 = vor.u32 %v2664, %v2665
        %v2667 = vshll.u32 2102212464, %v2655
        %v2668 = vshrl.u32 920167782, %v2656
        %v2669 = vor.u32 %v2667, %v2668
        %v2670 = vshll.u32 920167782, %v2655
        %v2671 = vshrl.u32 1326507024, %v2656
        %v2672 = vor.u32 %v2670, %v2671
        %vm2673 = vcmp.lt.s32.totalorder %v2654, 1
        %vm2674 = vcmp.lt.s32.totalorder %v2654, 2
        %vm2675 = vcmp.lt.s32.totalorder %v2654, 3
        %vm2676 = vcmp.lt.s32.totalorder %v2654, 4
        %v2677 = vsel %vm2673, %v2657, %v2660
        %v2678 = vsel %vm2676, %v2666, 2102212464
        %v2679 = vsel %vm2675, %v2663, %v2678
        %v2680 = vsel %vm2674, %v2677, %v2679
        %v2681 = vsel %vm2673, %v2660, %v2663
        %v2682 = vsel %vm2676, %v2669, 920167782
        %v2683 = vsel %vm2675, %v2666, %v2682
        %v2684 = vsel %vm2674, %v2681, %v2683
        %v2685 = vsel %vm2673, %v2663, %v2666
        %v2686 = vsel %vm2676, %v2672, 1326507024
        %v2687 = vsel %vm2675, %v2669, %v2686
        %v2688 = vsel %vm2674, %v2685, %v2687
        %v2689 = vshll.u32 %v2649, 8
        %v2690 = vand.u32 %v2689, 65535
        %v2691 = vshrl.u32 %v2689, 16
        %v2692 = vand.u32 %v2688, 65535
        %v2693 = vshrl.u32 %v2688, 16
        %v2694 = vmul.u32 %v2690, %v2692
        %v2695 = vmul.u32 %v2690, %v2693
        %v2696 = vmul.u32 %v2691, %v2692
        %v2697 = vmul.u32 %v2691, %v2693
        %v2698 = vshll.u32 %v2695, 16
        %v2699 = vshrl.u32 %v2695, 16
        %v2700 = vshll.u32 %v2696, 16
        %v2701 = vshrl.u32 %v2696, 16
        %vm2702 = vc.u32 %v2694, %v2698
        %v2703 = vsel %vm2702, 1, 0
        %v2704 = vadd.s32 %v2694, %v2698
        %v2705 = vadd.s32 %v2697, %v2703
        %vm2706 = vc.u32 %v2704, %v2700
        %v2707 = vsel %vm2706, 1, 0
        %v2708 = vadd.s32 %v2704, %v2700
        %v2709 = vadd.s32 %v2705, %v2707
        %v2710 = vadd.s32 %v2709, %v2699
        %v2711 = vadd.s32 %v2710, %v2701
        %v2712 = vand.u32 %v2689, 65535
        %v2713 = vshrl.u32 %v2689, 16
        %v2714 = vand.u32 %v2684, 65535
        %v2715 = vshrl.u32 %v2684, 16
        %v2716 = vmul.u32 %v2712, %v2714
        %v2717 = vmul.u32 %v2712, %v2715
        %v2718 = vmul.u32 %v2713, %v2714
        %v2719 = vmul.u32 %v2713, %v2715
        %v2720 = vshll.u32 %v2717, 16
        %v2721 = vshrl.u32 %v2717, 16
        %v2722 = vshll.u32 %v2718, 16
        %v2723 = vshrl.u32 %v2718, 16
        %vm2724 = vc.u32 %v2716, %v2720
        %v2725 = vsel %vm2724, 1, 0
        %v2726 = vadd.s32 %v2716, %v2720
        %v2727 = vadd.s32 %v2719, %v2725
        %vm2728 = vc.u32 %v2726, %v2722
        %v2729 = vsel %vm2728, 1, 0
        %v2730 = vadd.s32 %v2726, %v2722
        %v2731 = vadd.s32 %v2727, %v2729
        %v2732 = vadd.s32 %v2731, %v2721
        %v2733 = vadd.s32 %v2732, %v2723
        %v2734 = vmul.u32 %v2689, %v2680
        %v2735 = vadd.s32 %v2711, %v2730
        %vm2736 = vc.u32 %v2711, %v2730
        %v2737 = vadd.s32 %v2733, 1
        %v2738 = vsel %vm2736, %v2737, %v2733
        %v2739 = vadd.s32 %v2734, %v2738
        %v2740 = vadd.s32 %v2739, 536870912
        %v2741 = vshrl.u32 %v2740, 30
        %v2742 = vshll.u32 %v2741, 30
        %v2743 = vsub.s32 %v2739, %v2742
        %vm2744 = vcmp.lt.s32.totalorder %v2743, 0
        %v2745 = vsub.s32 0, %v2743
        %v2746 = vsel %vm2744, %v2745, %v2743
        %v2747 = vclz %v2746
        %v2748 = vsub.s32 %v2747, 2
        %vm2749 = vcmp.gt.s32.totalorder 0, %v2748
        %v2750 = vsel %vm2749, 0, %v2748
        %v2751 = vsub.s32 32, %v2750
        %v2752 = vshll.u32 %v2743, %v2750
        %v2753 = vshrl.u32 %v2735, %v2751
        %v2754 = vor.u32 %v2752, %v2753
        %v2755 = vsub.s32 4294967266, %v2750
        %v2756 = vadd.s32 %v2755, 127
        %v2757 = vshll.u32 %v2756, 23
        %v2758 = vor.u32 4788187, %v2757
        %v2759 = vand.u32 2147483647, %v2758
        %v2761 = vcvt.s32.f32 %v2754
        %v2762 = vmul.f32 %v2761, %v2759
        %v2763 = vxor.u32 %v2762, 2147483648
        %v2764 = vsel %vm2643, %v2763, %v2762
        %v2765 = vsub.s32 4, %v2741
        %v2766 = vsel %vm2643, %v2765, %v2741
        %v2767 = vsel %vm2642, %v322, %v2764
        %v2768 = vsel %vm2642, 0, %v2766
        %v2769 = vmul.f32 %v2767, %v2767
        %v2770 = vmul.f32 %v2769, -0.001358992
        %v2771 = vadd.f32 %v2770, 0.041655596
        %v2772 = vmul.f32 %v2769, %v2771
        %v2773 = vadd.f32 %v2772, -0.4999988
        %v2774 = vmul.f32 %v2769, %v2773
        %v2775 = vadd.f32 1.0, %v2774
        %v2776 = vmul.f32 %v2767, %v2767
        %v2777 = vmul.f32 %v2776, -0.00019511016
        %v2778 = vadd.f32 %v2777, 0.008332121
        %v2779 = vmul.f32 %v2776, %v2778
        %v2780 = vadd.f32 %v2779, -0.16666654
        %v2781 = vmul.f32 %v2776, %v2780
        %v2782 = vadd.f32 %v2781, 1.0
        %v2783 = vmul.f32 %v2782, %v2767
        %vm2784 = vweird.f32 %v322
        %v2785 = vand.u32 %v2768, 3
        %vm2786 = vcmp.lt.s32.totalorder %v2785, 2
        %vm2787 = vcmp.eq.s32.totalorder %v2785, 0
        %v2788 = vxor.u32 %v2783, 2147483648
        %v2789 = vsel %vm2787, %v2775, %v2788
        %vm2790 = vcmp.eq.s32.totalorder %v2785, 2
        %v2791 = vxor.u32 %v2775, 2147483648
        %v2792 = vsel %vm2790, %v2791, %v2783
        %v2793 = vsel %vm2786, %v2789, %v2792
        %v2794 = vsel %vm2784, nan, %v2793
        %v2797 = vrot.slane %v477, 5
        %v2798 = vrot.slane %v632, 5
        %v2803 = vrot.slane %v1716, 2
        %v2804 = vrot.slane %v1870, 2
        %v2807 = vrot.slane %v477, 2
        %v2808 = vrot.slane %v632, 2
        %v2811 = vrot.slane %v1716, 7
        %v2812 = vrot.slane %v1870, 7
        %v2817 = vrot.slane %v477, 7
        %v2818 = vrot.slane %v632, 7
        %v2819 = vrot.slane %v787, 7
        %v2820 = vsel %vm306, %v2817, %v2819
        %v2821 = vrot.slane %v942, 7
        %v2822 = vsel %vm306, %v2818, %v2821
        %v2829 = vrot.slane %v1716, 4
        %v2830 = vrot.slane %v2024, 4
        %v2831 = vsel %vm309, %v2829, %v2830
        %v2832 = vrot.slane %v1870, 4
        %v2833 = vrot.slane %v2178, 4
        %v2834 = vsel %vm309, %v2832, %v2833
        %v2837 = vrot.slane %v787, 4
        %v2838 = vrot.slane %v942, 4
        %v2841 = vrot.slane %v2024, 1
        %v2842 = vrot.slane %v2178, 1
        %v2845 = vrot.slane %v787, 1
        %v2846 = vrot.slane %v942, 1
        %v2849 = vrot.slane %v2024, 6
        %v2850 = vrot.slane %v2178, 6
        %v2855 = vrot.slane %v787, 6
        %v2856 = vrot.slane %v1097, 6
        %v2857 = vsel %vm315, %v2855, %v2856
        %v2858 = vrot.slane %v942, 6
        %v2859 = vrot.slane %v1252, 6
        %v2860 = vsel %vm315, %v2858, %v2859
        %v2865 = vrot.slane %v2024, 3
        %v2866 = vrot.slane %v2332, 3
        %v2867 = vsel %vm318, %v2865, %v2866
        %v2868 = vrot.slane %v2178, 3
        %v2869 = vrot.slane %v2486, 3
        %v2870 = vsel %vm318, %v2868, %v2869
        %v2873 = vrot.slane %v1097, 3
        %v2874 = vrot.slane %v1252, 3
        %v2877 = vsel %vm300, %v186, %v2797
        %v2878 = vsel %vm300, %v218, %v2798
        %v2879 = vsel %vm303, %v2877, %v2803
        %v2880 = vsel %vm303, %v2878, %v2804
        %v2881 = vsel %vm306, %v2803, %v2807
        %v2882 = vsel %vm306, %v2804, %v2808
        %v2883 = vsel %vm309, %v2881, %v2811
        %v2884 = vsel %vm309, %v2882, %v2812
        %v2885 = vsel %vm312, %v2883, %v2817
        %v2886 = vsel %vm312, %v2884, %v2818
        %v2887 = vsel %vm315, %v2820, %v2831
        %v2888 = vsel %vm315, %v2822, %v2834
        %v2889 = vsel %vm318, %v2887, %v2837
        %v2890 = vsel %vm318, %v2888, %v2838
        %v2891 = vsel %vm300, %v2841, %v2845
        %v2892 = vsel %vm300, %v2842, %v2846
        %v2893 = vsel %vm303, %v2891, %v2849
        %v2894 = vsel %vm303, %v2892, %v2850
        %v2895 = vsel %vm306, %v2849, %v2857
        %v2896 = vsel %vm306, %v2850, %v2860
        %v2897 = vsel %vm309, %v2895, %v2867
        %v2898 = vsel %vm309, %v2896, %v2870
        %v2899 = vsel %vm312, %v2897, %v2873
        %v2900 = vsel %vm312, %v2898, %v2874
        %v2901 = vsel %vm315, %v2873, %v2332
        %v2902 = vsel %vm315, %v2874, %v2486
        %v2903 = vsel %vm318, %v2901, %v1097
        %v2904 = vsel %vm318, %v2902, %v1252
        %v2905 = vrot.slane %v2332, 5
        %v2906 = vrot.slane %v2486, 5
        %v2911 = vrot.slane %v1407, 5
        %v2912 = vrot.slane %v1562, 5
        %v2917 = vrot.slane %v2640, 2
        %v2918 = vrot.slane %v2794, 2
        %v2921 = vrot.slane %v1407, 2
        %v2922 = vrot.slane %v1562, 2
        %v2925 = vrot.slane %v2640, 7
        %v2926 = vrot.slane %v2794, 7
        %v2929 = vsel %vm300, %v2905, %v2911
        %v2930 = vsel %vm300, %v2906, %v2912
        %v2931 = vsel %vm303, %v2929, %v2917
        %v2932 = vsel %vm303, %v2930, %v2918
        %v2933 = vsel %vm306, %v2917, %v2921
        %v2934 = vsel %vm306, %v2918, %v2922
        %v2935 = vsel %vm309, %v2933, %v2925
        %v2936 = vsel %vm309, %v2934, %v2926
        %2937 = vxpose.xlu0.b32.start [1/16] %v2879, 128
        %2938 = vxpose.xlu0.b32.cont [2/16] %v2885, 128
        %2939 = vxpose.xlu0.b32.cont [3/16] %v2889, 128
        %2940 = vxpose.xlu0.b32.cont [4/16] %v2893, 128
        %2941 = vxpose.xlu0.b32.cont [5/16] %v2899, 128
        %2942 = vxpose.xlu0.b32.cont [6/16] %v2903, 128
        %2943 = vxpose.xlu0.b32.cont [7/16] %v2931, 128
        %2944 = vxpose.xlu0.b32.cont [8/16] %v2935, 128
        %2945 = vxpose.xlu0.b32.cont [9/16] 0.0, 128
        %2946 = vxpose.xlu0.b32.cont [10/16] 0.0, 128
        %2947 = vxpose.xlu0.b32.cont [11/16] 0.0, 128
        %2948 = vxpose.xlu0.b32.cont [12/16] 0.0, 128
        %2949 = vxpose.xlu0.b32.cont [13/16] 0.0, 128
        %2950 = vxpose.xlu0.b32.cont [14/16] 0.0, 128
        %2951 = vxpose.xlu0.b32.cont [15/16] 0.0, 128
        %2952 = vxpose.xlu0.b32.end [16/16] 0.0, 128
        %v2953 = vpop.trf.xlu0
        %v2954 = vpop.trf.xlu0
        %v2955 = vpop.trf.xlu0
        %v2956 = vpop.trf.xlu0
        %v2957 = vpop.trf.xlu0
        %v2958 = vpop.trf.xlu0
        %v2959 = vpop.trf.xlu0
        %v2960 = vpop.trf.xlu0
        %v2961 = vpop.trf.xlu0
        %v2962 = vpop.trf.xlu0
        %v2963 = vpop.trf.xlu0
        %v2964 = vpop.trf.xlu0
        %v2965 = vpop.trf.xlu0
        %v2966 = vpop.trf.xlu0
        %v2967 = vpop.trf.xlu0
        %v2968 = vpop.trf.xlu0
        %2969 = vxpose.xlu0.b32.start [1/16] %v2880, 128
        %2970 = vxpose.xlu0.b32.cont [2/16] %v2886, 128
        %2971 = vxpose.xlu0.b32.cont [3/16] %v2890, 128
        %2972 = vxpose.xlu0.b32.cont [4/16] %v2894, 128
        %2973 = vxpose.xlu0.b32.cont [5/16] %v2900, 128
        %2974 = vxpose.xlu0.b32.cont [6/16] %v2904, 128
        %2975 = vxpose.xlu0.b32.cont [7/16] %v2932, 128
        %2976 = vxpose.xlu0.b32.cont [8/16] %v2936, 128
        %2977 = vxpose.xlu0.b32.cont [9/16] 0.0, 128
        %2978 = vxpose.xlu0.b32.cont [10/16] 0.0, 128
        %2979 = vxpose.xlu0.b32.cont [11/16] 0.0, 128
        %2980 = vxpose.xlu0.b32.cont [12/16] 0.0, 128
        %2981 = vxpose.xlu0.b32.cont [13/16] 0.0, 128
        %2982 = vxpose.xlu0.b32.cont [14/16] 0.0, 128
        %2983 = vxpose.xlu0.b32.cont [15/16] 0.0, 128
        %2984 = vxpose.xlu0.b32.end [16/16] 0.0, 128
        %v2985 = vpop.trf.xlu0
        %v2986 = vpop.trf.xlu0
        %v2987 = vpop.trf.xlu0
        %v2988 = vpop.trf.xlu0
        %v2989 = vpop.trf.xlu0
        %v2990 = vpop.trf.xlu0
        %v2991 = vpop.trf.xlu0
        %v2992 = vpop.trf.xlu0
        %v2993 = vpop.trf.xlu0
        %v2994 = vpop.trf.xlu0
        %v2995 = vpop.trf.xlu0
        %v2996 = vpop.trf.xlu0
        %v2997 = vpop.trf.xlu0
        %v2998 = vpop.trf.xlu0
        %v2999 = vpop.trf.xlu0
        %v3000 = vpop.trf.xlu0
        %vm3001 = vcmask 515072
        %3002 = vst.msk [vmem:[%s118] sm:$0xff] %vm3001, %v2953
        %3003 = vst.msk [vmem:[%s118 + $0x8] sm:$0xff] %vm3001, %v2954
        %3004 = vst.msk [vmem:[%s118 + $0x10] sm:$0xff] %vm3001, %v2955
        %3005 = vst.msk [vmem:[%s118 + $0x18] sm:$0xff] %vm3001, %v2956
        %3006 = vst.msk [vmem:[%s118 + $0x20] sm:$0xff] %vm3001, %v2957
        %3007 = vst.msk [vmem:[%s118 + $0x28] sm:$0xff] %vm3001, %v2958
        %3008 = vst.msk [vmem:[%s118 + $0x30] sm:$0xff] %vm3001, %v2959
        %3009 = vst.msk [vmem:[%s118 + $0x38] sm:$0xff] %vm3001, %v2960
        %3010 = vst.msk [vmem:[%s118 + $0x40] sm:$0xff] %vm3001, %v2961
        %3011 = vst.msk [vmem:[%s118 + $0x48] sm:$0xff] %vm3001, %v2962
        %3012 = vst.msk [vmem:[%s118 + $0x50] sm:$0xff] %vm3001, %v2963
        %3013 = vst.msk [vmem:[%s118 + $0x58] sm:$0xff] %vm3001, %v2964
        %3014 = vst.msk [vmem:[%s118 + $0x60] sm:$0xff] %vm3001, %v2965
        %3015 = vst.msk [vmem:[%s118 + $0x68] sm:$0xff] %vm3001, %v2966
        %3016 = vst.msk [vmem:[%s118 + $0x70] sm:$0xff] %vm3001, %v2967
        %3017 = vst.msk [vmem:[%s118 + $0x78] sm:$0xff] %vm3001, %v2968
        %3018 = vst.msk [vmem:[%s118 + $0x80] sm:$0xff] %vm3001, %v2985
        %3019 = vst.msk [vmem:[%s118 + $0x88] sm:$0xff] %vm3001, %v2986
        %3020 = vst.msk [vmem:[%s118 + $0x90] sm:$0xff] %vm3001, %v2987
        %3021 = vst.msk [vmem:[%s118 + $0x98] sm:$0xff] %vm3001, %v2988
        %3022 = vst.msk [vmem:[%s118 + $0xa0] sm:$0xff] %vm3001, %v2989
        %3023 = vst.msk [vmem:[%s118 + $0xa8] sm:$0xff] %vm3001, %v2990
        %3024 = vst.msk [vmem:[%s118 + $0xb0] sm:$0xff] %vm3001, %v2991
        %3025 = vst.msk [vmem:[%s118 + $0xb8] sm:$0xff] %vm3001, %v2992
        %3026 = vst.msk [vmem:[%s118 + $0xc0] sm:$0xff] %vm3001, %v2993
        %3027 = vst.msk [vmem:[%s118 + $0xc8] sm:$0xff] %vm3001, %v2994
        %3028 = vst.msk [vmem:[%s118 + $0xd0] sm:$0xff] %vm3001, %v2995
        %3029 = vst.msk [vmem:[%s118 + $0xd8] sm:$0xff] %vm3001, %v2996
        %3030 = vst.msk [vmem:[%s118 + $0xe0] sm:$0xff] %vm3001, %v2997
        %3031 = vst.msk [vmem:[%s118 + $0xe8] sm:$0xff] %vm3001, %v2998
        %3032 = vst.msk [vmem:[%s118 + $0xf0] sm:$0xff] %vm3001, %v2999
        %3033 = vst.msk [vmem:[%s118 + $0xf8] sm:$0xff] %vm3001, %v3000
        %s3034 = sand.u32 %s46, 1
        %s3035 = sand.u32 %s46, 1
        %s3036 = smul.addr %s3035, 256
        %s3037 = scalar_lea.vmem [#allocation2], %s3036
        // Predicated region
        $region25: #{tpu_custom_call.1} parent=23 // pred_check
          %p3038 = pneg %p56
        $region26: #{tpu_custom_call.1} parent=23 // pred_check_branch
          %3040 = sbr.rel (%p3038) target = $region28
        $region27: #{tpu_custom_call.1} parent=23 // pred_region
          %s3041 = smul.u32 32, %s12
          %s3042 = ssub.s32 84, %s3041
          %p3043 = scmp.lt.s32.totalorder %s3042, 32
          %s3044 = scalar_select %p3043, %s3042, 32
          %s3045 = smul.u32 8, %s3044
          %p3046 = scmp.ne.s32.totalorder 0, %s3045
          %s3047 = smul.addr %s3041, 8
          %s3048 = scalar_lea.vmem %s1, %s3047
          // Predicated region
          $region29: #{tpu_custom_call.1} parent=27 // pred_check
            %p3049 = pneg %p3046
          $region30: #{tpu_custom_call.1} parent=27 // pred_check_branch
            %3051 = sbr.rel (%p3049) target = $region32
          $region31: #{tpu_custom_call.1} parent=27 // pred_region
            // Predicated region
            $region33: #{tpu_custom_call.1} parent=31 // pred_check
              _
            $region34: #{tpu_custom_call.1} parent=31 // pred_check_branch
              %3053 = sbr.rel (0) target = $region36
            $region35: #{tpu_custom_call.1} parent=31 // pred_region
              // Predicated region
              $region55: #{tpu_custom_call.1} parent=35 // pred_check
                _
              $region56: #{tpu_custom_call.1} parent=35 // pred_check_branch
                %3165 = sbr.rel (0) target = $region58
              $region57: #{tpu_custom_call.1} parent=35 // pred_region
                %s3166 = sshrl.u32 %s3044, 5
                // While loop
                $region59: #{tpu_custom_call.1} parent=57 // loop_pre_header
                  _
                $region60: #{tpu_custom_call.1} parent=57 // loop_header
                  %s3168 = sphi 0, %s3170
                  %p3169 = scmp.ge.s32.totalorder %s3168, %s3166
                  %s3173 = sphi 0, %s3242
                  %s3174 = sphi %s3037, %s3245
                  %s3175 = sphi %s3048, %s3246
                $region61: #{tpu_custom_call.1} parent=57 // loop_header_branch
                  %3172 = sbr.rel (%p3169) target = $region65
                $region62: #{tpu_custom_call.1} parent=57 // loop_body
                  %v3176 = vld [vmem:[%s3174] sm:$0xff]
                  %3177 = vst [vmem:[%s3175] sm:$0xff] %v3176
                  %v3178 = vld [vmem:[%s3174 + $0x8] sm:$0xff]
                  %3179 = vst [vmem:[%s3175 + $0x8] sm:$0xff] %v3178
                  %v3180 = vld [vmem:[%s3174 + $0x10] sm:$0xff]
                  %3181 = vst [vmem:[%s3175 + $0x10] sm:$0xff] %v3180
                  %v3182 = vld [vmem:[%s3174 + $0x18] sm:$0xff]
                  %3183 = vst [vmem:[%s3175 + $0x18] sm:$0xff] %v3182
                  %v3184 = vld [vmem:[%s3174 + $0x20] sm:$0xff]
                  %3185 = vst [vmem:[%s3175 + $0x20] sm:$0xff] %v3184
                  %v3186 = vld [vmem:[%s3174 + $0x28] sm:$0xff]
                  %3187 = vst [vmem:[%s3175 + $0x28] sm:$0xff] %v3186
                  %v3188 = vld [vmem:[%s3174 + $0x30] sm:$0xff]
                  %3189 = vst [vmem:[%s3175 + $0x30] sm:$0xff] %v3188
                  %v3190 = vld [vmem:[%s3174 + $0x38] sm:$0xff]
                  %3191 = vst [vmem:[%s3175 + $0x38] sm:$0xff] %v3190
                  %v3192 = vld [vmem:[%s3174 + $0x40] sm:$0xff]
                  %3193 = vst [vmem:[%s3175 + $0x40] sm:$0xff] %v3192
                  %v3194 = vld [vmem:[%s3174 + $0x48] sm:$0xff]
                  %3195 = vst [vmem:[%s3175 + $0x48] sm:$0xff] %v3194
                  %v3196 = vld [vmem:[%s3174 + $0x50] sm:$0xff]
                  %3197 = vst [vmem:[%s3175 + $0x50] sm:$0xff] %v3196
                  %v3198 = vld [vmem:[%s3174 + $0x58] sm:$0xff]
                  %3199 = vst [vmem:[%s3175 + $0x58] sm:$0xff] %v3198
                  %v3200 = vld [vmem:[%s3174 + $0x60] sm:$0xff]
                  %3201 = vst [vmem:[%s3175 + $0x60] sm:$0xff] %v3200
                  %v3202 = vld [vmem:[%s3174 + $0x68] sm:$0xff]
                  %3203 = vst [vmem:[%s3175 + $0x68] sm:$0xff] %v3202
                  %v3204 = vld [vmem:[%s3174 + $0x70] sm:$0xff]
                  %3205 = vst [vmem:[%s3175 + $0x70] sm:$0xff] %v3204
                  %v3206 = vld [vmem:[%s3174 + $0x78] sm:$0xff]
                  %3207 = vst [vmem:[%s3175 + $0x78] sm:$0xff] %v3206
                  %v3208 = vld [vmem:[%s3174 + $0x80] sm:$0xff]
                  %3209 = vst [vmem:[%s3175 + $0x80] sm:$0xff] %v3208
                  %v3210 = vld [vmem:[%s3174 + $0x88] sm:$0xff]
                  %3211 = vst [vmem:[%s3175 + $0x88] sm:$0xff] %v3210
                  %v3212 = vld [vmem:[%s3174 + $0x90] sm:$0xff]
                  %3213 = vst [vmem:[%s3175 + $0x90] sm:$0xff] %v3212
                  %v3214 = vld [vmem:[%s3174 + $0x98] sm:$0xff]
                  %3215 = vst [vmem:[%s3175 + $0x98] sm:$0xff] %v3214
                  %v3216 = vld [vmem:[%s3174 + $0xa0] sm:$0xff]
                  %3217 = vst [vmem:[%s3175 + $0xa0] sm:$0xff] %v3216
                  %v3218 = vld [vmem:[%s3174 + $0xa8] sm:$0xff]
                  %3219 = vst [vmem:[%s3175 + $0xa8] sm:$0xff] %v3218
                  %v3220 = vld [vmem:[%s3174 + $0xb0] sm:$0xff]
                  %3221 = vst [vmem:[%s3175 + $0xb0] sm:$0xff] %v3220
                  %v3222 = vld [vmem:[%s3174 + $0xb8] sm:$0xff]
                  %3223 = vst [vmem:[%s3175 + $0xb8] sm:$0xff] %v3222
                  %v3224 = vld [vmem:[%s3174 + $0xc0] sm:$0xff]
                  %3225 = vst [vmem:[%s3175 + $0xc0] sm:$0xff] %v3224
                  %v3226 = vld [vmem:[%s3174 + $0xc8] sm:$0xff]
                  %3227 = vst [vmem:[%s3175 + $0xc8] sm:$0xff] %v3226
                  %v3228 = vld [vmem:[%s3174 + $0xd0] sm:$0xff]
                  %3229 = vst [vmem:[%s3175 + $0xd0] sm:$0xff] %v3228
                  %v3230 = vld [vmem:[%s3174 + $0xd8] sm:$0xff]
                  %3231 = vst [vmem:[%s3175 + $0xd8] sm:$0xff] %v3230
                  %v3232 = vld [vmem:[%s3174 + $0xe0] sm:$0xff]
                  %3233 = vst [vmem:[%s3175 + $0xe0] sm:$0xff] %v3232
                  %v3234 = vld [vmem:[%s3174 + $0xe8] sm:$0xff]
                  %3235 = vst [vmem:[%s3175 + $0xe8] sm:$0xff] %v3234
                  %v3236 = vld [vmem:[%s3174 + $0xf0] sm:$0xff]
                  %3237 = vst [vmem:[%s3175 + $0xf0] sm:$0xff] %v3236
                  %v3238 = vld [vmem:[%s3174 + $0xf8] sm:$0xff]
                  %3239 = vst [vmem:[%s3175 + $0xf8] sm:$0xff] %v3238
                  %s3240 = sadd.s32 1, %s3173
                  %p3241 = scmp.ge.s32.totalorder %s3240, %s3166
                  %s3242 = scalar_select %p3241, 0, %s3240
                  %s3243 = smul.u32 %s3242, 256
                  %s3244 = smul.u32 %s3242, 256
                  %s3245 = scalar_lea.vmem %s3037, %s3243 [#allocation2]
                  %s3246 = scalar_lea.vmem %s3048, %s3244
                $region63: #{tpu_custom_call.1} parent=57 // loop_footer
                  %s3170 = sadd.s32 %s3168, 1
                $region64: #{tpu_custom_call.1} parent=57 // loop_footer_branch
                  %3167 = sbr.rel target = $region60
                $region65: #{tpu_custom_call.1} parent=57 // loop_exit
                  _
                %s3247 = sshrl.u32 %s3044, 5
                %s3248 = sand.u32 %s3044, 31
                %s3249 = smul.u32 %s3247, 32
                %s3250 = smul.u32 8, %s3249
                %s3251 = scalar_lea.vmem %s3037, %s3250 [#allocation2]
                %s3252 = smul.u32 8, %s3249
                %s3253 = scalar_lea.vmem %s3048, %s3252
                // While loop
                $region66: #{tpu_custom_call.1} parent=57 // loop_pre_header
                  _
                $region67: #{tpu_custom_call.1} parent=57 // loop_header
                  %s3255 = sphi 0, %s3257
                  %p3256 = scmp.ge.s32.totalorder %s3255, %s3248
                  %s3260 = sphi 0, %s3267
                  %s3261 = sphi %s3251, %s3270
                  %s3262 = sphi %s3253, %s3271
                $region68: #{tpu_custom_call.1} parent=57 // loop_header_branch
                  %3259 = sbr.rel (%p3256) target = $region72
                $region69: #{tpu_custom_call.1} parent=57 // loop_body
                  %v3263 = vld [vmem:[%s3261] sm:$0xff]
                  %3264 = vst [vmem:[%s3262] sm:$0xff] %v3263
                  %s3265 = sadd.s32 1, %s3260
                  %p3266 = scmp.ge.s32.totalorder %s3265, %s3248
                  %s3267 = scalar_select %p3266, 0, %s3265
                  %s3268 = smul.u32 %s3267, 8
                  %s3269 = smul.u32 %s3267, 8
                  %s3270 = scalar_lea.vmem %s3251, %s3268 [#allocation2]
                  %s3271 = scalar_lea.vmem %s3253, %s3269
                $region70: #{tpu_custom_call.1} parent=57 // loop_footer
                  %s3257 = sadd.s32 %s3255, 1
                $region71: #{tpu_custom_call.1} parent=57 // loop_footer_branch
                  %3254 = sbr.rel target = $region67
                $region72: #{tpu_custom_call.1} parent=57 // loop_exit
                  _
              $region58: #{tpu_custom_call.1} parent=35 // pred_fallthru
                _
              // Predicated region
              $region73: #{tpu_custom_call.1} parent=35 // pred_check
                _
              $region74: #{tpu_custom_call.1} parent=35 // pred_check_branch
                %3273 = sbr.rel target = $region76
              $region75: #{tpu_custom_call.1} parent=35 // pred_region
                _
              $region76: #{tpu_custom_call.1} parent=35 // pred_fallthru
                _
            $region36: #{tpu_custom_call.1} parent=31 // pred_fallthru
              _
            // Predicated region
            $region37: #{tpu_custom_call.1} parent=31 // pred_check
              _
            $region38: #{tpu_custom_call.1} parent=31 // pred_check_branch
              %3055 = sbr.rel target = $region40
            $region39: #{tpu_custom_call.1} parent=31 // pred_region
              %s3057 = ssub.s32 256, 1
              %s3058 = sshrl.u32 %s3044, 5
              // While loop
              $region41: #{tpu_custom_call.1} parent=39 // loop_pre_header
                _
              $region42: #{tpu_custom_call.1} parent=39 // loop_header
                %s3060 = sphi 0, %s3062
                %p3061 = scmp.ge.s32.totalorder %s3060, %s3058
                %s3065 = sphi 0, %s3134
                %s3066 = sphi %s3037, %s3137
                %s3067 = sphi %s3048, %s3138
              $region43: #{tpu_custom_call.1} parent=39 // loop_header_branch
                %3064 = sbr.rel (%p3061) target = $region47
              $region44: #{tpu_custom_call.1} parent=39 // loop_body
                %v3068 = vld [vmem:[%s3066] sm:%s3057]
                %3069 = vst [vmem:[%s3067] sm:%s3057] %v3068
                %v3070 = vld [vmem:[%s3066 + $0x8] sm:%s3057]
                %3071 = vst [vmem:[%s3067 + $0x8] sm:%s3057] %v3070
                %v3072 = vld [vmem:[%s3066 + $0x10] sm:%s3057]
                %3073 = vst [vmem:[%s3067 + $0x10] sm:%s3057] %v3072
                %v3074 = vld [vmem:[%s3066 + $0x18] sm:%s3057]
                %3075 = vst [vmem:[%s3067 + $0x18] sm:%s3057] %v3074
                %v3076 = vld [vmem:[%s3066 + $0x20] sm:%s3057]
                %3077 = vst [vmem:[%s3067 + $0x20] sm:%s3057] %v3076
                %v3078 = vld [vmem:[%s3066 + $0x28] sm:%s3057]
                %3079 = vst [vmem:[%s3067 + $0x28] sm:%s3057] %v3078
                %v3080 = vld [vmem:[%s3066 + $0x30] sm:%s3057]
                %3081 = vst [vmem:[%s3067 + $0x30] sm:%s3057] %v3080
                %v3082 = vld [vmem:[%s3066 + $0x38] sm:%s3057]
                %3083 = vst [vmem:[%s3067 + $0x38] sm:%s3057] %v3082
                %v3084 = vld [vmem:[%s3066 + $0x40] sm:%s3057]
                %3085 = vst [vmem:[%s3067 + $0x40] sm:%s3057] %v3084
                %v3086 = vld [vmem:[%s3066 + $0x48] sm:%s3057]
                %3087 = vst [vmem:[%s3067 + $0x48] sm:%s3057] %v3086
                %v3088 = vld [vmem:[%s3066 + $0x50] sm:%s3057]
                %3089 = vst [vmem:[%s3067 + $0x50] sm:%s3057] %v3088
                %v3090 = vld [vmem:[%s3066 + $0x58] sm:%s3057]
                %3091 = vst [vmem:[%s3067 + $0x58] sm:%s3057] %v3090
                %v3092 = vld [vmem:[%s3066 + $0x60] sm:%s3057]
                %3093 = vst [vmem:[%s3067 + $0x60] sm:%s3057] %v3092
                %v3094 = vld [vmem:[%s3066 + $0x68] sm:%s3057]
                %3095 = vst [vmem:[%s3067 + $0x68] sm:%s3057] %v3094
                %v3096 = vld [vmem:[%s3066 + $0x70] sm:%s3057]
                %3097 = vst [vmem:[%s3067 + $0x70] sm:%s3057] %v3096
                %v3098 = vld [vmem:[%s3066 + $0x78] sm:%s3057]
                %3099 = vst [vmem:[%s3067 + $0x78] sm:%s3057] %v3098
                %v3100 = vld [vmem:[%s3066 + $0x80] sm:%s3057]
                %3101 = vst [vmem:[%s3067 + $0x80] sm:%s3057] %v3100
                %v3102 = vld [vmem:[%s3066 + $0x88] sm:%s3057]
                %3103 = vst [vmem:[%s3067 + $0x88] sm:%s3057] %v3102
                %v3104 = vld [vmem:[%s3066 + $0x90] sm:%s3057]
                %3105 = vst [vmem:[%s3067 + $0x90] sm:%s3057] %v3104
                %v3106 = vld [vmem:[%s3066 + $0x98] sm:%s3057]
                %3107 = vst [vmem:[%s3067 + $0x98] sm:%s3057] %v3106
                %v3108 = vld [vmem:[%s3066 + $0xa0] sm:%s3057]
                %3109 = vst [vmem:[%s3067 + $0xa0] sm:%s3057] %v3108
                %v3110 = vld [vmem:[%s3066 + $0xa8] sm:%s3057]
                %3111 = vst [vmem:[%s3067 + $0xa8] sm:%s3057] %v3110
                %v3112 = vld [vmem:[%s3066 + $0xb0] sm:%s3057]
                %3113 = vst [vmem:[%s3067 + $0xb0] sm:%s3057] %v3112
                %v3114 = vld [vmem:[%s3066 + $0xb8] sm:%s3057]
                %3115 = vst [vmem:[%s3067 + $0xb8] sm:%s3057] %v3114
                %v3116 = vld [vmem:[%s3066 + $0xc0] sm:%s3057]
                %3117 = vst [vmem:[%s3067 + $0xc0] sm:%s3057] %v3116
                %v3118 = vld [vmem:[%s3066 + $0xc8] sm:%s3057]
                %3119 = vst [vmem:[%s3067 + $0xc8] sm:%s3057] %v3118
                %v3120 = vld [vmem:[%s3066 + $0xd0] sm:%s3057]
                %3121 = vst [vmem:[%s3067 + $0xd0] sm:%s3057] %v3120
                %v3122 = vld [vmem:[%s3066 + $0xd8] sm:%s3057]
                %3123 = vst [vmem:[%s3067 + $0xd8] sm:%s3057] %v3122
                %v3124 = vld [vmem:[%s3066 + $0xe0] sm:%s3057]
                %3125 = vst [vmem:[%s3067 + $0xe0] sm:%s3057] %v3124
                %v3126 = vld [vmem:[%s3066 + $0xe8] sm:%s3057]
                %3127 = vst [vmem:[%s3067 + $0xe8] sm:%s3057] %v3126
                %v3128 = vld [vmem:[%s3066 + $0xf0] sm:%s3057]
                %3129 = vst [vmem:[%s3067 + $0xf0] sm:%s3057] %v3128
                %v3130 = vld [vmem:[%s3066 + $0xf8] sm:%s3057]
                %3131 = vst [vmem:[%s3067 + $0xf8] sm:%s3057] %v3130
                %s3132 = sadd.s32 1, %s3065
                %p3133 = scmp.ge.s32.totalorder %s3132, %s3058
                %s3134 = scalar_select %p3133, 0, %s3132
                %s3135 = smul.u32 %s3134, 256
                %s3136 = smul.u32 %s3134, 256
                %s3137 = scalar_lea.vmem %s3037, %s3135 [#allocation2]
                %s3138 = scalar_lea.vmem %s3048, %s3136
              $region45: #{tpu_custom_call.1} parent=39 // loop_footer
                %s3062 = sadd.s32 %s3060, 1
              $region46: #{tpu_custom_call.1} parent=39 // loop_footer_branch
                %3059 = sbr.rel target = $region42
              $region47: #{tpu_custom_call.1} parent=39 // loop_exit
                _
              %s3139 = sshrl.u32 %s3044, 5
              %s3140 = sand.u32 %s3044, 31
              %s3141 = smul.u32 %s3139, 32
              %s3142 = smul.u32 8, %s3141
              %s3143 = scalar_lea.vmem %s3037, %s3142 [#allocation2]
              %s3144 = smul.u32 8, %s3141
              %s3145 = scalar_lea.vmem %s3048, %s3144
              // While loop
              $region48: #{tpu_custom_call.1} parent=39 // loop_pre_header
                _
              $region49: #{tpu_custom_call.1} parent=39 // loop_header
                %s3147 = sphi 0, %s3149
                %p3148 = scmp.ge.s32.totalorder %s3147, %s3140
                %s3152 = sphi 0, %s3159
                %s3153 = sphi %s3143, %s3162
                %s3154 = sphi %s3145, %s3163
              $region50: #{tpu_custom_call.1} parent=39 // loop_header_branch
                %3151 = sbr.rel (%p3148) target = $region54
              $region51: #{tpu_custom_call.1} parent=39 // loop_body
                %v3155 = vld [vmem:[%s3153] sm:%s3057]
                %3156 = vst [vmem:[%s3154] sm:%s3057] %v3155
                %s3157 = sadd.s32 1, %s3152
                %p3158 = scmp.ge.s32.totalorder %s3157, %s3140
                %s3159 = scalar_select %p3158, 0, %s3157
                %s3160 = smul.u32 %s3159, 8
                %s3161 = smul.u32 %s3159, 8
                %s3162 = scalar_lea.vmem %s3143, %s3160 [#allocation2]
                %s3163 = scalar_lea.vmem %s3145, %s3161
              $region52: #{tpu_custom_call.1} parent=39 // loop_footer
                %s3149 = sadd.s32 %s3147, 1
              $region53: #{tpu_custom_call.1} parent=39 // loop_footer_branch
                %3146 = sbr.rel target = $region49
              $region54: #{tpu_custom_call.1} parent=39 // loop_exit
                _
            $region40: #{tpu_custom_call.1} parent=31 // pred_fallthru
              _
          $region32: #{tpu_custom_call.1} parent=27 // pred_fallthru
            _
          %3274 = vnop
        $region28: #{tpu_custom_call.1} parent=23 // pred_fallthru
          _
      $region24: #{tpu_custom_call.1} parent=5 // pred_fallthru
        _
      %p3275 = scmp.le.s32.totalorder 2, %s7
      // Predicated region
      $region77: #{tpu_custom_call.1} parent=5 // pred_check
        %p3276 = pneg %p3275
      $region78: #{tpu_custom_call.1} parent=5 // pred_check_branch
        %3278 = sbr.rel (%p3276) target = $region80
      $region79: #{tpu_custom_call.1} parent=5 // pred_region
        %s3279 = ssub.s32 %s7, 2
        // Predicated region
        $region81: #{tpu_custom_call.1} parent=79 // pred_check
          %p3280 = pneg %p62
        $region82: #{tpu_custom_call.1} parent=79 // pred_check_branch
          %3282 = sbr.rel (%p3280) target = $region84
        $region83: #{tpu_custom_call.1} parent=79 // pred_region
          %s3283 = sand.u32 %s47, 1
          %s3284 = sand.u32 %s47, 1
          %s3285 = smul.addr %s3284, 256
          %s3286 = scalar_lea.vmem [#allocation2], %s3285
        $region84: #{tpu_custom_call.1} parent=79 // pred_fallthru
          _
      $region80: #{tpu_custom_call.1} parent=5 // pred_fallthru
        _
    $region6: #{tpu_custom_call.1} parent=1 // loop_footer
      %s11 = sadd.s32 1, %s7
    $region7: #{tpu_custom_call.1} parent=1 // loop_footer_branch
      %6 = sbr.rel target = $region3
    $region8: #{tpu_custom_call.1} parent=1 // loop_exit
      _

</llo_original>
